<compile_context>
chip_gen: v6e
topology: v6e:2x2x1
jax: 0.10.0
libtpu: 0.0.40
codegen_flags: <defaults>
</compile_context>

<pallas_src>
import numpy as np
import jax
import jax.numpy as jnp
from jax.experimental import pallas as pl
from jax.experimental.pallas import tpu as pltpu


def afm_kernel(x_ref,      # [F, E, TB]   embeddings (field-major, batch on lanes)
               lin_ref,    # [1, TB]      linear(x) + w_0 + b_p (pre-folded)
               watt_ref,   # [A, E]       attention weight, pre-transposed
               batt_ref,   # [A, 1]       attention bias
               h_ref,      # [A, 1]       projection weight (A -> 1); b_h dropped
               p_ref,      # [E, 1]       final p weight (E -> 1)
               out_ref,    # [1, TB]
               inter_ref,  # scratch VMEM [E, P*TB]  pairwise interactions
               logit_ref): # scratch VMEM [P, TB]    per-pair logits
    F, E, TB = x_ref.shape
    A = watt_ref.shape[0]
    P = F * (F - 1) // 2

    # ---- 1) pairwise interactions v_i * v_j (i < j), written as lane-aligned
    #         column blocks of one [E, P*TB] matrix (pairs on the lane axis).
    idx = 0
    for i in range(F):
        xi = x_ref[i]                                           # [E, TB]
        for j in range(i + 1, F):
            inter_ref[:, idx * TB:(idx + 1) * TB] = xi * x_ref[j]
            idx += 1

    # ---- 2) attention MLP + h-projection, chunked over pairs.  Each chunk is
    #         ONE big-N MXU matmul (M=A, K=E, N=PC*TB); bias+ReLU and the
    #         h-reduction are fused so scores never persist in VMEM.
    PC = 1
    for cand in (8, 7, 4, 2):
        if P % cand == 0:
            PC = cand
            break
    watt = watt_ref[...]                                        # [A, E]
    batt = batt_ref[...]                                        # [A, 1]
    h = h_ref[...]                                              # [A, 1]
    for c in range(P // PC):
        lo = c * PC * TB
        blk = inter_ref[:, lo:lo + PC * TB]                     # [E, PC*TB]
        s = jnp.dot(watt, blk, preferred_element_type=jnp.float32)  # [A, PC*TB]
        s = jnp.maximum(s + batt, 0.0)
        lg = jnp.sum(s * h, axis=0, keepdims=True)              # [1, PC*TB]
        for k in range(PC):
            p = c * PC + k
            logit_ref[p:p + 1, :] = lg[:, k * TB:(k + 1) * TB]

    # ---- 3) softmax over the P pairs (pairs on sublanes, batch lane-dense).
    #         b_h is a constant shift of all logits -> dropped exactly.
    logits = logit_ref[...]                                     # [P, TB]
    m = jnp.max(logits, axis=0, keepdims=True)                  # [1, TB]
    z = jnp.exp(logits - m)
    denom = jnp.sum(z, axis=0, keepdims=True)                   # [1, TB]
    attn = z * pl.reciprocal(denom, approx=True)                # [P, TB]
    # TODO(synk): F.dropout on attn / attn_output is identity (eval mode).

    # ---- 4) attention-weighted sum over pairs, then p^T (.)  (b_p folded).
    acc = jnp.zeros((E, TB), jnp.float32)
    for p in range(P):
        acc = acc + attn[p:p + 1, :] * inter_ref[:, p * TB:(p + 1) * TB]
    afm = jnp.sum(acc * p_ref[...], axis=0, keepdims=True)      # [1, TB]

    # ---- 5) sigmoid(w_0 + linear + afm)  (w_0 + b_p pre-folded into lin).
    out_ref[...] = jax.nn.sigmoid(lin_ref[...] + afm)


def afm_forward(emb_feb, lin, w_att, b_att, h_w, b_h, p_w, b_p, w0, *, tb=256):
    """emb_feb: [F, E, B] (field-major, batch last); lin: [B, 1]; returns [B, 1]."""
    F, E, B = emb_feb.shape
    A = w_att.shape[1]
    P = F * (F - 1) // 2
    assert B % tb == 0 and tb % 128 == 0

    # ---- scalar folding (outside the kernel) ----
    lin_row = (lin + w0 + b_p).reshape(1, B)              # fold w_0 + b_p (exact)
    watt_t = w_att.T                                      # [A, E]
    batt_c = b_att.reshape(A, 1)
    h_c = h_w.reshape(A, 1)
    p_c = p_w.reshape(E, 1)
    del b_h  # constant shift of every logit: softmax-invariant, dropped exactly

    out = pl.pallas_call(
        afm_kernel,
        out_shape=jax.ShapeDtypeStruct((1, B), jnp.float32),
        grid=(B // tb,),
        in_specs=[
            pl.BlockSpec((F, E, tb), lambda i: (0, 0, i)),   # embeddings (batch-tiled)
            pl.BlockSpec((1, tb), lambda i: (0, i)),         # linear term
            pl.BlockSpec((A, E), lambda i: (0, 0)),          # attention W^T (resident)
            pl.BlockSpec((A, 1), lambda i: (0, 0)),          # attention bias
            pl.BlockSpec((A, 1), lambda i: (0, 0)),          # projection h
            pl.BlockSpec((E, 1), lambda i: (0, 0)),          # p weight
        ],
        out_specs=pl.BlockSpec((1, tb), lambda i: (0, i)),
        scratch_shapes=[
            pltpu.VMEM((E, P * tb), jnp.float32),            # pairwise interactions
            pltpu.VMEM((P, tb), jnp.float32),                # per-pair logits
        ],
        compiler_params=pltpu.CompilerParams(dimension_semantics=("parallel",)),
    )(emb_feb, lin_row, watt_t, batt_c, h_c, p_c)
    return out.reshape(B, 1)


def reference_forward(emb, lin, w_att, b_att, h, b_h, p_w, b_p, w0, pairs):
    i1 = jnp.array([i for i, _ in pairs])
    i2 = jnp.array([j for _, j in pairs])
    inter = emb[:, i1, :] * emb[:, i2, :]                              # [B,P,E]
    scores = jax.nn.relu(jnp.einsum('bpe,ea->bpa', inter, w_att) + b_att)
    logits = jnp.sum(scores * h[None, :, :], axis=-1, keepdims=True) + b_h[None]
    attn = jax.nn.softmax(logits, axis=1)                              # [B,P,1]
    attn_out = jnp.sum(attn * inter, axis=1)                           # [B,E]
    afm = jnp.sum(attn_out * p_w, axis=-1, keepdims=True) + b_p        # [B,1]
    return jax.nn.sigmoid(w0 + lin + afm)


if __name__ == "__main__":
    # --- model config (small) ---
    field_dims = [10, 20, 30, 40, 50, 60, 70, 80]     # 8 fields
    F = len(field_dims)
    E = 16       # embed_dim
    A = 16       # attn_size
    B = 1024     # batch
    TB = 256     # batch tile: even grid >= 4 (v7x megacore + pipelining);
                 # on single-TC v5e/v6e prefer TB=512 for this B.
    total = sum(field_dims)

    key = jax.random.PRNGKey(0)
    ks = jax.random.split(key, 12)

    # Deterministic synthetic parameters (shapes follow the module's __init__).
    embed_table = 0.1 * jax.random.normal(ks[0], (total, E), jnp.float32)
    lin_table   = 0.1 * jax.random.normal(ks[1], (total, 1), jnp.float32)
    lin_bias    = jnp.zeros((1,), jnp.float32)
    w_att = 0.1 * jax.random.normal(ks[2], (E, A), jnp.float32)
    b_att = 0.1 * jax.random.normal(ks[3], (1, A), jnp.float32)
    h_w   = 0.1 * jax.random.normal(ks[4], (1, A), jnp.float32)   # Linear(A,1) weight
    b_h   = 0.1 * jax.random.normal(ks[5], (1, 1), jnp.float32)
    p_w   = 0.1 * jax.random.normal(ks[6], (1, E), jnp.float32)   # Linear(E,1) weight
    b_p   = 0.1 * jax.random.normal(ks[7], (1, 1), jnp.float32)
    w0    = jnp.zeros((1, 1), jnp.float32)                        # nn.Parameter(zeros(1))

    # Integer feature indices x: [B, F], valid per-field ranges.
    cols = []
    for f, d in enumerate(field_dims):
        cols.append(jax.random.randint(ks[8 + (f % 3)], (B,), 0, d, jnp.int32) % d)
    x_idx = jnp.stack(cols, axis=1)                               # [B, F] int32

    # --- glue (plain JAX): embedding + linear-term gathers ---
    offsets = jnp.asarray(np.concatenate([[0], np.cumsum(field_dims)[:-1]]),
                          jnp.int32)
    flat_idx = x_idx + offsets[None, :]                           # [B, F]

    # Gather directly into the kernel's [F, E, B] layout: transposing the tiny
    # table + index matrix avoids a standalone HBM relayout of [B, F, E].
    table_t = embed_table.T                                       # [E, total]
    emb_feb = jax.vmap(lambda rows: jnp.take(table_t, rows, axis=1))(flat_idx.T)  # [F,E,B]

    lin = jnp.sum(lin_table[flat_idx], axis=1) + lin_bias         # [B, 1]

    # --- Pallas kernel ---
    out = afm_forward(emb_feb, lin, w_att, b_att, h_w, b_h, p_w, b_p, w0, tb=TB)
    out = jax.block_until_ready(out)

    # --- correctness check against a pure-JAX reference ---
    # Tolerance slightly looser than 1e-5: approx reciprocal (EUP) + different
    # f32 contraction order between kernel and reference.
    emb = jnp.transpose(emb_feb, (2, 0, 1))                       # [B, F, E] (test only)
    pairs = tuple((i, j) for i in range(F) for j in range(i + 1, F))
    ref = reference_forward(emb, lin, w_att, b_att, h_w, b_h, p_w, b_p, w0, pairs)
    np.testing.assert_allclose(np.asarray(out), np.asarray(ref),
                               rtol=1e-4, atol=1e-4)

    print("KERNEL_OK")
</pallas_src>

<mosaic_0001>
module attributes {stable_mosaic.version = 11 : i64} {
  func.func @afm_kernel(%arg0: i32, %arg1: memref<8x16x256xf32, #tpu.memory_space<vmem>>, %arg2: memref<1x256xf32, #tpu.memory_space<vmem>>, %arg3: memref<16x16xf32, #tpu.memory_space<vmem>>, %arg4: memref<16x1xf32, #tpu.memory_space<vmem>>, %arg5: memref<16x1xf32, #tpu.memory_space<vmem>>, %arg6: memref<16x1xf32, #tpu.memory_space<vmem>>, %arg7: memref<1x256xf32, #tpu.memory_space<vmem>>, %arg8: memref<16x7168xf32, #tpu.memory_space<vmem>>, %arg9: memref<28x256xf32, #tpu.memory_space<vmem>>) attributes {dimension_semantics = [#tpu.dimension_semantics<parallel>], iteration_bounds = array<i64: 4>, scalar_prefetch = 0 : i64, scratch_operands = 2 : i64, tpu.core_type = #tpu.core_type<tc>, window_params = [{transform_indices = @transform_0, window_bounds = array<i64: 8, 16, 256>}, {transform_indices = @transform_1, window_bounds = array<i64: 1, 256>}, {pipeline_mode = #tpu.pipeline_mode<synchronous>, transform_indices = @transform_2, window_bounds = array<i64: 16, 16>}, {pipeline_mode = #tpu.pipeline_mode<synchronous>, transform_indices = @transform_3, window_bounds = array<i64: 16, 1>}, {pipeline_mode = #tpu.pipeline_mode<synchronous>, transform_indices = @transform_4, window_bounds = array<i64: 16, 1>}, {pipeline_mode = #tpu.pipeline_mode<synchronous>, transform_indices = @transform_5, window_bounds = array<i64: 16, 1>}, {transform_indices = @transform_6, window_bounds = array<i64: 1, 256>}]} {
    %c0 = arith.constant 0 : index
    %c0_0 = arith.constant 0 : index
    %c0_1 = arith.constant 0 : index
    %0 = vector.load %arg1[%c0, %c0_0, %c0_1] : memref<8x16x256xf32, #tpu.memory_space<vmem>>, vector<1x16x256xf32>
    %1 = vector.shape_cast %0 : vector<1x16x256xf32> to vector<16x256xf32>
    %c1 = arith.constant 1 : index
    %c0_2 = arith.constant 0 : index
    %c0_3 = arith.constant 0 : index
    %2 = vector.load %arg1[%c1, %c0_2, %c0_3] : memref<8x16x256xf32, #tpu.memory_space<vmem>>, vector<1x16x256xf32>
    %3 = vector.shape_cast %2 : vector<1x16x256xf32> to vector<16x256xf32>
    %4 = arith.mulf %1, %3 : vector<16x256xf32>
    %c0_4 = arith.constant 0 : index
    %c0_5 = arith.constant 0 : index
    %5 = vector.load %arg8[%c0_4, %c0_5] : memref<16x7168xf32, #tpu.memory_space<vmem>>, vector<16x256xf32>
    tpu.vector_store %arg8[%c0_4, %c0_5], %4 {strides = array<i32>} : memref<16x7168xf32, #tpu.memory_space<vmem>>, vector<16x256xf32>,
    %c2 = arith.constant 2 : index
    %c0_6 = arith.constant 0 : index
    %c0_7 = arith.constant 0 : index
    %6 = vector.load %arg1[%c2, %c0_6, %c0_7] : memref<8x16x256xf32, #tpu.memory_space<vmem>>, vector<1x16x256xf32>
    %7 = vector.shape_cast %6 : vector<1x16x256xf32> to vector<16x256xf32>
    %8 = arith.mulf %1, %7 : vector<16x256xf32>
    %c0_8 = arith.constant 0 : index
    %c256 = arith.constant 256 : index
    %9 = vector.load %arg8[%c0_8, %c256] : memref<16x7168xf32, #tpu.memory_space<vmem>>, vector<16x256xf32>
    tpu.vector_store %arg8[%c0_8, %c256], %8 {strides = array<i32>} : memref<16x7168xf32, #tpu.memory_space<vmem>>, vector<16x256xf32>,
    %c3 = arith.constant 3 : index
    %c0_9 = arith.constant 0 : index
    %c0_10 = arith.constant 0 : index
    %10 = vector.load %arg1[%c3, %c0_9, %c0_10] : memref<8x16x256xf32, #tpu.memory_space<vmem>>, vector<1x16x256xf32>
    %11 = vector.shape_cast %10 : vector<1x16x256xf32> to vector<16x256xf32>
    %12 = arith.mulf %1, %11 : vector<16x256xf32>
    %c0_11 = arith.constant 0 : index
    %c512 = arith.constant 512 : index
    %13 = vector.load %arg8[%c0_11, %c512] : memref<16x7168xf32, #tpu.memory_space<vmem>>, vector<16x256xf32>
    tpu.vector_store %arg8[%c0_11, %c512], %12 {strides = array<i32>} : memref<16x7168xf32, #tpu.memory_space<vmem>>, vector<16x256xf32>,
    %c4 = arith.constant 4 : index
    %c0_12 = arith.constant 0 : index
    %c0_13 = arith.constant 0 : index
    %14 = vector.load %arg1[%c4, %c0_12, %c0_13] : memref<8x16x256xf32, #tpu.memory_space<vmem>>, vector<1x16x256xf32>
    %15 = vector.shape_cast %14 : vector<1x16x256xf32> to vector<16x256xf32>
    %16 = arith.mulf %1, %15 : vector<16x256xf32>
    %c0_14 = arith.constant 0 : index
    %c768 = arith.constant 768 : index
    %17 = vector.load %arg8[%c0_14, %c768] : memref<16x7168xf32, #tpu.memory_space<vmem>>, vector<16x256xf32>
    tpu.vector_store %arg8[%c0_14, %c768], %16 {strides = array<i32>} : memref<16x7168xf32, #tpu.memory_space<vmem>>, vector<16x256xf32>,
    %c5 = arith.constant 5 : index
    %c0_15 = arith.constant 0 : index
    %c0_16 = arith.constant 0 : index
    %18 = vector.load %arg1[%c5, %c0_15, %c0_16] : memref<8x16x256xf32, #tpu.memory_space<vmem>>, vector<1x16x256xf32>
    %19 = vector.shape_cast %18 : vector<1x16x256xf32> to vector<16x256xf32>
    %20 = arith.mulf %1, %19 : vector<16x256xf32>
    %c0_17 = arith.constant 0 : index
    %c1024 = arith.constant 1024 : index
    %21 = vector.load %arg8[%c0_17, %c1024] : memref<16x7168xf32, #tpu.memory_space<vmem>>, vector<16x256xf32>
    tpu.vector_store %arg8[%c0_17, %c1024], %20 {strides = array<i32>} : memref<16x7168xf32, #tpu.memory_space<vmem>>, vector<16x256xf32>,
    %c6 = arith.constant 6 : index
    %c0_18 = arith.constant 0 : index
    %c0_19 = arith.constant 0 : index
    %22 = vector.load %arg1[%c6, %c0_18, %c0_19] : memref<8x16x256xf32, #tpu.memory_space<vmem>>, vector<1x16x256xf32>
    %23 = vector.shape_cast %22 : vector<1x16x256xf32> to vector<16x256xf32>
    %24 = arith.mulf %1, %23 : vector<16x256xf32>
    %c0_20 = arith.constant 0 : index
    %c1280 = arith.constant 1280 : index
    %25 = vector.load %arg8[%c0_20, %c1280] : memref<16x7168xf32, #tpu.memory_space<vmem>>, vector<16x256xf32>
    tpu.vector_store %arg8[%c0_20, %c1280], %24 {strides = array<i32>} : memref<16x7168xf32, #tpu.memory_space<vmem>>, vector<16x256xf32>,
    %c7 = arith.constant 7 : index
    %c0_21 = arith.constant 0 : index
    %c0_22 = arith.constant 0 : index
    %26 = vector.load %arg1[%c7, %c0_21, %c0_22] : memref<8x16x256xf32, #tpu.memory_space<vmem>>, vector<1x16x256xf32>
    %27 = vector.shape_cast %26 : vector<1x16x256xf32> to vector<16x256xf32>
    %28 = arith.mulf %1, %27 : vector<16x256xf32>
    %c0_23 = arith.constant 0 : index
    %c1536 = arith.constant 1536 : index
    %29 = vector.load %arg8[%c0_23, %c1536] : memref<16x7168xf32, #tpu.memory_space<vmem>>, vector<16x256xf32>
    tpu.vector_store %arg8[%c0_23, %c1536], %28 {strides = array<i32>} : memref<16x7168xf32, #tpu.memory_space<vmem>>, vector<16x256xf32>,
    %c1_24 = arith.constant 1 : index
    %c0_25 = arith.constant 0 : index
    %c0_26 = arith.constant 0 : index
    %30 = vector.load %arg1[%c1_24, %c0_25, %c0_26] : memref<8x16x256xf32, #tpu.memory_space<vmem>>, vector<1x16x256xf32>
    %31 = vector.shape_cast %30 : vector<1x16x256xf32> to vector<16x256xf32>
    %c2_27 = arith.constant 2 : index
    %c0_28 = arith.constant 0 : index
    %c0_29 = arith.constant 0 : index
    %32 = vector.load %arg1[%c2_27, %c0_28, %c0_29] : memref<8x16x256xf32, #tpu.memory_space<vmem>>, vector<1x16x256xf32>
    %33 = vector.shape_cast %32 : vector<1x16x256xf32> to vector<16x256xf32>
    %34 = arith.mulf %31, %33 : vector<16x256xf32>
    %c0_30 = arith.constant 0 : index
    %c1792 = arith.constant 1792 : index
    %35 = vector.load %arg8[%c0_30, %c1792] : memref<16x7168xf32, #tpu.memory_space<vmem>>, vector<16x256xf32>
    tpu.vector_store %arg8[%c0_30, %c1792], %34 {strides = array<i32>} : memref<16x7168xf32, #tpu.memory_space<vmem>>, vector<16x256xf32>,
    %c3_31 = arith.constant 3 : index
    %c0_32 = arith.constant 0 : index
    %c0_33 = arith.constant 0 : index
    %36 = vector.load %arg1[%c3_31, %c0_32, %c0_33] : memref<8x16x256xf32, #tpu.memory_space<vmem>>, vector<1x16x256xf32>
    %37 = vector.shape_cast %36 : vector<1x16x256xf32> to vector<16x256xf32>
    %38 = arith.mulf %31, %37 : vector<16x256xf32>
    %c0_34 = arith.constant 0 : index
    %c2048 = arith.constant 2048 : index
    %39 = vector.load %arg8[%c0_34, %c2048] : memref<16x7168xf32, #tpu.memory_space<vmem>>, vector<16x256xf32>
    tpu.vector_store %arg8[%c0_34, %c2048], %38 {strides = array<i32>} : memref<16x7168xf32, #tpu.memory_space<vmem>>, vector<16x256xf32>,
    %c4_35 = arith.constant 4 : index
    %c0_36 = arith.constant 0 : index
    %c0_37 = arith.constant 0 : index
    %40 = vector.load %arg1[%c4_35, %c0_36, %c0_37] : memref<8x16x256xf32, #tpu.memory_space<vmem>>, vector<1x16x256xf32>
    %41 = vector.shape_cast %40 : vector<1x16x256xf32> to vector<16x256xf32>
    %42 = arith.mulf %31, %41 : vector<16x256xf32>
    %c0_38 = arith.constant 0 : index
    %c2304 = arith.constant 2304 : index
    %43 = vector.load %arg8[%c0_38, %c2304] : memref<16x7168xf32, #tpu.memory_space<vmem>>, vector<16x256xf32>
    tpu.vector_store %arg8[%c0_38, %c2304], %42 {strides = array<i32>} : memref<16x7168xf32, #tpu.memory_space<vmem>>, vector<16x256xf32>,
    %c5_39 = arith.constant 5 : index
    %c0_40 = arith.constant 0 : index
    %c0_41 = arith.constant 0 : index
    %44 = vector.load %arg1[%c5_39, %c0_40, %c0_41] : memref<8x16x256xf32, #tpu.memory_space<vmem>>, vector<1x16x256xf32>
    %45 = vector.shape_cast %44 : vector<1x16x256xf32> to vector<16x256xf32>
    %46 = arith.mulf %31, %45 : vector<16x256xf32>
    %c0_42 = arith.constant 0 : index
    %c2560 = arith.constant 2560 : index
    %47 = vector.load %arg8[%c0_42, %c2560] : memref<16x7168xf32, #tpu.memory_space<vmem>>, vector<16x256xf32>
    tpu.vector_store %arg8[%c0_42, %c2560], %46 {strides = array<i32>} : memref<16x7168xf32, #tpu.memory_space<vmem>>, vector<16x256xf32>,
    %c6_43 = arith.constant 6 : index
    %c0_44 = arith.constant 0 : index
    %c0_45 = arith.constant 0 : index
    %48 = vector.load %arg1[%c6_43, %c0_44, %c0_45] : memref<8x16x256xf32, #tpu.memory_space<vmem>>, vector<1x16x256xf32>
    %49 = vector.shape_cast %48 : vector<1x16x256xf32> to vector<16x256xf32>
    %50 = arith.mulf %31, %49 : vector<16x256xf32>
    %c0_46 = arith.constant 0 : index
    %c2816 = arith.constant 2816 : index
    %51 = vector.load %arg8[%c0_46, %c2816] : memref<16x7168xf32, #tpu.memory_space<vmem>>, vector<16x256xf32>
    tpu.vector_store %arg8[%c0_46, %c2816], %50 {strides = array<i32>} : memref<16x7168xf32, #tpu.memory_space<vmem>>, vector<16x256xf32>,
    %c7_47 = arith.constant 7 : index
    %c0_48 = arith.constant 0 : index
    %c0_49 = arith.constant 0 : index
    %52 = vector.load %arg1[%c7_47, %c0_48, %c0_49] : memref<8x16x256xf32, #tpu.memory_space<vmem>>, vector<1x16x256xf32>
    %53 = vector.shape_cast %52 : vector<1x16x256xf32> to vector<16x256xf32>
    %54 = arith.mulf %31, %53 : vector<16x256xf32>
    %c0_50 = arith.constant 0 : index
    %c3072 = arith.constant 3072 : index
    %55 = vector.load %arg8[%c0_50, %c3072] : memref<16x7168xf32, #tpu.memory_space<vmem>>, vector<16x256xf32>
    tpu.vector_store %arg8[%c0_50, %c3072], %54 {strides = array<i32>} : memref<16x7168xf32, #tpu.memory_space<vmem>>, vector<16x256xf32>,
    %c2_51 = arith.constant 2 : index
    %c0_52 = arith.constant 0 : index
    %c0_53 = arith.constant 0 : index
    %56 = vector.load %arg1[%c2_51, %c0_52, %c0_53] : memref<8x16x256xf32, #tpu.memory_space<vmem>>, vector<1x16x256xf32>
    %57 = vector.shape_cast %56 : vector<1x16x256xf32> to vector<16x256xf32>
    %c3_54 = arith.constant 3 : index
    %c0_55 = arith.constant 0 : index
    %c0_56 = arith.constant 0 : index
    %58 = vector.load %arg1[%c3_54, %c0_55, %c0_56] : memref<8x16x256xf32, #tpu.memory_space<vmem>>, vector<1x16x256xf32>
    %59 = vector.shape_cast %58 : vector<1x16x256xf32> to vector<16x256xf32>
    %60 = arith.mulf %57, %59 : vector<16x256xf32>
    %c0_57 = arith.constant 0 : index
    %c3328 = arith.constant 3328 : index
    %61 = vector.load %arg8[%c0_57, %c3328] : memref<16x7168xf32, #tpu.memory_space<vmem>>, vector<16x256xf32>
    tpu.vector_store %arg8[%c0_57, %c3328], %60 {strides = array<i32>} : memref<16x7168xf32, #tpu.memory_space<vmem>>, vector<16x256xf32>,
    %c4_58 = arith.constant 4 : index
    %c0_59 = arith.constant 0 : index
    %c0_60 = arith.constant 0 : index
    %62 = vector.load %arg1[%c4_58, %c0_59, %c0_60] : memref<8x16x256xf32, #tpu.memory_space<vmem>>, vector<1x16x256xf32>
    %63 = vector.shape_cast %62 : vector<1x16x256xf32> to vector<16x256xf32>
    %64 = arith.mulf %57, %63 : vector<16x256xf32>
    %c0_61 = arith.constant 0 : index
    %c3584 = arith.constant 3584 : index
    %65 = vector.load %arg8[%c0_61, %c3584] : memref<16x7168xf32, #tpu.memory_space<vmem>>, vector<16x256xf32>
    tpu.vector_store %arg8[%c0_61, %c3584], %64 {strides = array<i32>} : memref<16x7168xf32, #tpu.memory_space<vmem>>, vector<16x256xf32>,
    %c5_62 = arith.constant 5 : index
    %c0_63 = arith.constant 0 : index
    %c0_64 = arith.constant 0 : index
    %66 = vector.load %arg1[%c5_62, %c0_63, %c0_64] : memref<8x16x256xf32, #tpu.memory_space<vmem>>, vector<1x16x256xf32>
    %67 = vector.shape_cast %66 : vector<1x16x256xf32> to vector<16x256xf32>
    %68 = arith.mulf %57, %67 : vector<16x256xf32>
    %c0_65 = arith.constant 0 : index
    %c3840 = arith.constant 3840 : index
    %69 = vector.load %arg8[%c0_65, %c3840] : memref<16x7168xf32, #tpu.memory_space<vmem>>, vector<16x256xf32>
    tpu.vector_store %arg8[%c0_65, %c3840], %68 {strides = array<i32>} : memref<16x7168xf32, #tpu.memory_space<vmem>>, vector<16x256xf32>,
    %c6_66 = arith.constant 6 : index
    %c0_67 = arith.constant 0 : index
    %c0_68 = arith.constant 0 : index
    %70 = vector.load %arg1[%c6_66, %c0_67, %c0_68] : memref<8x16x256xf32, #tpu.memory_space<vmem>>, vector<1x16x256xf32>
    %71 = vector.shape_cast %70 : vector<1x16x256xf32> to vector<16x256xf32>
    %72 = arith.mulf %57, %71 : vector<16x256xf32>
    %c0_69 = arith.constant 0 : index
    %c4096 = arith.constant 4096 : index
    %73 = vector.load %arg8[%c0_69, %c4096] : memref<16x7168xf32, #tpu.memory_space<vmem>>, vector<16x256xf32>
    tpu.vector_store %arg8[%c0_69, %c4096], %72 {strides = array<i32>} : memref<16x7168xf32, #tpu.memory_space<vmem>>, vector<16x256xf32>,
    %c7_70 = arith.constant 7 : index
    %c0_71 = arith.constant 0 : index
    %c0_72 = arith.constant 0 : index
    %74 = vector.load %arg1[%c7_70, %c0_71, %c0_72] : memref<8x16x256xf32, #tpu.memory_space<vmem>>, vector<1x16x256xf32>
    %75 = vector.shape_cast %74 : vector<1x16x256xf32> to vector<16x256xf32>
    %76 = arith.mulf %57, %75 : vector<16x256xf32>
    %c0_73 = arith.constant 0 : index
    %c4352 = arith.constant 4352 : index
    %77 = vector.load %arg8[%c0_73, %c4352] : memref<16x7168xf32, #tpu.memory_space<vmem>>, vector<16x256xf32>
    tpu.vector_store %arg8[%c0_73, %c4352], %76 {strides = array<i32>} : memref<16x7168xf32, #tpu.memory_space<vmem>>, vector<16x256xf32>,
    %c3_74 = arith.constant 3 : index
    %c0_75 = arith.constant 0 : index
    %c0_76 = arith.constant 0 : index
    %78 = vector.load %arg1[%c3_74, %c0_75, %c0_76] : memref<8x16x256xf32, #tpu.memory_space<vmem>>, vector<1x16x256xf32>
    %79 = vector.shape_cast %78 : vector<1x16x256xf32> to vector<16x256xf32>
    %c4_77 = arith.constant 4 : index
    %c0_78 = arith.constant 0 : index
    %c0_79 = arith.constant 0 : index
    %80 = vector.load %arg1[%c4_77, %c0_78, %c0_79] : memref<8x16x256xf32, #tpu.memory_space<vmem>>, vector<1x16x256xf32>
    %81 = vector.shape_cast %80 : vector<1x16x256xf32> to vector<16x256xf32>
    %82 = arith.mulf %79, %81 : vector<16x256xf32>
    %c0_80 = arith.constant 0 : index
    %c4608 = arith.constant 4608 : index
    %83 = vector.load %arg8[%c0_80, %c4608] : memref<16x7168xf32, #tpu.memory_space<vmem>>, vector<16x256xf32>
    tpu.vector_store %arg8[%c0_80, %c4608], %82 {strides = array<i32>} : memref<16x7168xf32, #tpu.memory_space<vmem>>, vector<16x256xf32>,
    %c5_81 = arith.constant 5 : index
    %c0_82 = arith.constant 0 : index
    %c0_83 = arith.constant 0 : index
    %84 = vector.load %arg1[%c5_81, %c0_82, %c0_83] : memref<8x16x256xf32, #tpu.memory_space<vmem>>, vector<1x16x256xf32>
    %85 = vector.shape_cast %84 : vector<1x16x256xf32> to vector<16x256xf32>
    %86 = arith.mulf %79, %85 : vector<16x256xf32>
    %c0_84 = arith.constant 0 : index
    %c4864 = arith.constant 4864 : index
    %87 = vector.load %arg8[%c0_84, %c4864] : memref<16x7168xf32, #tpu.memory_space<vmem>>, vector<16x256xf32>
    tpu.vector_store %arg8[%c0_84, %c4864], %86 {strides = array<i32>} : memref<16x7168xf32, #tpu.memory_space<vmem>>, vector<16x256xf32>,
    %c6_85 = arith.constant 6 : index
    %c0_86 = arith.constant 0 : index
    %c0_87 = arith.constant 0 : index
    %88 = vector.load %arg1[%c6_85, %c0_86, %c0_87] : memref<8x16x256xf32, #tpu.memory_space<vmem>>, vector<1x16x256xf32>
    %89 = vector.shape_cast %88 : vector<1x16x256xf32> to vector<16x256xf32>
    %90 = arith.mulf %79, %89 : vector<16x256xf32>
    %c0_88 = arith.constant 0 : index
    %c5120 = arith.constant 5120 : index
    %91 = vector.load %arg8[%c0_88, %c5120] : memref<16x7168xf32, #tpu.memory_space<vmem>>, vector<16x256xf32>
    tpu.vector_store %arg8[%c0_88, %c5120], %90 {strides = array<i32>} : memref<16x7168xf32, #tpu.memory_space<vmem>>, vector<16x256xf32>,
    %c7_89 = arith.constant 7 : index
    %c0_90 = arith.constant 0 : index
    %c0_91 = arith.constant 0 : index
    %92 = vector.load %arg1[%c7_89, %c0_90, %c0_91] : memref<8x16x256xf32, #tpu.memory_space<vmem>>, vector<1x16x256xf32>
    %93 = vector.shape_cast %92 : vector<1x16x256xf32> to vector<16x256xf32>
    %94 = arith.mulf %79, %93 : vector<16x256xf32>
    %c0_92 = arith.constant 0 : index
    %c5376 = arith.constant 5376 : index
    %95 = vector.load %arg8[%c0_92, %c5376] : memref<16x7168xf32, #tpu.memory_space<vmem>>, vector<16x256xf32>
    tpu.vector_store %arg8[%c0_92, %c5376], %94 {strides = array<i32>} : memref<16x7168xf32, #tpu.memory_space<vmem>>, vector<16x256xf32>,
    %c4_93 = arith.constant 4 : index
    %c0_94 = arith.constant 0 : index
    %c0_95 = arith.constant 0 : index
    %96 = vector.load %arg1[%c4_93, %c0_94, %c0_95] : memref<8x16x256xf32, #tpu.memory_space<vmem>>, vector<1x16x256xf32>
    %97 = vector.shape_cast %96 : vector<1x16x256xf32> to vector<16x256xf32>
    %c5_96 = arith.constant 5 : index
    %c0_97 = arith.constant 0 : index
    %c0_98 = arith.constant 0 : index
    %98 = vector.load %arg1[%c5_96, %c0_97, %c0_98] : memref<8x16x256xf32, #tpu.memory_space<vmem>>, vector<1x16x256xf32>
    %99 = vector.shape_cast %98 : vector<1x16x256xf32> to vector<16x256xf32>
    %100 = arith.mulf %97, %99 : vector<16x256xf32>
    %c0_99 = arith.constant 0 : index
    %c5632 = arith.constant 5632 : index
    %101 = vector.load %arg8[%c0_99, %c5632] : memref<16x7168xf32, #tpu.memory_space<vmem>>, vector<16x256xf32>
    tpu.vector_store %arg8[%c0_99, %c5632], %100 {strides = array<i32>} : memref<16x7168xf32, #tpu.memory_space<vmem>>, vector<16x256xf32>,
    %c6_100 = arith.constant 6 : index
    %c0_101 = arith.constant 0 : index
    %c0_102 = arith.constant 0 : index
    %102 = vector.load %arg1[%c6_100, %c0_101, %c0_102] : memref<8x16x256xf32, #tpu.memory_space<vmem>>, vector<1x16x256xf32>
    %103 = vector.shape_cast %102 : vector<1x16x256xf32> to vector<16x256xf32>
    %104 = arith.mulf %97, %103 : vector<16x256xf32>
    %c0_103 = arith.constant 0 : index
    %c5888 = arith.constant 5888 : index
    %105 = vector.load %arg8[%c0_103, %c5888] : memref<16x7168xf32, #tpu.memory_space<vmem>>, vector<16x256xf32>
    tpu.vector_store %arg8[%c0_103, %c5888], %104 {strides = array<i32>} : memref<16x7168xf32, #tpu.memory_space<vmem>>, vector<16x256xf32>,
    %c7_104 = arith.constant 7 : index
    %c0_105 = arith.constant 0 : index
    %c0_106 = arith.constant 0 : index
    %106 = vector.load %arg1[%c7_104, %c0_105, %c0_106] : memref<8x16x256xf32, #tpu.memory_space<vmem>>, vector<1x16x256xf32>
    %107 = vector.shape_cast %106 : vector<1x16x256xf32> to vector<16x256xf32>
    %108 = arith.mulf %97, %107 : vector<16x256xf32>
    %c0_107 = arith.constant 0 : index
    %c6144 = arith.constant 6144 : index
    %109 = vector.load %arg8[%c0_107, %c6144] : memref<16x7168xf32, #tpu.memory_space<vmem>>, vector<16x256xf32>
    tpu.vector_store %arg8[%c0_107, %c6144], %108 {strides = array<i32>} : memref<16x7168xf32, #tpu.memory_space<vmem>>, vector<16x256xf32>,
    %c5_108 = arith.constant 5 : index
    %c0_109 = arith.constant 0 : index
    %c0_110 = arith.constant 0 : index
    %110 = vector.load %arg1[%c5_108, %c0_109, %c0_110] : memref<8x16x256xf32, #tpu.memory_space<vmem>>, vector<1x16x256xf32>
    %111 = vector.shape_cast %110 : vector<1x16x256xf32> to vector<16x256xf32>
    %c6_111 = arith.constant 6 : index
    %c0_112 = arith.constant 0 : index
    %c0_113 = arith.constant 0 : index
    %112 = vector.load %arg1[%c6_111, %c0_112, %c0_113] : memref<8x16x256xf32, #tpu.memory_space<vmem>>, vector<1x16x256xf32>
    %113 = vector.shape_cast %112 : vector<1x16x256xf32> to vector<16x256xf32>
    %114 = arith.mulf %111, %113 : vector<16x256xf32>
    %c0_114 = arith.constant 0 : index
    %c6400 = arith.constant 6400 : index
    %115 = vector.load %arg8[%c0_114, %c6400] : memref<16x7168xf32, #tpu.memory_space<vmem>>, vector<16x256xf32>
    tpu.vector_store %arg8[%c0_114, %c6400], %114 {strides = array<i32>} : memref<16x7168xf32, #tpu.memory_space<vmem>>, vector<16x256xf32>,
    %c7_115 = arith.constant 7 : index
    %c0_116 = arith.constant 0 : index
    %c0_117 = arith.constant 0 : index
    %116 = vector.load %arg1[%c7_115, %c0_116, %c0_117] : memref<8x16x256xf32, #tpu.memory_space<vmem>>, vector<1x16x256xf32>
    %117 = vector.shape_cast %116 : vector<1x16x256xf32> to vector<16x256xf32>
    %118 = arith.mulf %111, %117 : vector<16x256xf32>
    %c0_118 = arith.constant 0 : index
    %c6656 = arith.constant 6656 : index
    %119 = vector.load %arg8[%c0_118, %c6656] : memref<16x7168xf32, #tpu.memory_space<vmem>>, vector<16x256xf32>
    tpu.vector_store %arg8[%c0_118, %c6656], %118 {strides = array<i32>} : memref<16x7168xf32, #tpu.memory_space<vmem>>, vector<16x256xf32>,
    %c6_119 = arith.constant 6 : index
    %c0_120 = arith.constant 0 : index
    %c0_121 = arith.constant 0 : index
    %120 = vector.load %arg1[%c6_119, %c0_120, %c0_121] : memref<8x16x256xf32, #tpu.memory_space<vmem>>, vector<1x16x256xf32>
    %121 = vector.shape_cast %120 : vector<1x16x256xf32> to vector<16x256xf32>
    %c7_122 = arith.constant 7 : index
    %c0_123 = arith.constant 0 : index
    %c0_124 = arith.constant 0 : index
    %122 = vector.load %arg1[%c7_122, %c0_123, %c0_124] : memref<8x16x256xf32, #tpu.memory_space<vmem>>, vector<1x16x256xf32>
    %123 = vector.shape_cast %122 : vector<1x16x256xf32> to vector<16x256xf32>
    %124 = arith.mulf %121, %123 : vector<16x256xf32>
    %c0_125 = arith.constant 0 : index
    %c6912 = arith.constant 6912 : index
    %125 = vector.load %arg8[%c0_125, %c6912] : memref<16x7168xf32, #tpu.memory_space<vmem>>, vector<16x256xf32>
    tpu.vector_store %arg8[%c0_125, %c6912], %124 {strides = array<i32>} : memref<16x7168xf32, #tpu.memory_space<vmem>>, vector<16x256xf32>,
    %c0_126 = arith.constant 0 : index
    %c0_127 = arith.constant 0 : index
    %126 = vector.load %arg3[%c0_126, %c0_127] : memref<16x16xf32, #tpu.memory_space<vmem>>, vector<16x16xf32>
    %c0_128 = arith.constant 0 : index
    %c0_129 = arith.constant 0 : index
    %127 = vector.load %arg4[%c0_128, %c0_129] : memref<16x1xf32, #tpu.memory_space<vmem>>, vector<16x1xf32>
    %c0_130 = arith.constant 0 : index
    %c0_131 = arith.constant 0 : index
    %128 = vector.load %arg5[%c0_130, %c0_131] : memref<16x1xf32, #tpu.memory_space<vmem>>, vector<16x1xf32>
    %c0_132 = arith.constant 0 : index
    %c0_133 = arith.constant 0 : index
    %129 = vector.load %arg8[%c0_132, %c0_133] : memref<16x7168xf32, #tpu.memory_space<vmem>>, vector<16x1792xf32>
    %cst = arith.constant dense<0.000000e+00> : vector<16x1792xf32>
    %130 = tpu.matmul %126, %129, %cst {dimension_numbers = #tpu.dot_dimension_numbers<[1], [0], [0], [1], [0, 0, 1, 1], [], []>} : vector<16x16xf32>, vector<16x1792xf32>, vector<16x1792xf32> -> vector<16x1792xf32>
    %131 = vector.broadcast %127 : vector<16x1xf32> to vector<16x1792xf32>
    %132 = arith.addf %130, %131 : vector<16x1792xf32>
    %cst_134 = arith.constant 0.000000e+00 : f32
    %133 = vector.broadcast %cst_134 : f32 to vector<16x1792xf32>
    %134 = arith.maximumf %132, %133 : vector<16x1792xf32>
    %135 = vector.broadcast %128 : vector<16x1xf32> to vector<16x1792xf32>
    %136 = arith.mulf %134, %135 : vector<16x1792xf32>
    %cst_135 = arith.constant dense<0.000000e+00> : vector<1792xf32>
    %137 = vector.multi_reduction <add>, %136, %cst_135 [0] : vector<16x1792xf32> to vector<1792xf32>
    %138 = vector.shape_cast %137 : vector<1792xf32> to vector<1x1792xf32>
    %139 = vector.extract_strided_slice %138 {offsets = [0, 0], sizes = [1, 256], strides = [1, 1]} : vector<1x1792xf32> to vector<1x256xf32>
    %c0_136 = arith.constant 0 : index
    %c0_137 = arith.constant 0 : index
    %140 = vector.load %arg9[%c0_136, %c0_137] : memref<28x256xf32, #tpu.memory_space<vmem>>, vector<1x256xf32>
    tpu.vector_store %arg9[%c0_136, %c0_137], %139 {strides = array<i32>} : memref<28x256xf32, #tpu.memory_space<vmem>>, vector<1x256xf32>,
    %141 = vector.extract_strided_slice %138 {offsets = [0, 256], sizes = [1, 256], strides = [1, 1]} : vector<1x1792xf32> to vector<1x256xf32>
    %c1_138 = arith.constant 1 : index
    %c0_139 = arith.constant 0 : index
    %142 = vector.load %arg9[%c1_138, %c0_139] : memref<28x256xf32, #tpu.memory_space<vmem>>, vector<1x256xf32>
    tpu.vector_store %arg9[%c1_138, %c0_139], %141 {strides = array<i32>} : memref<28x256xf32, #tpu.memory_space<vmem>>, vector<1x256xf32>,
    %143 = vector.extract_strided_slice %138 {offsets = [0, 512], sizes = [1, 256], strides = [1, 1]} : vector<1x1792xf32> to vector<1x256xf32>
    %c2_140 = arith.constant 2 : index
    %c0_141 = arith.constant 0 : index
    %144 = vector.load %arg9[%c2_140, %c0_141] : memref<28x256xf32, #tpu.memory_space<vmem>>, vector<1x256xf32>
    tpu.vector_store %arg9[%c2_140, %c0_141], %143 {strides = array<i32>} : memref<28x256xf32, #tpu.memory_space<vmem>>, vector<1x256xf32>,
    %145 = vector.extract_strided_slice %138 {offsets = [0, 768], sizes = [1, 256], strides = [1, 1]} : vector<1x1792xf32> to vector<1x256xf32>
    %c3_142 = arith.constant 3 : index
    %c0_143 = arith.constant 0 : index
    %146 = vector.load %arg9[%c3_142, %c0_143] : memref<28x256xf32, #tpu.memory_space<vmem>>, vector<1x256xf32>
    tpu.vector_store %arg9[%c3_142, %c0_143], %145 {strides = array<i32>} : memref<28x256xf32, #tpu.memory_space<vmem>>, vector<1x256xf32>,
    %147 = vector.extract_strided_slice %138 {offsets = [0, 1024], sizes = [1, 256], strides = [1, 1]} : vector<1x1792xf32> to vector<1x256xf32>
    %c4_144 = arith.constant 4 : index
    %c0_145 = arith.constant 0 : index
    %148 = vector.load %arg9[%c4_144, %c0_145] : memref<28x256xf32, #tpu.memory_space<vmem>>, vector<1x256xf32>
    tpu.vector_store %arg9[%c4_144, %c0_145], %147 {strides = array<i32>} : memref<28x256xf32, #tpu.memory_space<vmem>>, vector<1x256xf32>,
    %149 = vector.extract_strided_slice %138 {offsets = [0, 1280], sizes = [1, 256], strides = [1, 1]} : vector<1x1792xf32> to vector<1x256xf32>
    %c5_146 = arith.constant 5 : index
    %c0_147 = arith.constant 0 : index
    %150 = vector.load %arg9[%c5_146, %c0_147] : memref<28x256xf32, #tpu.memory_space<vmem>>, vector<1x256xf32>
    tpu.vector_store %arg9[%c5_146, %c0_147], %149 {strides = array<i32>} : memref<28x256xf32, #tpu.memory_space<vmem>>, vector<1x256xf32>,
    %151 = vector.extract_strided_slice %138 {offsets = [0, 1536], sizes = [1, 256], strides = [1, 1]} : vector<1x1792xf32> to vector<1x256xf32>
    %c6_148 = arith.constant 6 : index
    %c0_149 = arith.constant 0 : index
    %152 = vector.load %arg9[%c6_148, %c0_149] : memref<28x256xf32, #tpu.memory_space<vmem>>, vector<1x256xf32>
    tpu.vector_store %arg9[%c6_148, %c0_149], %151 {strides = array<i32>} : memref<28x256xf32, #tpu.memory_space<vmem>>, vector<1x256xf32>,
    %c0_150 = arith.constant 0 : index
    %c1792_151 = arith.constant 1792 : index
    %153 = vector.load %arg8[%c0_150, %c1792_151] : memref<16x7168xf32, #tpu.memory_space<vmem>>, vector<16x1792xf32>
    %cst_152 = arith.constant dense<0.000000e+00> : vector<16x1792xf32>
    %154 = tpu.matmul %126, %153, %cst_152 {dimension_numbers = #tpu.dot_dimension_numbers<[1], [0], [0], [1], [0, 0, 1, 1], [], []>} : vector<16x16xf32>, vector<16x1792xf32>, vector<16x1792xf32> -> vector<16x1792xf32>
    %155 = vector.broadcast %127 : vector<16x1xf32> to vector<16x1792xf32>
    %156 = arith.addf %154, %155 : vector<16x1792xf32>
    %cst_153 = arith.constant 0.000000e+00 : f32
    %157 = vector.broadcast %cst_153 : f32 to vector<16x1792xf32>
    %158 = arith.maximumf %156, %157 : vector<16x1792xf32>
    %159 = vector.broadcast %128 : vector<16x1xf32> to vector<16x1792xf32>
    %160 = arith.mulf %158, %159 : vector<16x1792xf32>
    %cst_154 = arith.constant dense<0.000000e+00> : vector<1792xf32>
    %161 = vector.multi_reduction <add>, %160, %cst_154 [0] : vector<16x1792xf32> to vector<1792xf32>
    %162 = vector.shape_cast %161 : vector<1792xf32> to vector<1x1792xf32>
    %163 = vector.extract_strided_slice %162 {offsets = [0, 0], sizes = [1, 256], strides = [1, 1]} : vector<1x1792xf32> to vector<1x256xf32>
    %c7_155 = arith.constant 7 : index
    %c0_156 = arith.constant 0 : index
    %164 = vector.load %arg9[%c7_155, %c0_156] : memref<28x256xf32, #tpu.memory_space<vmem>>, vector<1x256xf32>
    tpu.vector_store %arg9[%c7_155, %c0_156], %163 {strides = array<i32>} : memref<28x256xf32, #tpu.memory_space<vmem>>, vector<1x256xf32>,
    %165 = vector.extract_strided_slice %162 {offsets = [0, 256], sizes = [1, 256], strides = [1, 1]} : vector<1x1792xf32> to vector<1x256xf32>
    %c8 = arith.constant 8 : index
    %c0_157 = arith.constant 0 : index
    %166 = vector.load %arg9[%c8, %c0_157] : memref<28x256xf32, #tpu.memory_space<vmem>>, vector<1x256xf32>
    tpu.vector_store %arg9[%c8, %c0_157], %165 {strides = array<i32>} : memref<28x256xf32, #tpu.memory_space<vmem>>, vector<1x256xf32>,
    %167 = vector.extract_strided_slice %162 {offsets = [0, 512], sizes = [1, 256], strides = [1, 1]} : vector<1x1792xf32> to vector<1x256xf32>
    %c9 = arith.constant 9 : index
    %c0_158 = arith.constant 0 : index
    %168 = vector.load %arg9[%c9, %c0_158] : memref<28x256xf32, #tpu.memory_space<vmem>>, vector<1x256xf32>
    tpu.vector_store %arg9[%c9, %c0_158], %167 {strides = array<i32>} : memref<28x256xf32, #tpu.memory_space<vmem>>, vector<1x256xf32>,
    %169 = vector.extract_strided_slice %162 {offsets = [0, 768], sizes = [1, 256], strides = [1, 1]} : vector<1x1792xf32> to vector<1x256xf32>
    %c10 = arith.constant 10 : index
    %c0_159 = arith.constant 0 : index
    %170 = vector.load %arg9[%c10, %c0_159] : memref<28x256xf32, #tpu.memory_space<vmem>>, vector<1x256xf32>
    tpu.vector_store %arg9[%c10, %c0_159], %169 {strides = array<i32>} : memref<28x256xf32, #tpu.memory_space<vmem>>, vector<1x256xf32>,
    %171 = vector.extract_strided_slice %162 {offsets = [0, 1024], sizes = [1, 256], strides = [1, 1]} : vector<1x1792xf32> to vector<1x256xf32>
    %c11 = arith.constant 11 : index
    %c0_160 = arith.constant 0 : index
    %172 = vector.load %arg9[%c11, %c0_160] : memref<28x256xf32, #tpu.memory_space<vmem>>, vector<1x256xf32>
    tpu.vector_store %arg9[%c11, %c0_160], %171 {strides = array<i32>} : memref<28x256xf32, #tpu.memory_space<vmem>>, vector<1x256xf32>,
    %173 = vector.extract_strided_slice %162 {offsets = [0, 1280], sizes = [1, 256], strides = [1, 1]} : vector<1x1792xf32> to vector<1x256xf32>
    %c12 = arith.constant 12 : index
    %c0_161 = arith.constant 0 : index
    %174 = vector.load %arg9[%c12, %c0_161] : memref<28x256xf32, #tpu.memory_space<vmem>>, vector<1x256xf32>
    tpu.vector_store %arg9[%c12, %c0_161], %173 {strides = array<i32>} : memref<28x256xf32, #tpu.memory_space<vmem>>, vector<1x256xf32>,
    %175 = vector.extract_strided_slice %162 {offsets = [0, 1536], sizes = [1, 256], strides = [1, 1]} : vector<1x1792xf32> to vector<1x256xf32>
    %c13 = arith.constant 13 : index
    %c0_162 = arith.constant 0 : index
    %176 = vector.load %arg9[%c13, %c0_162] : memref<28x256xf32, #tpu.memory_space<vmem>>, vector<1x256xf32>
    tpu.vector_store %arg9[%c13, %c0_162], %175 {strides = array<i32>} : memref<28x256xf32, #tpu.memory_space<vmem>>, vector<1x256xf32>,
    %c0_163 = arith.constant 0 : index
    %c3584_164 = arith.constant 3584 : index
    %177 = vector.load %arg8[%c0_163, %c3584_164] : memref<16x7168xf32, #tpu.memory_space<vmem>>, vector<16x1792xf32>
    %cst_165 = arith.constant dense<0.000000e+00> : vector<16x1792xf32>
    %178 = tpu.matmul %126, %177, %cst_165 {dimension_numbers = #tpu.dot_dimension_numbers<[1], [0], [0], [1], [0, 0, 1, 1], [], []>} : vector<16x16xf32>, vector<16x1792xf32>, vector<16x1792xf32> -> vector<16x1792xf32>
    %179 = vector.broadcast %127 : vector<16x1xf32> to vector<16x1792xf32>
    %180 = arith.addf %178, %179 : vector<16x1792xf32>
    %cst_166 = arith.constant 0.000000e+00 : f32
    %181 = vector.broadcast %cst_166 : f32 to vector<16x1792xf32>
    %182 = arith.maximumf %180, %181 : vector<16x1792xf32>
    %183 = vector.broadcast %128 : vector<16x1xf32> to vector<16x1792xf32>
    %184 = arith.mulf %182, %183 : vector<16x1792xf32>
    %cst_167 = arith.constant dense<0.000000e+00> : vector<1792xf32>
    %185 = vector.multi_reduction <add>, %184, %cst_167 [0] : vector<16x1792xf32> to vector<1792xf32>
    %186 = vector.shape_cast %185 : vector<1792xf32> to vector<1x1792xf32>
    %187 = vector.extract_strided_slice %186 {offsets = [0, 0], sizes = [1, 256], strides = [1, 1]} : vector<1x1792xf32> to vector<1x256xf32>
    %c14 = arith.constant 14 : index
    %c0_168 = arith.constant 0 : index
    %188 = vector.load %arg9[%c14, %c0_168] : memref<28x256xf32, #tpu.memory_space<vmem>>, vector<1x256xf32>
    tpu.vector_store %arg9[%c14, %c0_168], %187 {strides = array<i32>} : memref<28x256xf32, #tpu.memory_space<vmem>>, vector<1x256xf32>,
    %189 = vector.extract_strided_slice %186 {offsets = [0, 256], sizes = [1, 256], strides = [1, 1]} : vector<1x1792xf32> to vector<1x256xf32>
    %c15 = arith.constant 15 : index
    %c0_169 = arith.constant 0 : index
    %190 = vector.load %arg9[%c15, %c0_169] : memref<28x256xf32, #tpu.memory_space<vmem>>, vector<1x256xf32>
    tpu.vector_store %arg9[%c15, %c0_169], %189 {strides = array<i32>} : memref<28x256xf32, #tpu.memory_space<vmem>>, vector<1x256xf32>,
    %191 = vector.extract_strided_slice %186 {offsets = [0, 512], sizes = [1, 256], strides = [1, 1]} : vector<1x1792xf32> to vector<1x256xf32>
    %c16 = arith.constant 16 : index
    %c0_170 = arith.constant 0 : index
    %192 = vector.load %arg9[%c16, %c0_170] : memref<28x256xf32, #tpu.memory_space<vmem>>, vector<1x256xf32>
    tpu.vector_store %arg9[%c16, %c0_170], %191 {strides = array<i32>} : memref<28x256xf32, #tpu.memory_space<vmem>>, vector<1x256xf32>,
    %193 = vector.extract_strided_slice %186 {offsets = [0, 768], sizes = [1, 256], strides = [1, 1]} : vector<1x1792xf32> to vector<1x256xf32>
    %c17 = arith.constant 17 : index
    %c0_171 = arith.constant 0 : index
    %194 = vector.load %arg9[%c17, %c0_171] : memref<28x256xf32, #tpu.memory_space<vmem>>, vector<1x256xf32>
    tpu.vector_store %arg9[%c17, %c0_171], %193 {strides = array<i32>} : memref<28x256xf32, #tpu.memory_space<vmem>>, vector<1x256xf32>,
    %195 = vector.extract_strided_slice %186 {offsets = [0, 1024], sizes = [1, 256], strides = [1, 1]} : vector<1x1792xf32> to vector<1x256xf32>
    %c18 = arith.constant 18 : index
    %c0_172 = arith.constant 0 : index
    %196 = vector.load %arg9[%c18, %c0_172] : memref<28x256xf32, #tpu.memory_space<vmem>>, vector<1x256xf32>
    tpu.vector_store %arg9[%c18, %c0_172], %195 {strides = array<i32>} : memref<28x256xf32, #tpu.memory_space<vmem>>, vector<1x256xf32>,
    %197 = vector.extract_strided_slice %186 {offsets = [0, 1280], sizes = [1, 256], strides = [1, 1]} : vector<1x1792xf32> to vector<1x256xf32>
    %c19 = arith.constant 19 : index
    %c0_173 = arith.constant 0 : index
    %198 = vector.load %arg9[%c19, %c0_173] : memref<28x256xf32, #tpu.memory_space<vmem>>, vector<1x256xf32>
    tpu.vector_store %arg9[%c19, %c0_173], %197 {strides = array<i32>} : memref<28x256xf32, #tpu.memory_space<vmem>>, vector<1x256xf32>,
    %199 = vector.extract_strided_slice %186 {offsets = [0, 1536], sizes = [1, 256], strides = [1, 1]} : vector<1x1792xf32> to vector<1x256xf32>
    %c20 = arith.constant 20 : index
    %c0_174 = arith.constant 0 : index
    %200 = vector.load %arg9[%c20, %c0_174] : memref<28x256xf32, #tpu.memory_space<vmem>>, vector<1x256xf32>
    tpu.vector_store %arg9[%c20, %c0_174], %199 {strides = array<i32>} : memref<28x256xf32, #tpu.memory_space<vmem>>, vector<1x256xf32>,
    %c0_175 = arith.constant 0 : index
    %c5376_176 = arith.constant 5376 : index
    %201 = vector.load %arg8[%c0_175, %c5376_176] : memref<16x7168xf32, #tpu.memory_space<vmem>>, vector<16x1792xf32>
    %cst_177 = arith.constant dense<0.000000e+00> : vector<16x1792xf32>
    %202 = tpu.matmul %126, %201, %cst_177 {dimension_numbers = #tpu.dot_dimension_numbers<[1], [0], [0], [1], [0, 0, 1, 1], [], []>} : vector<16x16xf32>, vector<16x1792xf32>, vector<16x1792xf32> -> vector<16x1792xf32>
    %203 = vector.broadcast %127 : vector<16x1xf32> to vector<16x1792xf32>
    %204 = arith.addf %202, %203 : vector<16x1792xf32>
    %cst_178 = arith.constant 0.000000e+00 : f32
    %205 = vector.broadcast %cst_178 : f32 to vector<16x1792xf32>
    %206 = arith.maximumf %204, %205 : vector<16x1792xf32>
    %207 = vector.broadcast %128 : vector<16x1xf32> to vector<16x1792xf32>
    %208 = arith.mulf %206, %207 : vector<16x1792xf32>
    %cst_179 = arith.constant dense<0.000000e+00> : vector<1792xf32>
    %209 = vector.multi_reduction <add>, %208, %cst_179 [0] : vector<16x1792xf32> to vector<1792xf32>
    %210 = vector.shape_cast %209 : vector<1792xf32> to vector<1x1792xf32>
    %211 = vector.extract_strided_slice %210 {offsets = [0, 0], sizes = [1, 256], strides = [1, 1]} : vector<1x1792xf32> to vector<1x256xf32>
    %c21 = arith.constant 21 : index
    %c0_180 = arith.constant 0 : index
    %212 = vector.load %arg9[%c21, %c0_180] : memref<28x256xf32, #tpu.memory_space<vmem>>, vector<1x256xf32>
    tpu.vector_store %arg9[%c21, %c0_180], %211 {strides = array<i32>} : memref<28x256xf32, #tpu.memory_space<vmem>>, vector<1x256xf32>,
    %213 = vector.extract_strided_slice %210 {offsets = [0, 256], sizes = [1, 256], strides = [1, 1]} : vector<1x1792xf32> to vector<1x256xf32>
    %c22 = arith.constant 22 : index
    %c0_181 = arith.constant 0 : index
    %214 = vector.load %arg9[%c22, %c0_181] : memref<28x256xf32, #tpu.memory_space<vmem>>, vector<1x256xf32>
    tpu.vector_store %arg9[%c22, %c0_181], %213 {strides = array<i32>} : memref<28x256xf32, #tpu.memory_space<vmem>>, vector<1x256xf32>,
    %215 = vector.extract_strided_slice %210 {offsets = [0, 512], sizes = [1, 256], strides = [1, 1]} : vector<1x1792xf32> to vector<1x256xf32>
    %c23 = arith.constant 23 : index
    %c0_182 = arith.constant 0 : index
    %216 = vector.load %arg9[%c23, %c0_182] : memref<28x256xf32, #tpu.memory_space<vmem>>, vector<1x256xf32>
    tpu.vector_store %arg9[%c23, %c0_182], %215 {strides = array<i32>} : memref<28x256xf32, #tpu.memory_space<vmem>>, vector<1x256xf32>,
    %217 = vector.extract_strided_slice %210 {offsets = [0, 768], sizes = [1, 256], strides = [1, 1]} : vector<1x1792xf32> to vector<1x256xf32>
    %c24 = arith.constant 24 : index
    %c0_183 = arith.constant 0 : index
    %218 = vector.load %arg9[%c24, %c0_183] : memref<28x256xf32, #tpu.memory_space<vmem>>, vector<1x256xf32>
    tpu.vector_store %arg9[%c24, %c0_183], %217 {strides = array<i32>} : memref<28x256xf32, #tpu.memory_space<vmem>>, vector<1x256xf32>,
    %219 = vector.extract_strided_slice %210 {offsets = [0, 1024], sizes = [1, 256], strides = [1, 1]} : vector<1x1792xf32> to vector<1x256xf32>
    %c25 = arith.constant 25 : index
    %c0_184 = arith.constant 0 : index
    %220 = vector.load %arg9[%c25, %c0_184] : memref<28x256xf32, #tpu.memory_space<vmem>>, vector<1x256xf32>
    tpu.vector_store %arg9[%c25, %c0_184], %219 {strides = array<i32>} : memref<28x256xf32, #tpu.memory_space<vmem>>, vector<1x256xf32>,
    %221 = vector.extract_strided_slice %210 {offsets = [0, 1280], sizes = [1, 256], strides = [1, 1]} : vector<1x1792xf32> to vector<1x256xf32>
    %c26 = arith.constant 26 : index
    %c0_185 = arith.constant 0 : index
    %222 = vector.load %arg9[%c26, %c0_185] : memref<28x256xf32, #tpu.memory_space<vmem>>, vector<1x256xf32>
    tpu.vector_store %arg9[%c26, %c0_185], %221 {strides = array<i32>} : memref<28x256xf32, #tpu.memory_space<vmem>>, vector<1x256xf32>,
    %223 = vector.extract_strided_slice %210 {offsets = [0, 1536], sizes = [1, 256], strides = [1, 1]} : vector<1x1792xf32> to vector<1x256xf32>
    %c27 = arith.constant 27 : index
    %c0_186 = arith.constant 0 : index
    %224 = vector.load %arg9[%c27, %c0_186] : memref<28x256xf32, #tpu.memory_space<vmem>>, vector<1x256xf32>
    tpu.vector_store %arg9[%c27, %c0_186], %223 {strides = array<i32>} : memref<28x256xf32, #tpu.memory_space<vmem>>, vector<1x256xf32>,
    %c0_187 = arith.constant 0 : index
    %c0_188 = arith.constant 0 : index
    %225 = vector.load %arg9[%c0_187, %c0_188] : memref<28x256xf32, #tpu.memory_space<vmem>>, vector<28x256xf32>
    %cst_189 = arith.constant dense<0xFF800000> : vector<256xf32>
    %226 = vector.multi_reduction <maximumf>, %225, %cst_189 [0] : vector<28x256xf32> to vector<256xf32>
    %227 = vector.shape_cast %226 : vector<256xf32> to vector<1x256xf32>
    %228 = vector.broadcast %227 : vector<1x256xf32> to vector<28x256xf32>
    %229 = arith.subf %225, %228 : vector<28x256xf32>
    %230 = math.exp %229 : vector<28x256xf32>
    %cst_190 = arith.constant dense<0.000000e+00> : vector<256xf32>
    %231 = vector.multi_reduction <add>, %230, %cst_190 [0] : vector<28x256xf32> to vector<256xf32>
    %232 = vector.shape_cast %231 : vector<256xf32> to vector<1x256xf32>
    %233 = tpu.reciprocal %232 {approx = true} : vector<1x256xf32> -> vector<1x256xf32>
    %234 = vector.broadcast %233 : vector<1x256xf32> to vector<28x256xf32>
    %235 = arith.mulf %230, %234 : vector<28x256xf32>
    %cst_191 = arith.constant 0.000000e+00 : f32
    %236 = vector.broadcast %cst_191 : f32 to vector<16x256xf32>
    %237 = vector.extract_strided_slice %235 {offsets = [0, 0], sizes = [1, 256], strides = [1, 1]} : vector<28x256xf32> to vector<1x256xf32>
    %c0_192 = arith.constant 0 : index
    %c0_193 = arith.constant 0 : index
    %238 = vector.load %arg8[%c0_192, %c0_193] : memref<16x7168xf32, #tpu.memory_space<vmem>>, vector<16x256xf32>
    %239 = vector.broadcast %237 : vector<1x256xf32> to vector<16x256xf32>
    %240 = arith.mulf %239, %238 : vector<16x256xf32>
    %241 = arith.addf %236, %240 : vector<16x256xf32>
    %242 = vector.extract_strided_slice %235 {offsets = [1, 0], sizes = [1, 256], strides = [1, 1]} : vector<28x256xf32> to vector<1x256xf32>
    %c0_194 = arith.constant 0 : index
    %c256_195 = arith.constant 256 : index
    %243 = vector.load %arg8[%c0_194, %c256_195] : memref<16x7168xf32, #tpu.memory_space<vmem>>, vector<16x256xf32>
    %244 = vector.broadcast %242 : vector<1x256xf32> to vector<16x256xf32>
    %245 = arith.mulf %244, %243 : vector<16x256xf32>
    %246 = arith.addf %241, %245 : vector<16x256xf32>
    %247 = vector.extract_strided_slice %235 {offsets = [2, 0], sizes = [1, 256], strides = [1, 1]} : vector<28x256xf32> to vector<1x256xf32>
    %c0_196 = arith.constant 0 : index
    %c512_197 = arith.constant 512 : index
    %248 = vector.load %arg8[%c0_196, %c512_197] : memref<16x7168xf32, #tpu.memory_space<vmem>>, vector<16x256xf32>
    %249 = vector.broadcast %247 : vector<1x256xf32> to vector<16x256xf32>
    %250 = arith.mulf %249, %248 : vector<16x256xf32>
    %251 = arith.addf %246, %250 : vector<16x256xf32>
    %252 = vector.extract_strided_slice %235 {offsets = [3, 0], sizes = [1, 256], strides = [1, 1]} : vector<28x256xf32> to vector<1x256xf32>
    %c0_198 = arith.constant 0 : index
    %c768_199 = arith.constant 768 : index
    %253 = vector.load %arg8[%c0_198, %c768_199] : memref<16x7168xf32, #tpu.memory_space<vmem>>, vector<16x256xf32>
    %254 = vector.broadcast %252 : vector<1x256xf32> to vector<16x256xf32>
    %255 = arith.mulf %254, %253 : vector<16x256xf32>
    %256 = arith.addf %251, %255 : vector<16x256xf32>
    %257 = vector.extract_strided_slice %235 {offsets = [4, 0], sizes = [1, 256], strides = [1, 1]} : vector<28x256xf32> to vector<1x256xf32>
    %c0_200 = arith.constant 0 : index
    %c1024_201 = arith.constant 1024 : index
    %258 = vector.load %arg8[%c0_200, %c1024_201] : memref<16x7168xf32, #tpu.memory_space<vmem>>, vector<16x256xf32>
    %259 = vector.broadcast %257 : vector<1x256xf32> to vector<16x256xf32>
    %260 = arith.mulf %259, %258 : vector<16x256xf32>
    %261 = arith.addf %256, %260 : vector<16x256xf32>
    %262 = vector.extract_strided_slice %235 {offsets = [5, 0], sizes = [1, 256], strides = [1, 1]} : vector<28x256xf32> to vector<1x256xf32>
    %c0_202 = arith.constant 0 : index
    %c1280_203 = arith.constant 1280 : index
    %263 = vector.load %arg8[%c0_202, %c1280_203] : memref<16x7168xf32, #tpu.memory_space<vmem>>, vector<16x256xf32>
    %264 = vector.broadcast %262 : vector<1x256xf32> to vector<16x256xf32>
    %265 = arith.mulf %264, %263 : vector<16x256xf32>
    %266 = arith.addf %261, %265 : vector<16x256xf32>
    %267 = vector.extract_strided_slice %235 {offsets = [6, 0], sizes = [1, 256], strides = [1, 1]} : vector<28x256xf32> to vector<1x256xf32>
    %c0_204 = arith.constant 0 : index
    %c1536_205 = arith.constant 1536 : index
    %268 = vector.load %arg8[%c0_204, %c1536_205] : memref<16x7168xf32, #tpu.memory_space<vmem>>, vector<16x256xf32>
    %269 = vector.broadcast %267 : vector<1x256xf32> to vector<16x256xf32>
    %270 = arith.mulf %269, %268 : vector<16x256xf32>
    %271 = arith.addf %266, %270 : vector<16x256xf32>
    %272 = vector.extract_strided_slice %235 {offsets = [7, 0], sizes = [1, 256], strides = [1, 1]} : vector<28x256xf32> to vector<1x256xf32>
    %c0_206 = arith.constant 0 : index
    %c1792_207 = arith.constant 1792 : index
    %273 = vector.load %arg8[%c0_206, %c1792_207] : memref<16x7168xf32, #tpu.memory_space<vmem>>, vector<16x256xf32>
    %274 = vector.broadcast %272 : vector<1x256xf32> to vector<16x256xf32>
    %275 = arith.mulf %274, %273 : vector<16x256xf32>
    %276 = arith.addf %271, %275 : vector<16x256xf32>
    %277 = vector.extract_strided_slice %235 {offsets = [8, 0], sizes = [1, 256], strides = [1, 1]} : vector<28x256xf32> to vector<1x256xf32>
    %c0_208 = arith.constant 0 : index
    %c2048_209 = arith.constant 2048 : index
    %278 = vector.load %arg8[%c0_208, %c2048_209] : memref<16x7168xf32, #tpu.memory_space<vmem>>, vector<16x256xf32>
    %279 = vector.broadcast %277 : vector<1x256xf32> to vector<16x256xf32>
    %280 = arith.mulf %279, %278 : vector<16x256xf32>
    %281 = arith.addf %276, %280 : vector<16x256xf32>
    %282 = vector.extract_strided_slice %235 {offsets = [9, 0], sizes = [1, 256], strides = [1, 1]} : vector<28x256xf32> to vector<1x256xf32>
    %c0_210 = arith.constant 0 : index
    %c2304_211 = arith.constant 2304 : index
    %283 = vector.load %arg8[%c0_210, %c2304_211] : memref<16x7168xf32, #tpu.memory_space<vmem>>, vector<16x256xf32>
    %284 = vector.broadcast %282 : vector<1x256xf32> to vector<16x256xf32>
    %285 = arith.mulf %284, %283 : vector<16x256xf32>
    %286 = arith.addf %281, %285 : vector<16x256xf32>
    %287 = vector.extract_strided_slice %235 {offsets = [10, 0], sizes = [1, 256], strides = [1, 1]} : vector<28x256xf32> to vector<1x256xf32>
    %c0_212 = arith.constant 0 : index
    %c2560_213 = arith.constant 2560 : index
    %288 = vector.load %arg8[%c0_212, %c2560_213] : memref<16x7168xf32, #tpu.memory_space<vmem>>, vector<16x256xf32>
    %289 = vector.broadcast %287 : vector<1x256xf32> to vector<16x256xf32>
    %290 = arith.mulf %289, %288 : vector<16x256xf32>
    %291 = arith.addf %286, %290 : vector<16x256xf32>
    %292 = vector.extract_strided_slice %235 {offsets = [11, 0], sizes = [1, 256], strides = [1, 1]} : vector<28x256xf32> to vector<1x256xf32>
    %c0_214 = arith.constant 0 : index
    %c2816_215 = arith.constant 2816 : index
    %293 = vector.load %arg8[%c0_214, %c2816_215] : memref<16x7168xf32, #tpu.memory_space<vmem>>, vector<16x256xf32>
    %294 = vector.broadcast %292 : vector<1x256xf32> to vector<16x256xf32>
    %295 = arith.mulf %294, %293 : vector<16x256xf32>
    %296 = arith.addf %291, %295 : vector<16x256xf32>
    %297 = vector.extract_strided_slice %235 {offsets = [12, 0], sizes = [1, 256], strides = [1, 1]} : vector<28x256xf32> to vector<1x256xf32>
    %c0_216 = arith.constant 0 : index
    %c3072_217 = arith.constant 3072 : index
    %298 = vector.load %arg8[%c0_216, %c3072_217] : memref<16x7168xf32, #tpu.memory_space<vmem>>, vector<16x256xf32>
    %299 = vector.broadcast %297 : vector<1x256xf32> to vector<16x256xf32>
    %300 = arith.mulf %299, %298 : vector<16x256xf32>
    %301 = arith.addf %296, %300 : vector<16x256xf32>
    %302 = vector.extract_strided_slice %235 {offsets = [13, 0], sizes = [1, 256], strides = [1, 1]} : vector<28x256xf32> to vector<1x256xf32>
    %c0_218 = arith.constant 0 : index
    %c3328_219 = arith.constant 3328 : index
    %303 = vector.load %arg8[%c0_218, %c3328_219] : memref<16x7168xf32, #tpu.memory_space<vmem>>, vector<16x256xf32>
    %304 = vector.broadcast %302 : vector<1x256xf32> to vector<16x256xf32>
    %305 = arith.mulf %304, %303 : vector<16x256xf32>
    %306 = arith.addf %301, %305 : vector<16x256xf32>
    %307 = vector.extract_strided_slice %235 {offsets = [14, 0], sizes = [1, 256], strides = [1, 1]} : vector<28x256xf32> to vector<1x256xf32>
    %c0_220 = arith.constant 0 : index
    %c3584_221 = arith.constant 3584 : index
    %308 = vector.load %arg8[%c0_220, %c3584_221] : memref<16x7168xf32, #tpu.memory_space<vmem>>, vector<16x256xf32>
    %309 = vector.broadcast %307 : vector<1x256xf32> to vector<16x256xf32>
    %310 = arith.mulf %309, %308 : vector<16x256xf32>
    %311 = arith.addf %306, %310 : vector<16x256xf32>
    %312 = vector.extract_strided_slice %235 {offsets = [15, 0], sizes = [1, 256], strides = [1, 1]} : vector<28x256xf32> to vector<1x256xf32>
    %c0_222 = arith.constant 0 : index
    %c3840_223 = arith.constant 3840 : index
    %313 = vector.load %arg8[%c0_222, %c3840_223] : memref<16x7168xf32, #tpu.memory_space<vmem>>, vector<16x256xf32>
    %314 = vector.broadcast %312 : vector<1x256xf32> to vector<16x256xf32>
    %315 = arith.mulf %314, %313 : vector<16x256xf32>
    %316 = arith.addf %311, %315 : vector<16x256xf32>
    %317 = vector.extract_strided_slice %235 {offsets = [16, 0], sizes = [1, 256], strides = [1, 1]} : vector<28x256xf32> to vector<1x256xf32>
    %c0_224 = arith.constant 0 : index
    %c4096_225 = arith.constant 4096 : index
    %318 = vector.load %arg8[%c0_224, %c4096_225] : memref<16x7168xf32, #tpu.memory_space<vmem>>, vector<16x256xf32>
    %319 = vector.broadcast %317 : vector<1x256xf32> to vector<16x256xf32>
    %320 = arith.mulf %319, %318 : vector<16x256xf32>
    %321 = arith.addf %316, %320 : vector<16x256xf32>
    %322 = vector.extract_strided_slice %235 {offsets = [17, 0], sizes = [1, 256], strides = [1, 1]} : vector<28x256xf32> to vector<1x256xf32>
    %c0_226 = arith.constant 0 : index
    %c4352_227 = arith.constant 4352 : index
    %323 = vector.load %arg8[%c0_226, %c4352_227] : memref<16x7168xf32, #tpu.memory_space<vmem>>, vector<16x256xf32>
    %324 = vector.broadcast %322 : vector<1x256xf32> to vector<16x256xf32>
    %325 = arith.mulf %324, %323 : vector<16x256xf32>
    %326 = arith.addf %321, %325 : vector<16x256xf32>
    %327 = vector.extract_strided_slice %235 {offsets = [18, 0], sizes = [1, 256], strides = [1, 1]} : vector<28x256xf32> to vector<1x256xf32>
    %c0_228 = arith.constant 0 : index
    %c4608_229 = arith.constant 4608 : index
    %328 = vector.load %arg8[%c0_228, %c4608_229] : memref<16x7168xf32, #tpu.memory_space<vmem>>, vector<16x256xf32>
    %329 = vector.broadcast %327 : vector<1x256xf32> to vector<16x256xf32>
    %330 = arith.mulf %329, %328 : vector<16x256xf32>
    %331 = arith.addf %326, %330 : vector<16x256xf32>
    %332 = vector.extract_strided_slice %235 {offsets = [19, 0], sizes = [1, 256], strides = [1, 1]} : vector<28x256xf32> to vector<1x256xf32>
    %c0_230 = arith.constant 0 : index
    %c4864_231 = arith.constant 4864 : index
    %333 = vector.load %arg8[%c0_230, %c4864_231] : memref<16x7168xf32, #tpu.memory_space<vmem>>, vector<16x256xf32>
    %334 = vector.broadcast %332 : vector<1x256xf32> to vector<16x256xf32>
    %335 = arith.mulf %334, %333 : vector<16x256xf32>
    %336 = arith.addf %331, %335 : vector<16x256xf32>
    %337 = vector.extract_strided_slice %235 {offsets = [20, 0], sizes = [1, 256], strides = [1, 1]} : vector<28x256xf32> to vector<1x256xf32>
    %c0_232 = arith.constant 0 : index
    %c5120_233 = arith.constant 5120 : index
    %338 = vector.load %arg8[%c0_232, %c5120_233] : memref<16x7168xf32, #tpu.memory_space<vmem>>, vector<16x256xf32>
    %339 = vector.broadcast %337 : vector<1x256xf32> to vector<16x256xf32>
    %340 = arith.mulf %339, %338 : vector<16x256xf32>
    %341 = arith.addf %336, %340 : vector<16x256xf32>
    %342 = vector.extract_strided_slice %235 {offsets = [21, 0], sizes = [1, 256], strides = [1, 1]} : vector<28x256xf32> to vector<1x256xf32>
    %c0_234 = arith.constant 0 : index
    %c5376_235 = arith.constant 5376 : index
    %343 = vector.load %arg8[%c0_234, %c5376_235] : memref<16x7168xf32, #tpu.memory_space<vmem>>, vector<16x256xf32>
    %344 = vector.broadcast %342 : vector<1x256xf32> to vector<16x256xf32>
    %345 = arith.mulf %344, %343 : vector<16x256xf32>
    %346 = arith.addf %341, %345 : vector<16x256xf32>
    %347 = vector.extract_strided_slice %235 {offsets = [22, 0], sizes = [1, 256], strides = [1, 1]} : vector<28x256xf32> to vector<1x256xf32>
    %c0_236 = arith.constant 0 : index
    %c5632_237 = arith.constant 5632 : index
    %348 = vector.load %arg8[%c0_236, %c5632_237] : memref<16x7168xf32, #tpu.memory_space<vmem>>, vector<16x256xf32>
    %349 = vector.broadcast %347 : vector<1x256xf32> to vector<16x256xf32>
    %350 = arith.mulf %349, %348 : vector<16x256xf32>
    %351 = arith.addf %346, %350 : vector<16x256xf32>
    %352 = vector.extract_strided_slice %235 {offsets = [23, 0], sizes = [1, 256], strides = [1, 1]} : vector<28x256xf32> to vector<1x256xf32>
    %c0_238 = arith.constant 0 : index
    %c5888_239 = arith.constant 5888 : index
    %353 = vector.load %arg8[%c0_238, %c5888_239] : memref<16x7168xf32, #tpu.memory_space<vmem>>, vector<16x256xf32>
    %354 = vector.broadcast %352 : vector<1x256xf32> to vector<16x256xf32>
    %355 = arith.mulf %354, %353 : vector<16x256xf32>
    %356 = arith.addf %351, %355 : vector<16x256xf32>
    %357 = vector.extract_strided_slice %235 {offsets = [24, 0], sizes = [1, 256], strides = [1, 1]} : vector<28x256xf32> to vector<1x256xf32>
    %c0_240 = arith.constant 0 : index
    %c6144_241 = arith.constant 6144 : index
    %358 = vector.load %arg8[%c0_240, %c6144_241] : memref<16x7168xf32, #tpu.memory_space<vmem>>, vector<16x256xf32>
    %359 = vector.broadcast %357 : vector<1x256xf32> to vector<16x256xf32>
    %360 = arith.mulf %359, %358 : vector<16x256xf32>
    %361 = arith.addf %356, %360 : vector<16x256xf32>
    %362 = vector.extract_strided_slice %235 {offsets = [25, 0], sizes = [1, 256], strides = [1, 1]} : vector<28x256xf32> to vector<1x256xf32>
    %c0_242 = arith.constant 0 : index
    %c6400_243 = arith.constant 6400 : index
    %363 = vector.load %arg8[%c0_242, %c6400_243] : memref<16x7168xf32, #tpu.memory_space<vmem>>, vector<16x256xf32>
    %364 = vector.broadcast %362 : vector<1x256xf32> to vector<16x256xf32>
    %365 = arith.mulf %364, %363 : vector<16x256xf32>
    %366 = arith.addf %361, %365 : vector<16x256xf32>
    %367 = vector.extract_strided_slice %235 {offsets = [26, 0], sizes = [1, 256], strides = [1, 1]} : vector<28x256xf32> to vector<1x256xf32>
    %c0_244 = arith.constant 0 : index
    %c6656_245 = arith.constant 6656 : index
    %368 = vector.load %arg8[%c0_244, %c6656_245] : memref<16x7168xf32, #tpu.memory_space<vmem>>, vector<16x256xf32>
    %369 = vector.broadcast %367 : vector<1x256xf32> to vector<16x256xf32>
    %370 = arith.mulf %369, %368 : vector<16x256xf32>
    %371 = arith.addf %366, %370 : vector<16x256xf32>
    %372 = vector.extract_strided_slice %235 {offsets = [27, 0], sizes = [1, 256], strides = [1, 1]} : vector<28x256xf32> to vector<1x256xf32>
    %c0_246 = arith.constant 0 : index
    %c6912_247 = arith.constant 6912 : index
    %373 = vector.load %arg8[%c0_246, %c6912_247] : memref<16x7168xf32, #tpu.memory_space<vmem>>, vector<16x256xf32>
    %374 = vector.broadcast %372 : vector<1x256xf32> to vector<16x256xf32>
    %375 = arith.mulf %374, %373 : vector<16x256xf32>
    %376 = arith.addf %371, %375 : vector<16x256xf32>
    %c0_248 = arith.constant 0 : index
    %c0_249 = arith.constant 0 : index
    %377 = vector.load %arg6[%c0_248, %c0_249] : memref<16x1xf32, #tpu.memory_space<vmem>>, vector<16x1xf32>
    %378 = vector.broadcast %377 : vector<16x1xf32> to vector<16x256xf32>
    %379 = arith.mulf %376, %378 : vector<16x256xf32>
    %cst_250 = arith.constant dense<0.000000e+00> : vector<256xf32>
    %380 = vector.multi_reduction <add>, %379, %cst_250 [0] : vector<16x256xf32> to vector<256xf32>
    %381 = vector.shape_cast %380 : vector<256xf32> to vector<1x256xf32>
    %c0_251 = arith.constant 0 : index
    %c0_252 = arith.constant 0 : index
    %382 = vector.load %arg2[%c0_251, %c0_252] : memref<1x256xf32, #tpu.memory_space<vmem>>, vector<1x256xf32>
    %383 = arith.addf %382, %381 : vector<1x256xf32>
    %384 = arith.negf %383 : vector<1x256xf32>
    %385 = math.exp %384 : vector<1x256xf32>
    %cst_253 = arith.constant 1.000000e+00 : f32
    %386 = vector.broadcast %cst_253 : f32 to vector<1x256xf32>
    %387 = arith.addf %386, %385 : vector<1x256xf32>
    %388 = arith.divf %386, %387 : vector<1x256xf32>
    %c0_254 = arith.constant 0 : index
    %c0_255 = arith.constant 0 : index
    %389 = vector.load %arg7[%c0_254, %c0_255] : memref<1x256xf32, #tpu.memory_space<vmem>>, vector<1x256xf32>
    tpu.vector_store %arg7[%c0_254, %c0_255], %388 {strides = array<i32>} : memref<1x256xf32, #tpu.memory_space<vmem>>, vector<1x256xf32>,
    return
  }
  func.func @transform_0(%arg0: i32) -> (i32, i32, i32) {
    %c0_i32 = arith.constant 0 : i32
    %c0_i32_0 = arith.constant 0 : i32
    %c0_i32_1 = arith.constant 0 : i32
    return %c0_i32, %c0_i32_0, %arg0 : i32, i32, i32
  }
  func.func @transform_1(%arg0: i32) -> (i32, i32) {
    %c0_i32 = arith.constant 0 : i32
    %c0_i32_0 = arith.constant 0 : i32
    return %c0_i32, %arg0 : i32, i32
  }
  func.func @transform_2(%arg0: i32) -> (i32, i32) {
    %c0_i32 = arith.constant 0 : i32
    %c0_i32_0 = arith.constant 0 : i32
    %c0_i32_1 = arith.constant 0 : i32
    return %c0_i32, %c0_i32_0 : i32, i32
  }
  func.func @transform_3(%arg0: i32) -> (i32, i32) {
    %c0_i32 = arith.constant 0 : i32
    %c0_i32_0 = arith.constant 0 : i32
    %c0_i32_1 = arith.constant 0 : i32
    return %c0_i32, %c0_i32_0 : i32, i32
  }
  func.func @transform_4(%arg0: i32) -> (i32, i32) {
    %c0_i32 = arith.constant 0 : i32
    %c0_i32_0 = arith.constant 0 : i32
    %c0_i32_1 = arith.constant 0 : i32
    return %c0_i32, %c0_i32_0 : i32, i32
  }
  func.func @transform_5(%arg0: i32) -> (i32, i32) {
    %c0_i32 = arith.constant 0 : i32
    %c0_i32_0 = arith.constant 0 : i32
    %c0_i32_1 = arith.constant 0 : i32
    return %c0_i32, %c0_i32_0 : i32, i32
  }
  func.func @transform_6(%arg0: i32) -> (i32, i32) {
    %c0_i32 = arith.constant 0 : i32
    %c0_i32_0 = arith.constant 0 : i32
    return %c0_i32, %arg0 : i32, i32
  }
}

</mosaic_0001>

<llo_original>
// kernel: tpu_custom_call.1
$region0: #{tpu_custom_call.1}
  #allocation0 [shape = 'u32[]', space=smem, size = 0x4, offset = 0x4, fixed_abs, tag = 'smem constant byte address 0x4 - core index']
  #allocation1 [shape = 'u32[144,128]{1,0:T(1,128)}', space=vmem, size = 0x12000, scoped, tag = 'internal scratch']
  #allocation2 [shape = 'f32[16,7168]{1,0:T(8,128)}', space=vmem, size = 0x70000, scoped, tag = 'scratch operand']
  #allocation3 [shape = 'f32[28,256]{1,0:T(8,128)}', space=vmem, size = 0x8000, scoped, tag = 'scratch operand']
  %s0 = inlined_call_operand.hbm [shape: f32[8,16,1024], index: 0, kind: input, shape index: {}]
  %s1 = inlined_call_operand.vmem [shape: f32[1,1024], index: 1, kind: input, shape index: {}]
  %s2 = inlined_call_operand.vmem [shape: f32[16,16], index: 2, kind: input, shape index: {}]
  %s3 = inlined_call_operand.vmem [shape: f32[16,1], index: 3, kind: input, shape index: {}]
  %s4 = inlined_call_operand.vmem [shape: f32[16,1], index: 4, kind: input, shape index: {}]
  %s5 = inlined_call_operand.vmem [shape: f32[16,1], index: 5, kind: input, shape index: {}]
  %s6 = inlined_call_operand.hbm [shape: f32[1,1024], index: 6, kind: output, shape index: {}]
  %s7 = sld [smem:[#allocation0]]
  $region61: #{tpu_custom_call.1} parent=0
    _
  %s9 = ssub.s32 1, %s7
  %s10 = scalar_select 0, %s9, %s7
  $region1: #{tpu_custom_call.1} parent=0
    #allocation4 [shape = 'u8[262144]{0}', space=vmem, size = 0x40000, scoped, tag = 'input window, operand 0']
    #allocation5 [shape = 's32[2]{0}', space=sflag, size = 0x8, scoped, tag = 'scoped memory for tpu_custom_call.1']
    #allocation6 [shape = 's32[2]{0}', space=sflag, size = 0x8, scoped, tag = 'scoped memory for tpu_custom_call.1']
    #allocation7 [shape = 'u8[2048]{0}', space=vmem, size = 0x800, scoped, tag = 'output window, operand 0']
    %11 = vsyncpa [#allocation5], 0
    %s12 = scalar_lea.sflag [#allocation5], 1
    %13 = vsyncpa %s12, 0
    %14 = vsyncpa [#allocation6], 0
    %s15 = scalar_lea.sflag [#allocation6], 1
    %16 = vsyncpa %s15, 0
    loop: start=0, step=1, limit=6
    $region2: #{tpu_custom_call.1} parent=1 // loop_pre_header
      _
    $region3: #{tpu_custom_call.1} parent=1 // loop_header
      %s18 = sphi 0, %s22
      %p19 = scmp.ge.s32.totalorder %s18, 6
      %s28 = sphi 0, %s30
      %s31 = sphi 0, %s28
      %s32 = sphi 0, %s31
      %s48 = sphi 0, %s32
      %s54 = sphi 0, %s56
      %s57 = sphi 0, %s54
      %s58 = sphi 0, %s57
      %s74 = sphi 0, %s58
      %s78 = sphi 0, %s78
      %s80 = sphi 0, %s78
      %s81 = sphi 0, %s80
      %s95 = sphi 0, %s81
      %s99 = sphi 0, %s99
      %s101 = sphi 0, %s99
      %s102 = sphi 0, %s101
      %s116 = sphi 0, %s102
      %s120 = sphi 0, %s120
      %s122 = sphi 0, %s120
      %s123 = sphi 0, %s122
      %s137 = sphi 0, %s123
      %s141 = sphi 0, %s141
      %s143 = sphi 0, %s141
      %s144 = sphi 0, %s143
      %s158 = sphi 0, %s144
      %s164 = sphi 0, %s166
      %s167 = sphi 0, %s164
      %s168 = sphi 0, %s167
      %s184 = sphi 0, %s168
    $region4: #{tpu_custom_call.1} parent=1 // loop_header_branch
      %21 = sbr.rel (%p19) target = $region8
    $region5: #{tpu_custom_call.1} parent=1 // loop_body
      %s23 = ssub.s32 %s18, 1
      %s24 = ssub.s32 %s18, 2
      %s25 = sadd.s32 %s18, 1
      %s26 = ssub.s32 %s18, %s25
      %p27 = scmp.eq.s32.totalorder %s26, 0
      %s29 = sadd.s32 %s28, 1
      %s30 = scalar_select %p27, %s28, %s29
      %p33 = pneg %p27
      %p34 = scmp.eq.s32.totalorder %s18, 3
      %p35 = por %p33, %p34
      %p36 = scmp.ne.s32.totalorder %s28, %s31
      %p37 = scmp.eq.s32.totalorder %s18, 0
      %p38 = por %p36, %p37
      %p39 = scmp.ne.s32.totalorder %s28, %s31
      %p40 = scmp.eq.s32.totalorder %s23, 3
      %p41 = por %p39, %p40
      %p42 = scmp.ne.s32.totalorder %s31, %s32
      %p43 = scmp.eq.s32.totalorder %s23, 0
      %p44 = por %p42, %p43
      %p45 = scmp.ne.s32.totalorder %s31, %s32
      %p46 = scmp.eq.s32.totalorder %s24, 3
      %p47 = por %p45, %p46
      %p49 = scmp.ne.s32.totalorder %s32, %s48
      %p50 = scmp.eq.s32.totalorder %s24, 0
      %p51 = por %p49, %p50
      %s52 = ssub.s32 %s18, %s25
      %p53 = scmp.eq.s32.totalorder %s52, 0
      %s55 = sadd.s32 %s54, 1
      %s56 = scalar_select %p53, %s54, %s55
      %p59 = pneg %p53
      %p60 = scmp.eq.s32.totalorder %s18, 3
      %p61 = por %p59, %p60
      %p62 = scmp.ne.s32.totalorder %s54, %s57
      %p63 = scmp.eq.s32.totalorder %s18, 0
      %p64 = por %p62, %p63
      %p65 = scmp.ne.s32.totalorder %s54, %s57
      %p66 = scmp.eq.s32.totalorder %s23, 3
      %p67 = por %p65, %p66
      %p68 = scmp.ne.s32.totalorder %s57, %s58
      %p69 = scmp.eq.s32.totalorder %s23, 0
      %p70 = por %p68, %p69
      %p71 = scmp.ne.s32.totalorder %s57, %s58
      %p72 = scmp.eq.s32.totalorder %s24, 3
      %p73 = por %p71, %p72
      %p75 = scmp.ne.s32.totalorder %s58, %s74
      %p76 = scmp.eq.s32.totalorder %s24, 0
      %p77 = por %p75, %p76
      %s79 = sadd.s32 %s78, 1
      %p82 = scmp.eq.s32.totalorder %s18, 3
      %p83 = scmp.ne.s32.totalorder %s78, %s80
      %p84 = scmp.eq.s32.totalorder %s18, 0
      %p85 = por %p83, %p84
      %p86 = scmp.ne.s32.totalorder %s78, %s80
      %p87 = scmp.eq.s32.totalorder %s23, 3
      %p88 = por %p86, %p87
      %p89 = scmp.ne.s32.totalorder %s80, %s81
      %p90 = scmp.eq.s32.totalorder %s23, 0
      %p91 = por %p89, %p90
      %p92 = scmp.ne.s32.totalorder %s80, %s81
      %p93 = scmp.eq.s32.totalorder %s24, 3
      %p94 = por %p92, %p93
      %p96 = scmp.ne.s32.totalorder %s81, %s95
      %p97 = scmp.eq.s32.totalorder %s24, 0
      %p98 = por %p96, %p97
      %s100 = sadd.s32 %s99, 1
      %p103 = scmp.eq.s32.totalorder %s18, 3
      %p104 = scmp.ne.s32.totalorder %s99, %s101
      %p105 = scmp.eq.s32.totalorder %s18, 0
      %p106 = por %p104, %p105
      %p107 = scmp.ne.s32.totalorder %s99, %s101
      %p108 = scmp.eq.s32.totalorder %s23, 3
      %p109 = por %p107, %p108
      %p110 = scmp.ne.s32.totalorder %s101, %s102
      %p111 = scmp.eq.s32.totalorder %s23, 0
      %p112 = por %p110, %p111
      %p113 = scmp.ne.s32.totalorder %s101, %s102
      %p114 = scmp.eq.s32.totalorder %s24, 3
      %p115 = por %p113, %p114
      %p117 = scmp.ne.s32.totalorder %s102, %s116
      %p118 = scmp.eq.s32.totalorder %s24, 0
      %p119 = por %p117, %p118
      %s121 = sadd.s32 %s120, 1
      %p124 = scmp.eq.s32.totalorder %s18, 3
      %p125 = scmp.ne.s32.totalorder %s120, %s122
      %p126 = scmp.eq.s32.totalorder %s18, 0
      %p127 = por %p125, %p126
      %p128 = scmp.ne.s32.totalorder %s120, %s122
      %p129 = scmp.eq.s32.totalorder %s23, 3
      %p130 = por %p128, %p129
      %p131 = scmp.ne.s32.totalorder %s122, %s123
      %p132 = scmp.eq.s32.totalorder %s23, 0
      %p133 = por %p131, %p132
      %p134 = scmp.ne.s32.totalorder %s122, %s123
      %p135 = scmp.eq.s32.totalorder %s24, 3
      %p136 = por %p134, %p135
      %p138 = scmp.ne.s32.totalorder %s123, %s137
      %p139 = scmp.eq.s32.totalorder %s24, 0
      %p140 = por %p138, %p139
      %s142 = sadd.s32 %s141, 1
      %p145 = scmp.eq.s32.totalorder %s18, 3
      %p146 = scmp.ne.s32.totalorder %s141, %s143
      %p147 = scmp.eq.s32.totalorder %s18, 0
      %p148 = por %p146, %p147
      %p149 = scmp.ne.s32.totalorder %s141, %s143
      %p150 = scmp.eq.s32.totalorder %s23, 3
      %p151 = por %p149, %p150
      %p152 = scmp.ne.s32.totalorder %s143, %s144
      %p153 = scmp.eq.s32.totalorder %s23, 0
      %p154 = por %p152, %p153
      %p155 = scmp.ne.s32.totalorder %s143, %s144
      %p156 = scmp.eq.s32.totalorder %s24, 3
      %p157 = por %p155, %p156
      %p159 = scmp.ne.s32.totalorder %s144, %s158
      %p160 = scmp.eq.s32.totalorder %s24, 0
      %p161 = por %p159, %p160
      %s162 = ssub.s32 %s18, %s25
      %p163 = scmp.eq.s32.totalorder %s162, 0
      %s165 = sadd.s32 %s164, 1
      %s166 = scalar_select %p163, %s164, %s165
      %p169 = pneg %p163
      %p170 = scmp.eq.s32.totalorder %s18, 3
      %p171 = por %p169, %p170
      %p172 = scmp.ne.s32.totalorder %s164, %s167
      %p173 = scmp.eq.s32.totalorder %s18, 0
      %p174 = por %p172, %p173
      %p175 = scmp.ne.s32.totalorder %s164, %s167
      %p176 = scmp.eq.s32.totalorder %s23, 3
      %p177 = por %p175, %p176
      %p178 = scmp.ne.s32.totalorder %s167, %s168
      %p179 = scmp.eq.s32.totalorder %s23, 0
      %p180 = por %p178, %p179
      %p181 = scmp.ne.s32.totalorder %s167, %s168
      %p182 = scmp.eq.s32.totalorder %s24, 3
      %p183 = por %p181, %p182
      %p185 = scmp.ne.s32.totalorder %s168, %s184
      %p186 = scmp.eq.s32.totalorder %s24, 0
      %p187 = por %p185, %p186
      %p188 = scmp.le.s32.totalorder 1, %s18
      %p189 = scmp.lt.s32.totalorder %s18, 5
      %p190 = pnand %p188, %p189
      %p191 = pneg %p190
      // Predicated region
      $region9: #{tpu_custom_call.1} parent=5 // pred_check
        _
      $region10: #{tpu_custom_call.1} parent=5 // pred_check_branch
        %193 = sbr.rel (%p190) target = $region12
      $region11: #{tpu_custom_call.1} parent=5 // pred_region
        %s194 = ssub.s32 %s18, 1
        // Predicated region
        $region13: #{tpu_custom_call.1} parent=11 // pred_check
          %p195 = pneg %p91
        $region14: #{tpu_custom_call.1} parent=11 // pred_check_branch
          %197 = sbr.rel (%p195) target = $region16
        $region15: #{tpu_custom_call.1} parent=11 // pred_region
          _
        $region16: #{tpu_custom_call.1} parent=11 // pred_fallthru
          _
        // Predicated region
        $region17: #{tpu_custom_call.1} parent=11 // pred_check
          %p198 = pneg %p112
        $region18: #{tpu_custom_call.1} parent=11 // pred_check_branch
          %200 = sbr.rel (%p198) target = $region20
        $region19: #{tpu_custom_call.1} parent=11 // pred_region
          _
        $region20: #{tpu_custom_call.1} parent=11 // pred_fallthru
          _
        // Predicated region
        $region21: #{tpu_custom_call.1} parent=11 // pred_check
          %p201 = pneg %p133
        $region22: #{tpu_custom_call.1} parent=11 // pred_check_branch
          %203 = sbr.rel (%p201) target = $region24
        $region23: #{tpu_custom_call.1} parent=11 // pred_region
          _
        $region24: #{tpu_custom_call.1} parent=11 // pred_fallthru
          _
        // Predicated region
        $region25: #{tpu_custom_call.1} parent=11 // pred_check
          %p204 = pneg %p154
        $region26: #{tpu_custom_call.1} parent=11 // pred_check_branch
          %206 = sbr.rel (%p204) target = $region28
        $region27: #{tpu_custom_call.1} parent=11 // pred_region
          _
        $region28: #{tpu_custom_call.1} parent=11 // pred_fallthru
          _
      $region12: #{tpu_custom_call.1} parent=5 // pred_fallthru
        _
      %p207 = scmp.lt.s32.totalorder %s18, 4
      // Predicated region
      $region29: #{tpu_custom_call.1} parent=5 // pred_check
        %p208 = pneg %p207
      $region30: #{tpu_custom_call.1} parent=5 // pred_check_branch
        %210 = sbr.rel (%p208) target = $region32
      $region31: #{tpu_custom_call.1} parent=5 // pred_region
        // Predicated region
        $region33: #{tpu_custom_call.1} parent=31 // pred_check
          %p211 = pneg %p38
        $region34: #{tpu_custom_call.1} parent=31 // pred_check_branch
          %213 = sbr.rel (%p211) target = $region36
        $region35: #{tpu_custom_call.1} parent=31 // pred_region
          %s214 = sand.u32 %s28, 1
          %s215 = scalar_lea.sflag [#allocation5], %s214
          %s216 = sand.u32 %s28, 1
          %s217 = smul.addr %s216, 256
          %s218 = scalar_lea.vmem [#allocation4], %s217
          %s219 = smul.u32 2, %s18
          %s221 = ssub.s32 4096, 4096
          %222 = vsyncadd %s215, %s221
          %s223 = smul.addr %s219, 128
          %s224 = scalar_lea.hbm %s0, %s223
          %s225 = sshll.u32 %s218, 4
          %s226 = int_to_ptr.vmem [resolvable:$true] %s225
          %231 = dma.hbm_to_vmem [thread:$0]  %s224, 4096, %s226, %s215, 1024, 256, 16
        $region36: #{tpu_custom_call.1} parent=31 // pred_fallthru
          _
        // Predicated region
        $region37: #{tpu_custom_call.1} parent=31 // pred_check
          %p232 = pneg %p64
        $region38: #{tpu_custom_call.1} parent=31 // pred_check_branch
          %234 = sbr.rel (%p232) target = $region40
        $region39: #{tpu_custom_call.1} parent=31 // pred_region
          %s235 = smul.u32 2, %s18
          %p236 = scmp.lt.s32.totalorder %s235, 7
          %s237 = scalar_select %p236, %s235, 7
          %s238 = scalar_lea.vmem %s1, %s237
          %s239 = smul.u32 2, %s18
        $region40: #{tpu_custom_call.1} parent=31 // pred_fallthru
          _
      $region32: #{tpu_custom_call.1} parent=5 // pred_fallthru
        _
      %p240 = scmp.le.s32.totalorder 1, %s18
      %p241 = scmp.lt.s32.totalorder %s18, 5
      %p242 = pnand %p240, %p241
      %p243 = pneg %p242
      // Predicated region
      $region41: #{tpu_custom_call.1} parent=5 // pred_check
        _
      $region42: #{tpu_custom_call.1} parent=5 // pred_check_branch
        %245 = sbr.rel (%p242) target = $region44
      $region43: #{tpu_custom_call.1} parent=5 // pred_region
        %s246 = ssub.s32 %s18, 1
        %s247 = sand.u32 %s31, 1
        %s248 = scalar_lea.sflag [#allocation5], %s247
        %s249 = sand.u32 %s31, 1
        %s250 = smul.addr %s249, 256
        %s251 = scalar_lea.vmem [#allocation4], %s250
        // Predicated region
        $region45: #{tpu_custom_call.1} parent=43 // pred_check
          %p252 = pneg %p44
        $region46: #{tpu_custom_call.1} parent=43 // pred_check_branch
          %254 = sbr.rel (%p252) target = $region48
        $region47: #{tpu_custom_call.1} parent=43 // pred_region
          %255 = dma.done %s248, 4096
        $region48: #{tpu_custom_call.1} parent=43 // pred_fallthru
          _
        %s256 = sand.u32 %s31, 1
        %s257 = scalar_lea.sflag [#allocation5], %s256
        %s258 = sand.u32 %s31, 1
        %s259 = smul.addr %s258, 256
        %s260 = scalar_lea.vmem [#allocation4], %s259
        %p261 = pneg %p44
        %p262 = pneg %p41
        %s263 = smul.u32 2, %s23
        %p264 = scmp.lt.s32.totalorder %s263, 7
        %s265 = scalar_select %p264, %s263, 7
        %s266 = scalar_lea.vmem %s1, %s265
        %p267 = pneg %p70
        %p268 = pneg %p67
        %p269 = pneg %p91
        %p270 = pneg %p88
        %p271 = pneg %p112
        %p272 = pneg %p109
        %p273 = pneg %p133
        %p274 = pneg %p130
        %p275 = pneg %p154
        %p276 = pneg %p151
        %p277 = pneg %p180
        %p278 = pneg %p177
        %s279 = sand.u32 %s167, 1
        %s280 = scalar_lea.sflag [#allocation6], %s279
        %s281 = sand.u32 %s167, 1
        %s282 = smul.addr %s281, 2
        %s283 = scalar_lea.vmem [#allocation7], %s282
        %s284 = smul.u32 2, %s23
        %s285 = smul.u32 2, %s23
        %p286 = scmp.lt.s32.totalorder %s285, 7
        %s287 = scalar_select %p286, %s285, 7
        %s288 = scalar_lea.vmem %s1, %s287
        %s289 = smul.u32 2, %s23
        %s290 = smul.u32 2, %s23
        %v291 = vld [vmem:[%s251] sm:$0xff]
        %v292 = vld [vmem:[%s251 + $0x8] sm:$0xff]
        %v293 = vld [vmem:[%s251 + $0x10] sm:$0xff]
        %v294 = vld [vmem:[%s251 + $0x18] sm:$0xff]
        %s295 = scalar_lea.vmem %s251, 32 [#allocation4]
        %v296 = vld [vmem:[%s295] sm:$0xff]
        %v297 = vld [vmem:[%s295 + $0x8] sm:$0xff]
        %v298 = vld [vmem:[%s295 + $0x10] sm:$0xff]
        %v299 = vld [vmem:[%s295 + $0x18] sm:$0xff]
        %v300 = vmul.f32 %v291, %v296
        %v301 = vmul.f32 %v292, %v297
        %v302 = vmul.f32 %v293, %v298
        %v303 = vmul.f32 %v294, %v299
        %304 = vst [vmem:[#allocation2] sm:$0xff] %v300
        %305 = vst [vmem:[#allocation2 + $0x8] sm:$0xff] %v301
        %306 = vst [vmem:[#allocation2 + $0x1c0] sm:$0xff] %v302
        %307 = vst [vmem:[#allocation2 + $0x1c8] sm:$0xff] %v303
        %s308 = scalar_lea.vmem %s251, 64 [#allocation4]
        %v309 = vld [vmem:[%s308] sm:$0xff]
        %v310 = vld [vmem:[%s308 + $0x8] sm:$0xff]
        %v311 = vld [vmem:[%s308 + $0x10] sm:$0xff]
        %v312 = vld [vmem:[%s308 + $0x18] sm:$0xff]
        %v313 = vmul.f32 %v291, %v309
        %v314 = vmul.f32 %v292, %v310
        %v315 = vmul.f32 %v293, %v311
        %v316 = vmul.f32 %v294, %v312
        %317 = vst [vmem:[#allocation2 + $0x10] sm:$0xff] %v313
        %318 = vst [vmem:[#allocation2 + $0x18] sm:$0xff] %v314
        %319 = vst [vmem:[#allocation2 + $0x1d0] sm:$0xff] %v315
        %320 = vst [vmem:[#allocation2 + $0x1d8] sm:$0xff] %v316
        %s321 = scalar_lea.vmem %s251, 96 [#allocation4]
        %v322 = vld [vmem:[%s321] sm:$0xff]
        %v323 = vld [vmem:[%s321 + $0x8] sm:$0xff]
        %v324 = vld [vmem:[%s321 + $0x10] sm:$0xff]
        %v325 = vld [vmem:[%s321 + $0x18] sm:$0xff]
        %v326 = vmul.f32 %v291, %v322
        %v327 = vmul.f32 %v292, %v323
        %v328 = vmul.f32 %v293, %v324
        %v329 = vmul.f32 %v294, %v325
        %330 = vst [vmem:[#allocation2 + $0x20] sm:$0xff] %v326
        %331 = vst [vmem:[#allocation2 + $0x28] sm:$0xff] %v327
        %332 = vst [vmem:[#allocation2 + $0x1e0] sm:$0xff] %v328
        %333 = vst [vmem:[#allocation2 + $0x1e8] sm:$0xff] %v329
        %s334 = scalar_lea.vmem %s251, 128 [#allocation4]
        %v335 = vld [vmem:[%s334] sm:$0xff]
        %v336 = vld [vmem:[%s334 + $0x8] sm:$0xff]
        %v337 = vld [vmem:[%s334 + $0x10] sm:$0xff]
        %v338 = vld [vmem:[%s334 + $0x18] sm:$0xff]
        %v339 = vmul.f32 %v291, %v335
        %v340 = vmul.f32 %v292, %v336
        %v341 = vmul.f32 %v293, %v337
        %v342 = vmul.f32 %v294, %v338
        %343 = vst [vmem:[#allocation2 + $0x30] sm:$0xff] %v339
        %344 = vst [vmem:[#allocation2 + $0x38] sm:$0xff] %v340
        %345 = vst [vmem:[#allocation2 + $0x1f0] sm:$0xff] %v341
        %346 = vst [vmem:[#allocation2 + $0x1f8] sm:$0xff] %v342
        %s347 = scalar_lea.vmem %s251, 160 [#allocation4]
        %v348 = vld [vmem:[%s347] sm:$0xff]
        %v349 = vld [vmem:[%s347 + $0x8] sm:$0xff]
        %v350 = vld [vmem:[%s347 + $0x10] sm:$0xff]
        %v351 = vld [vmem:[%s347 + $0x18] sm:$0xff]
        %v352 = vmul.f32 %v291, %v348
        %v353 = vmul.f32 %v292, %v349
        %v354 = vmul.f32 %v293, %v350
        %v355 = vmul.f32 %v294, %v351
        %356 = vst [vmem:[#allocation2 + $0x40] sm:$0xff] %v352
        %357 = vst [vmem:[#allocation2 + $0x48] sm:$0xff] %v353
        %358 = vst [vmem:[#allocation2 + $0x200] sm:$0xff] %v354
        %359 = vst [vmem:[#allocation2 + $0x208] sm:$0xff] %v355
        %s360 = scalar_lea.vmem %s251, 192 [#allocation4]
        %v361 = vld [vmem:[%s360] sm:$0xff]
        %v362 = vld [vmem:[%s360 + $0x8] sm:$0xff]
        %v363 = vld [vmem:[%s360 + $0x10] sm:$0xff]
        %v364 = vld [vmem:[%s360 + $0x18] sm:$0xff]
        %v365 = vmul.f32 %v291, %v361
        %v366 = vmul.f32 %v292, %v362
        %v367 = vmul.f32 %v293, %v363
        %v368 = vmul.f32 %v294, %v364
        %369 = vst [vmem:[#allocation2 + $0x50] sm:$0xff] %v365
        %370 = vst [vmem:[#allocation2 + $0x58] sm:$0xff] %v366
        %371 = vst [vmem:[#allocation2 + $0x210] sm:$0xff] %v367
        %372 = vst [vmem:[#allocation2 + $0x218] sm:$0xff] %v368
        %s373 = scalar_lea.vmem %s251, 224 [#allocation4]
        %v374 = vld [vmem:[%s373] sm:$0xff]
        %v375 = vld [vmem:[%s373 + $0x8] sm:$0xff]
        %v376 = vld [vmem:[%s373 + $0x10] sm:$0xff]
        %v377 = vld [vmem:[%s373 + $0x18] sm:$0xff]
        %v378 = vmul.f32 %v291, %v374
        %v379 = vmul.f32 %v292, %v375
        %v380 = vmul.f32 %v293, %v376
        %v381 = vmul.f32 %v294, %v377
        %382 = vst [vmem:[#allocation2 + $0x60] sm:$0xff] %v378
        %383 = vst [vmem:[#allocation2 + $0x68] sm:$0xff] %v379
        %384 = vst [vmem:[#allocation2 + $0x220] sm:$0xff] %v380
        %385 = vst [vmem:[#allocation2 + $0x228] sm:$0xff] %v381
        %v386 = vld [vmem:[%s295] sm:$0xff]
        %v387 = vld [vmem:[%s295 + $0x8] sm:$0xff]
        %v388 = vld [vmem:[%s295 + $0x10] sm:$0xff]
        %v389 = vld [vmem:[%s295 + $0x18] sm:$0xff]
        %v390 = vld [vmem:[%s308] sm:$0xff]
        %v391 = vld [vmem:[%s308 + $0x8] sm:$0xff]
        %v392 = vld [vmem:[%s308 + $0x10] sm:$0xff]
        %v393 = vld [vmem:[%s308 + $0x18] sm:$0xff]
        %v394 = vmul.f32 %v386, %v390
        %v395 = vmul.f32 %v387, %v391
        %v396 = vmul.f32 %v388, %v392
        %v397 = vmul.f32 %v389, %v393
        %398 = vst [vmem:[#allocation2 + $0x70] sm:$0xff] %v394
        %399 = vst [vmem:[#allocation2 + $0x78] sm:$0xff] %v395
        %400 = vst [vmem:[#allocation2 + $0x230] sm:$0xff] %v396
        %401 = vst [vmem:[#allocation2 + $0x238] sm:$0xff] %v397
        %v402 = vld [vmem:[%s321] sm:$0xff]
        %v403 = vld [vmem:[%s321 + $0x8] sm:$0xff]
        %v404 = vld [vmem:[%s321 + $0x10] sm:$0xff]
        %v405 = vld [vmem:[%s321 + $0x18] sm:$0xff]
        %v406 = vmul.f32 %v386, %v402
        %v407 = vmul.f32 %v387, %v403
        %v408 = vmul.f32 %v388, %v404
        %v409 = vmul.f32 %v389, %v405
        %410 = vst [vmem:[#allocation2 + $0x80] sm:$0xff] %v406
        %411 = vst [vmem:[#allocation2 + $0x88] sm:$0xff] %v407
        %412 = vst [vmem:[#allocation2 + $0x240] sm:$0xff] %v408
        %413 = vst [vmem:[#allocation2 + $0x248] sm:$0xff] %v409
        %v414 = vld [vmem:[%s334] sm:$0xff]
        %v415 = vld [vmem:[%s334 + $0x8] sm:$0xff]
        %v416 = vld [vmem:[%s334 + $0x10] sm:$0xff]
        %v417 = vld [vmem:[%s334 + $0x18] sm:$0xff]
        %v418 = vmul.f32 %v386, %v414
        %v419 = vmul.f32 %v387, %v415
        %v420 = vmul.f32 %v388, %v416
        %v421 = vmul.f32 %v389, %v417
        %422 = vst [vmem:[#allocation2 + $0x90] sm:$0xff] %v418
        %423 = vst [vmem:[#allocation2 + $0x98] sm:$0xff] %v419
        %424 = vst [vmem:[#allocation2 + $0x250] sm:$0xff] %v420
        %425 = vst [vmem:[#allocation2 + $0x258] sm:$0xff] %v421
        %v426 = vld [vmem:[%s347] sm:$0xff]
        %v427 = vld [vmem:[%s347 + $0x8] sm:$0xff]
        %v428 = vld [vmem:[%s347 + $0x10] sm:$0xff]
        %v429 = vld [vmem:[%s347 + $0x18] sm:$0xff]
        %v430 = vmul.f32 %v386, %v426
        %v431 = vmul.f32 %v387, %v427
        %v432 = vmul.f32 %v388, %v428
        %v433 = vmul.f32 %v389, %v429
        %434 = vst [vmem:[#allocation2 + $0xa0] sm:$0xff] %v430
        %435 = vst [vmem:[#allocation2 + $0xa8] sm:$0xff] %v431
        %436 = vst [vmem:[#allocation2 + $0x260] sm:$0xff] %v432
        %437 = vst [vmem:[#allocation2 + $0x268] sm:$0xff] %v433
        %v438 = vld [vmem:[%s360] sm:$0xff]
        %v439 = vld [vmem:[%s360 + $0x8] sm:$0xff]
        %v440 = vld [vmem:[%s360 + $0x10] sm:$0xff]
        %v441 = vld [vmem:[%s360 + $0x18] sm:$0xff]
        %v442 = vmul.f32 %v386, %v438
        %v443 = vmul.f32 %v387, %v439
        %v444 = vmul.f32 %v388, %v440
        %v445 = vmul.f32 %v389, %v441
        %446 = vst [vmem:[#allocation2 + $0xb0] sm:$0xff] %v442
        %447 = vst [vmem:[#allocation2 + $0xb8] sm:$0xff] %v443
        %448 = vst [vmem:[#allocation2 + $0x270] sm:$0xff] %v444
        %449 = vst [vmem:[#allocation2 + $0x278] sm:$0xff] %v445
        %v450 = vld [vmem:[%s373] sm:$0xff]
        %v451 = vld [vmem:[%s373 + $0x8] sm:$0xff]
        %v452 = vld [vmem:[%s373 + $0x10] sm:$0xff]
        %v453 = vld [vmem:[%s373 + $0x18] sm:$0xff]
        %v454 = vmul.f32 %v386, %v450
        %v455 = vmul.f32 %v387, %v451
        %v456 = vmul.f32 %v388, %v452
        %v457 = vmul.f32 %v389, %v453
        %458 = vst [vmem:[#allocation2 + $0xc0] sm:$0xff] %v454
        %459 = vst [vmem:[#allocation2 + $0xc8] sm:$0xff] %v455
        %460 = vst [vmem:[#allocation2 + $0x280] sm:$0xff] %v456
        %461 = vst [vmem:[#allocation2 + $0x288] sm:$0xff] %v457
        %v462 = vld [vmem:[%s308] sm:$0xff]
        %v463 = vld [vmem:[%s308 + $0x8] sm:$0xff]
        %v464 = vld [vmem:[%s308 + $0x10] sm:$0xff]
        %v465 = vld [vmem:[%s308 + $0x18] sm:$0xff]
        %v466 = vld [vmem:[%s321] sm:$0xff]
        %v467 = vld [vmem:[%s321 + $0x8] sm:$0xff]
        %v468 = vld [vmem:[%s321 + $0x10] sm:$0xff]
        %v469 = vld [vmem:[%s321 + $0x18] sm:$0xff]
        %v470 = vmul.f32 %v462, %v466
        %v471 = vmul.f32 %v463, %v467
        %v472 = vmul.f32 %v464, %v468
        %v473 = vmul.f32 %v465, %v469
        %474 = vst [vmem:[#allocation2 + $0xd0] sm:$0xff] %v470
        %475 = vst [vmem:[#allocation2 + $0xd8] sm:$0xff] %v471
        %476 = vst [vmem:[#allocation2 + $0x290] sm:$0xff] %v472
        %477 = vst [vmem:[#allocation2 + $0x298] sm:$0xff] %v473
        %v478 = vld [vmem:[%s334] sm:$0xff]
        %v479 = vld [vmem:[%s334 + $0x8] sm:$0xff]
        %v480 = vld [vmem:[%s334 + $0x10] sm:$0xff]
        %v481 = vld [vmem:[%s334 + $0x18] sm:$0xff]
        %v482 = vmul.f32 %v462, %v478
        %v483 = vmul.f32 %v463, %v479
        %v484 = vmul.f32 %v464, %v480
        %v485 = vmul.f32 %v465, %v481
        %486 = vst [vmem:[#allocation2 + $0xe0] sm:$0xff] %v482
        %487 = vst [vmem:[#allocation2 + $0xe8] sm:$0xff] %v483
        %488 = vst [vmem:[#allocation2 + $0x2a0] sm:$0xff] %v484
        %489 = vst [vmem:[#allocation2 + $0x2a8] sm:$0xff] %v485
        %v490 = vld [vmem:[%s347] sm:$0xff]
        %v491 = vld [vmem:[%s347 + $0x8] sm:$0xff]
        %v492 = vld [vmem:[%s347 + $0x10] sm:$0xff]
        %v493 = vld [vmem:[%s347 + $0x18] sm:$0xff]
        %v494 = vmul.f32 %v462, %v490
        %v495 = vmul.f32 %v463, %v491
        %v496 = vmul.f32 %v464, %v492
        %v497 = vmul.f32 %v465, %v493
        %498 = vst [vmem:[#allocation2 + $0xf0] sm:$0xff] %v494
        %499 = vst [vmem:[#allocation2 + $0xf8] sm:$0xff] %v495
        %500 = vst [vmem:[#allocation2 + $0x2b0] sm:$0xff] %v496
        %501 = vst [vmem:[#allocation2 + $0x2b8] sm:$0xff] %v497
        %v502 = vld [vmem:[%s360] sm:$0xff]
        %v503 = vld [vmem:[%s360 + $0x8] sm:$0xff]
        %v504 = vld [vmem:[%s360 + $0x10] sm:$0xff]
        %v505 = vld [vmem:[%s360 + $0x18] sm:$0xff]
        %v506 = vmul.f32 %v462, %v502
        %v507 = vmul.f32 %v463, %v503
        %v508 = vmul.f32 %v464, %v504
        %v509 = vmul.f32 %v465, %v505
        %510 = vst [vmem:[#allocation2 + $0x100] sm:$0xff] %v506
        %511 = vst [vmem:[#allocation2 + $0x108] sm:$0xff] %v507
        %512 = vst [vmem:[#allocation2 + $0x2c0] sm:$0xff] %v508
        %513 = vst [vmem:[#allocation2 + $0x2c8] sm:$0xff] %v509
        %v514 = vld [vmem:[%s373] sm:$0xff]
        %v515 = vld [vmem:[%s373 + $0x8] sm:$0xff]
        %v516 = vld [vmem:[%s373 + $0x10] sm:$0xff]
        %v517 = vld [vmem:[%s373 + $0x18] sm:$0xff]
        %v518 = vmul.f32 %v462, %v514
        %v519 = vmul.f32 %v463, %v515
        %v520 = vmul.f32 %v464, %v516
        %v521 = vmul.f32 %v465, %v517
        %522 = vst [vmem:[#allocation2 + $0x110] sm:$0xff] %v518
        %523 = vst [vmem:[#allocation2 + $0x118] sm:$0xff] %v519
        %524 = vst [vmem:[#allocation2 + $0x2d0] sm:$0xff] %v520
        %525 = vst [vmem:[#allocation2 + $0x2d8] sm:$0xff] %v521
        %v526 = vld [vmem:[%s321] sm:$0xff]
        %v527 = vld [vmem:[%s321 + $0x8] sm:$0xff]
        %v528 = vld [vmem:[%s321 + $0x10] sm:$0xff]
        %v529 = vld [vmem:[%s321 + $0x18] sm:$0xff]
        %v530 = vld [vmem:[%s334] sm:$0xff]
        %v531 = vld [vmem:[%s334 + $0x8] sm:$0xff]
        %v532 = vld [vmem:[%s334 + $0x10] sm:$0xff]
        %v533 = vld [vmem:[%s334 + $0x18] sm:$0xff]
        %v534 = vmul.f32 %v526, %v530
        %v535 = vmul.f32 %v527, %v531
        %v536 = vmul.f32 %v528, %v532
        %v537 = vmul.f32 %v529, %v533
        %538 = vst [vmem:[#allocation2 + $0x120] sm:$0xff] %v534
        %539 = vst [vmem:[#allocation2 + $0x128] sm:$0xff] %v535
        %540 = vst [vmem:[#allocation2 + $0x2e0] sm:$0xff] %v536
        %541 = vst [vmem:[#allocation2 + $0x2e8] sm:$0xff] %v537
        %v542 = vld [vmem:[%s347] sm:$0xff]
        %v543 = vld [vmem:[%s347 + $0x8] sm:$0xff]
        %v544 = vld [vmem:[%s347 + $0x10] sm:$0xff]
        %v545 = vld [vmem:[%s347 + $0x18] sm:$0xff]
        %v546 = vmul.f32 %v526, %v542
        %v547 = vmul.f32 %v527, %v543
        %v548 = vmul.f32 %v528, %v544
        %v549 = vmul.f32 %v529, %v545
        %550 = vst [vmem:[#allocation2 + $0x130] sm:$0xff] %v546
        %551 = vst [vmem:[#allocation2 + $0x138] sm:$0xff] %v547
        %552 = vst [vmem:[#allocation2 + $0x2f0] sm:$0xff] %v548
        %553 = vst [vmem:[#allocation2 + $0x2f8] sm:$0xff] %v549
        %v554 = vld [vmem:[%s360] sm:$0xff]
        %v555 = vld [vmem:[%s360 + $0x8] sm:$0xff]
        %v556 = vld [vmem:[%s360 + $0x10] sm:$0xff]
        %v557 = vld [vmem:[%s360 + $0x18] sm:$0xff]
        %v558 = vmul.f32 %v526, %v554
        %v559 = vmul.f32 %v527, %v555
        %v560 = vmul.f32 %v528, %v556
        %v561 = vmul.f32 %v529, %v557
        %562 = vst [vmem:[#allocation2 + $0x140] sm:$0xff] %v558
        %563 = vst [vmem:[#allocation2 + $0x148] sm:$0xff] %v559
        %564 = vst [vmem:[#allocation2 + $0x300] sm:$0xff] %v560
        %565 = vst [vmem:[#allocation2 + $0x308] sm:$0xff] %v561
        %v566 = vld [vmem:[%s373] sm:$0xff]
        %v567 = vld [vmem:[%s373 + $0x8] sm:$0xff]
        %v568 = vld [vmem:[%s373 + $0x10] sm:$0xff]
        %v569 = vld [vmem:[%s373 + $0x18] sm:$0xff]
        %v570 = vmul.f32 %v526, %v566
        %v571 = vmul.f32 %v527, %v567
        %v572 = vmul.f32 %v528, %v568
        %v573 = vmul.f32 %v529, %v569
        %574 = vst [vmem:[#allocation2 + $0x150] sm:$0xff] %v570
        %575 = vst [vmem:[#allocation2 + $0x158] sm:$0xff] %v571
        %576 = vst [vmem:[#allocation2 + $0x310] sm:$0xff] %v572
        %577 = vst [vmem:[#allocation2 + $0x318] sm:$0xff] %v573
        %v578 = vld [vmem:[%s334] sm:$0xff]
        %v579 = vld [vmem:[%s334 + $0x8] sm:$0xff]
        %v580 = vld [vmem:[%s334 + $0x10] sm:$0xff]
        %v581 = vld [vmem:[%s334 + $0x18] sm:$0xff]
        %v582 = vld [vmem:[%s347] sm:$0xff]
        %v583 = vld [vmem:[%s347 + $0x8] sm:$0xff]
        %v584 = vld [vmem:[%s347 + $0x10] sm:$0xff]
        %v585 = vld [vmem:[%s347 + $0x18] sm:$0xff]
        %v586 = vmul.f32 %v578, %v582
        %v587 = vmul.f32 %v579, %v583
        %v588 = vmul.f32 %v580, %v584
        %v589 = vmul.f32 %v581, %v585
        %590 = vst [vmem:[#allocation2 + $0x160] sm:$0xff] %v586
        %591 = vst [vmem:[#allocation2 + $0x168] sm:$0xff] %v587
        %592 = vst [vmem:[#allocation2 + $0x320] sm:$0xff] %v588
        %593 = vst [vmem:[#allocation2 + $0x328] sm:$0xff] %v589
        %v594 = vld [vmem:[%s360] sm:$0xff]
        %v595 = vld [vmem:[%s360 + $0x8] sm:$0xff]
        %v596 = vld [vmem:[%s360 + $0x10] sm:$0xff]
        %v597 = vld [vmem:[%s360 + $0x18] sm:$0xff]
        %v598 = vmul.f32 %v578, %v594
        %v599 = vmul.f32 %v579, %v595
        %v600 = vmul.f32 %v580, %v596
        %v601 = vmul.f32 %v581, %v597
        %602 = vst [vmem:[#allocation2 + $0x170] sm:$0xff] %v598
        %603 = vst [vmem:[#allocation2 + $0x178] sm:$0xff] %v599
        %604 = vst [vmem:[#allocation2 + $0x330] sm:$0xff] %v600
        %605 = vst [vmem:[#allocation2 + $0x338] sm:$0xff] %v601
        %v606 = vld [vmem:[%s373] sm:$0xff]
        %v607 = vld [vmem:[%s373 + $0x8] sm:$0xff]
        %v608 = vld [vmem:[%s373 + $0x10] sm:$0xff]
        %v609 = vld [vmem:[%s373 + $0x18] sm:$0xff]
        %v610 = vmul.f32 %v578, %v606
        %v611 = vmul.f32 %v579, %v607
        %v612 = vmul.f32 %v580, %v608
        %v613 = vmul.f32 %v581, %v609
        %614 = vst [vmem:[#allocation2 + $0x180] sm:$0xff] %v610
        %615 = vst [vmem:[#allocation2 + $0x188] sm:$0xff] %v611
        %616 = vst [vmem:[#allocation2 + $0x340] sm:$0xff] %v612
        %617 = vst [vmem:[#allocation2 + $0x348] sm:$0xff] %v613
        %v618 = vld [vmem:[%s347] sm:$0xff]
        %v619 = vld [vmem:[%s347 + $0x8] sm:$0xff]
        %v620 = vld [vmem:[%s347 + $0x10] sm:$0xff]
        %v621 = vld [vmem:[%s347 + $0x18] sm:$0xff]
        %v622 = vld [vmem:[%s360] sm:$0xff]
        %v623 = vld [vmem:[%s360 + $0x8] sm:$0xff]
        %v624 = vld [vmem:[%s360 + $0x10] sm:$0xff]
        %v625 = vld [vmem:[%s360 + $0x18] sm:$0xff]
        %v626 = vmul.f32 %v618, %v622
        %v627 = vmul.f32 %v619, %v623
        %v628 = vmul.f32 %v620, %v624
        %v629 = vmul.f32 %v621, %v625
        %630 = vst [vmem:[#allocation2 + $0x190] sm:$0xff] %v626
        %631 = vst [vmem:[#allocation2 + $0x198] sm:$0xff] %v627
        %632 = vst [vmem:[#allocation2 + $0x350] sm:$0xff] %v628
        %633 = vst [vmem:[#allocation2 + $0x358] sm:$0xff] %v629
        %v634 = vld [vmem:[%s373] sm:$0xff]
        %v635 = vld [vmem:[%s373 + $0x8] sm:$0xff]
        %v636 = vld [vmem:[%s373 + $0x10] sm:$0xff]
        %v637 = vld [vmem:[%s373 + $0x18] sm:$0xff]
        %v638 = vmul.f32 %v618, %v634
        %v639 = vmul.f32 %v619, %v635
        %v640 = vmul.f32 %v620, %v636
        %v641 = vmul.f32 %v621, %v637
        %642 = vst [vmem:[#allocation2 + $0x1a0] sm:$0xff] %v638
        %643 = vst [vmem:[#allocation2 + $0x1a8] sm:$0xff] %v639
        %644 = vst [vmem:[#allocation2 + $0x360] sm:$0xff] %v640
        %645 = vst [vmem:[#allocation2 + $0x368] sm:$0xff] %v641
        %v646 = vld [vmem:[%s360] sm:$0xff]
        %v647 = vld [vmem:[%s360 + $0x8] sm:$0xff]
        %v648 = vld [vmem:[%s360 + $0x10] sm:$0xff]
        %v649 = vld [vmem:[%s360 + $0x18] sm:$0xff]
        %v650 = vld [vmem:[%s373] sm:$0xff]
        %v651 = vld [vmem:[%s373 + $0x8] sm:$0xff]
        %v652 = vld [vmem:[%s373 + $0x10] sm:$0xff]
        %v653 = vld [vmem:[%s373 + $0x18] sm:$0xff]
        %v654 = vmul.f32 %v646, %v650
        %v655 = vmul.f32 %v647, %v651
        %v656 = vmul.f32 %v648, %v652
        %v657 = vmul.f32 %v649, %v653
        %658 = vst [vmem:[#allocation2 + $0x1b0] sm:$0xff] %v654
        %659 = vst [vmem:[#allocation2 + $0x1b8] sm:$0xff] %v655
        %660 = vst [vmem:[#allocation2 + $0x370] sm:$0xff] %v656
        %661 = vst [vmem:[#allocation2 + $0x378] sm:$0xff] %v657
        %v662 = vld [vmem:[%s2] sm:$0xff]
        %v663 = vld [vmem:[%s2 + $0x8] sm:$0xff]
        %v664 = vld [vmem:[%s3] sm:$0xff]
        %v665 = vld [vmem:[%s3 + $0x8] sm:$0xff]
        %v666 = vld [vmem:[%s4] sm:$0xff]
        %v667 = vld [vmem:[%s4 + $0x8] sm:$0xff]
        %v668 = vld [vmem:[#allocation2] sm:$0xff]
        %v669 = vld [vmem:[#allocation2 + $0x8] sm:$0xff]
        %v670 = vld [vmem:[#allocation2 + $0x10] sm:$0xff]
        %v671 = vld [vmem:[#allocation2 + $0x18] sm:$0xff]
        %v672 = vld [vmem:[#allocation2 + $0x20] sm:$0xff]
        %v673 = vld [vmem:[#allocation2 + $0x28] sm:$0xff]
        %v674 = vld [vmem:[#allocation2 + $0x30] sm:$0xff]
        %v675 = vld [vmem:[#allocation2 + $0x38] sm:$0xff]
        %v676 = vld [vmem:[#allocation2 + $0x40] sm:$0xff]
        %v677 = vld [vmem:[#allocation2 + $0x48] sm:$0xff]
        %v678 = vld [vmem:[#allocation2 + $0x50] sm:$0xff]
        %v679 = vld [vmem:[#allocation2 + $0x58] sm:$0xff]
        %v680 = vld [vmem:[#allocation2 + $0x60] sm:$0xff]
        %v681 = vld [vmem:[#allocation2 + $0x68] sm:$0xff]
        %v682 = vld [vmem:[#allocation2 + $0x1c0] sm:$0xff]
        %v683 = vld [vmem:[#allocation2 + $0x1c8] sm:$0xff]
        %v684 = vld [vmem:[#allocation2 + $0x1d0] sm:$0xff]
        %v685 = vld [vmem:[#allocation2 + $0x1d8] sm:$0xff]
        %v686 = vld [vmem:[#allocation2 + $0x1e0] sm:$0xff]
        %v687 = vld [vmem:[#allocation2 + $0x1e8] sm:$0xff]
        %v688 = vld [vmem:[#allocation2 + $0x1f0] sm:$0xff]
        %v689 = vld [vmem:[#allocation2 + $0x1f8] sm:$0xff]
        %v690 = vld [vmem:[#allocation2 + $0x200] sm:$0xff]
        %v691 = vld [vmem:[#allocation2 + $0x208] sm:$0xff]
        %v692 = vld [vmem:[#allocation2 + $0x210] sm:$0xff]
        %v693 = vld [vmem:[#allocation2 + $0x218] sm:$0xff]
        %v694 = vld [vmem:[#allocation2 + $0x220] sm:$0xff]
        %v695 = vld [vmem:[#allocation2 + $0x228] sm:$0xff]
        %697 = vset.pattern.permute.xlu0 0
        %698 = vperm.xlu0 %697, %v664
        %v699 = vpop.permute.xlu0 %698
        %702 = vset.pattern.permute.xlu0 0
        %703 = vperm.xlu0 %702, %v665
        %v704 = vpop.permute.xlu0 %703
        %vm706 = vcmask 130048
        %v708 = vsel %vm706, %v662, 0
        %v711 = vsel %vm706, %v663, 0
        %713 = vmatprep.subr.mxu0 0.0
        %714 = vmatpush1.msra.mxu0 0.0
        %715 = vmatprep.subr.mxu0 0.0
        %716 = vmatpush1.msra.mxu0 0.0
        %717 = vmatprep.subr.mxu0 0.0
        %718 = vmatpush1.msra.mxu0 0.0
        %719 = vmatprep.subr.mxu0 0.0
        %720 = vmatpush1.msra.mxu0 0.0
        %721 = vmatprep.subr.mxu0 0.0
        %722 = vmatpush1.msra.mxu0 0.0
        %723 = vmatprep.subr.mxu0 0.0
        %724 = vmatpush1.msra.mxu0 0.0
        %725 = vmatprep.subr.mxu0 0.0
        %726 = vmatpush1.msra.mxu0 0.0
        %727 = vmatprep.subr.mxu0 0.0
        %728 = vmatpush1.msra.mxu0 0.0
        %729 = vmatprep.subr.mxu0 0.0
        %730 = vmatpush1.msra.mxu0 0.0
        %731 = vmatprep.subr.mxu0 0.0
        %732 = vmatpush1.msra.mxu0 0.0
        %733 = vmatprep.subr.mxu0 0.0
        %734 = vmatpush1.msra.mxu0 0.0
        %735 = vmatprep.subr.mxu0 0.0
        %736 = vmatpush1.msra.mxu0 0.0
        %737 = vmatprep.subr.mxu0 0.0
        %738 = vmatpush1.msra.mxu0 0.0
        %739 = vmatprep.subr.mxu0 0.0
        %740 = vmatpush1.msra.mxu0 0.0
        %741 = vmatprep.subr.mxu0 %v683
        %742 = vmatpush1.msra.mxu0 %v682
        %743 = vmatprep.subr.mxu0 %v669
        %744 = vmatpush1.msra.mxu0 %v668
        %745 = vmatprep.subr.mxu0 0.0
        %746 = vmatpush2.msra.mxu0 0.0
        %747 = vmatprep.subr.mxu0 0.0
        %748 = vmatpush2.msra.mxu0 0.0
        %749 = vmatprep.subr.mxu0 0.0
        %750 = vmatpush2.msra.mxu0 0.0
        %751 = vmatprep.subr.mxu0 0.0
        %752 = vmatpush2.msra.mxu0 0.0
        %753 = vmatprep.subr.mxu0 0.0
        %754 = vmatpush2.msra.mxu0 0.0
        %755 = vmatprep.subr.mxu0 0.0
        %756 = vmatpush2.msra.mxu0 0.0
        %757 = vmatprep.subr.mxu0 0.0
        %758 = vmatpush2.msra.mxu0 0.0
        %759 = vmatprep.subr.mxu0 0.0
        %760 = vmatpush2.msra.mxu0 0.0
        %761 = vmatprep.subr.mxu0 0.0
        %762 = vmatpush2.msra.mxu0 0.0
        %763 = vmatprep.subr.mxu0 0.0
        %764 = vmatpush2.msra.mxu0 0.0
        %765 = vmatprep.subr.mxu0 0.0
        %766 = vmatpush2.msra.mxu0 0.0
        %767 = vmatprep.subr.mxu0 0.0
        %768 = vmatpush2.msra.mxu0 0.0
        %769 = vmatprep.subr.mxu0 0.0
        %770 = vmatpush2.msra.mxu0 0.0
        %771 = vmatprep.subr.mxu0 0.0
        %772 = vmatpush2.msra.mxu0 0.0
        %773 = vmatprep.subr.mxu0 0.0
        %774 = vmatpush2.msra.mxu0 0.0
        %775 = vmatprep.subr.mxu0 0.0
        %776 = vmatpush2.msra.mxu0 0.0
        %777 = vmatprep.mubr.f32.mxu0 0.0
        %778 = vmatmul.mubr.f32.gmra.mxu0 %v708
        %v779 = vpop.f32.mrf.mxu0
        %v780 = vadd.f32 %v699, %v779
        %v781 = vpop.f32.mrf.mxu0
        %v782 = vadd.f32 %v699, %v781
        %783 = vmatprep.mubr.f32.mxu0 0.0
        %784 = vmatmul.mubr.f32.gmra.mxu0 %v711
        %v785 = vpop.f32.mrf.mxu0
        %v786 = vadd.f32 %v704, %v785
        %v787 = vpop.f32.mrf.mxu0
        %v788 = vadd.f32 %v704, %v787
        %789 = vdwg.mxu0
        %790 = vmatprep.subr.mxu0 0.0
        %791 = vmatpush1.msra.mxu0 0.0
        %792 = vmatprep.subr.mxu0 0.0
        %793 = vmatpush1.msra.mxu0 0.0
        %794 = vmatprep.subr.mxu0 0.0
        %795 = vmatpush1.msra.mxu0 0.0
        %796 = vmatprep.subr.mxu0 0.0
        %797 = vmatpush1.msra.mxu0 0.0
        %798 = vmatprep.subr.mxu0 0.0
        %799 = vmatpush1.msra.mxu0 0.0
        %800 = vmatprep.subr.mxu0 0.0
        %801 = vmatpush1.msra.mxu0 0.0
        %802 = vmatprep.subr.mxu0 0.0
        %803 = vmatpush1.msra.mxu0 0.0
        %804 = vmatprep.subr.mxu0 0.0
        %805 = vmatpush1.msra.mxu0 0.0
        %806 = vmatprep.subr.mxu0 0.0
        %807 = vmatpush1.msra.mxu0 0.0
        %808 = vmatprep.subr.mxu0 0.0
        %809 = vmatpush1.msra.mxu0 0.0
        %810 = vmatprep.subr.mxu0 0.0
        %811 = vmatpush1.msra.mxu0 0.0
        %812 = vmatprep.subr.mxu0 0.0
        %813 = vmatpush1.msra.mxu0 0.0
        %814 = vmatprep.subr.mxu0 0.0
        %815 = vmatpush1.msra.mxu0 0.0
        %816 = vmatprep.subr.mxu0 0.0
        %817 = vmatpush1.msra.mxu0 0.0
        %818 = vmatprep.subr.mxu0 %v685
        %819 = vmatpush1.msra.mxu0 %v684
        %820 = vmatprep.subr.mxu0 %v671
        %821 = vmatpush1.msra.mxu0 %v670
        %822 = vmatprep.subr.mxu0 0.0
        %823 = vmatpush2.msra.mxu0 0.0
        %824 = vmatprep.subr.mxu0 0.0
        %825 = vmatpush2.msra.mxu0 0.0
        %826 = vmatprep.subr.mxu0 0.0
        %827 = vmatpush2.msra.mxu0 0.0
        %828 = vmatprep.subr.mxu0 0.0
        %829 = vmatpush2.msra.mxu0 0.0
        %830 = vmatprep.subr.mxu0 0.0
        %831 = vmatpush2.msra.mxu0 0.0
        %832 = vmatprep.subr.mxu0 0.0
        %833 = vmatpush2.msra.mxu0 0.0
        %834 = vmatprep.subr.mxu0 0.0
        %835 = vmatpush2.msra.mxu0 0.0
        %836 = vmatprep.subr.mxu0 0.0
        %837 = vmatpush2.msra.mxu0 0.0
        %838 = vmatprep.subr.mxu0 0.0
        %839 = vmatpush2.msra.mxu0 0.0
        %840 = vmatprep.subr.mxu0 0.0
        %841 = vmatpush2.msra.mxu0 0.0
        %842 = vmatprep.subr.mxu0 0.0
        %843 = vmatpush2.msra.mxu0 0.0
        %844 = vmatprep.subr.mxu0 0.0
        %845 = vmatpush2.msra.mxu0 0.0
        %846 = vmatprep.subr.mxu0 0.0
        %847 = vmatpush2.msra.mxu0 0.0
        %848 = vmatprep.subr.mxu0 0.0
        %849 = vmatpush2.msra.mxu0 0.0
        %850 = vmatprep.subr.mxu0 0.0
        %851 = vmatpush2.msra.mxu0 0.0
        %852 = vmatprep.subr.mxu0 0.0
        %853 = vmatpush2.msra.mxu0 0.0
        %854 = vmatprep.mubr.f32.mxu0 0.0
        %855 = vmatmul.mubr.f32.gmra.mxu0 %v708
        %v856 = vpop.f32.mrf.mxu0
        %v857 = vadd.f32 %v699, %v856
        %v858 = vpop.f32.mrf.mxu0
        %v859 = vadd.f32 %v699, %v858
        %860 = vmatprep.mubr.f32.mxu0 0.0
        %861 = vmatmul.mubr.f32.gmra.mxu0 %v711
        %v862 = vpop.f32.mrf.mxu0
        %v863 = vadd.f32 %v704, %v862
        %v864 = vpop.f32.mrf.mxu0
        %v865 = vadd.f32 %v704, %v864
        %866 = vdwg.mxu0
        %867 = vmatprep.subr.mxu0 0.0
        %868 = vmatpush1.msra.mxu0 0.0
        %869 = vmatprep.subr.mxu0 0.0
        %870 = vmatpush1.msra.mxu0 0.0
        %871 = vmatprep.subr.mxu0 0.0
        %872 = vmatpush1.msra.mxu0 0.0
        %873 = vmatprep.subr.mxu0 0.0
        %874 = vmatpush1.msra.mxu0 0.0
        %875 = vmatprep.subr.mxu0 0.0
        %876 = vmatpush1.msra.mxu0 0.0
        %877 = vmatprep.subr.mxu0 0.0
        %878 = vmatpush1.msra.mxu0 0.0
        %879 = vmatprep.subr.mxu0 0.0
        %880 = vmatpush1.msra.mxu0 0.0
        %881 = vmatprep.subr.mxu0 0.0
        %882 = vmatpush1.msra.mxu0 0.0
        %883 = vmatprep.subr.mxu0 0.0
        %884 = vmatpush1.msra.mxu0 0.0
        %885 = vmatprep.subr.mxu0 0.0
        %886 = vmatpush1.msra.mxu0 0.0
        %887 = vmatprep.subr.mxu0 0.0
        %888 = vmatpush1.msra.mxu0 0.0
        %889 = vmatprep.subr.mxu0 0.0
        %890 = vmatpush1.msra.mxu0 0.0
        %891 = vmatprep.subr.mxu0 0.0
        %892 = vmatpush1.msra.mxu0 0.0
        %893 = vmatprep.subr.mxu0 0.0
        %894 = vmatpush1.msra.mxu0 0.0
        %895 = vmatprep.subr.mxu0 %v687
        %896 = vmatpush1.msra.mxu0 %v686
        %897 = vmatprep.subr.mxu0 %v673
        %898 = vmatpush1.msra.mxu0 %v672
        %899 = vmatprep.subr.mxu0 0.0
        %900 = vmatpush2.msra.mxu0 0.0
        %901 = vmatprep.subr.mxu0 0.0
        %902 = vmatpush2.msra.mxu0 0.0
        %903 = vmatprep.subr.mxu0 0.0
        %904 = vmatpush2.msra.mxu0 0.0
        %905 = vmatprep.subr.mxu0 0.0
        %906 = vmatpush2.msra.mxu0 0.0
        %907 = vmatprep.subr.mxu0 0.0
        %908 = vmatpush2.msra.mxu0 0.0
        %909 = vmatprep.subr.mxu0 0.0
        %910 = vmatpush2.msra.mxu0 0.0
        %911 = vmatprep.subr.mxu0 0.0
        %912 = vmatpush2.msra.mxu0 0.0
        %913 = vmatprep.subr.mxu0 0.0
        %914 = vmatpush2.msra.mxu0 0.0
        %915 = vmatprep.subr.mxu0 0.0
        %916 = vmatpush2.msra.mxu0 0.0
        %917 = vmatprep.subr.mxu0 0.0
        %918 = vmatpush2.msra.mxu0 0.0
        %919 = vmatprep.subr.mxu0 0.0
        %920 = vmatpush2.msra.mxu0 0.0
        %921 = vmatprep.subr.mxu0 0.0
        %922 = vmatpush2.msra.mxu0 0.0
        %923 = vmatprep.subr.mxu0 0.0
        %924 = vmatpush2.msra.mxu0 0.0
        %925 = vmatprep.subr.mxu0 0.0
        %926 = vmatpush2.msra.mxu0 0.0
        %927 = vmatprep.subr.mxu0 0.0
        %928 = vmatpush2.msra.mxu0 0.0
        %929 = vmatprep.subr.mxu0 0.0
        %930 = vmatpush2.msra.mxu0 0.0
        %931 = vmatprep.mubr.f32.mxu0 0.0
        %932 = vmatmul.mubr.f32.gmra.mxu0 %v708
        %v933 = vpop.f32.mrf.mxu0
        %v934 = vadd.f32 %v699, %v933
        %v935 = vpop.f32.mrf.mxu0
        %v936 = vadd.f32 %v699, %v935
        %937 = vmatprep.mubr.f32.mxu0 0.0
        %938 = vmatmul.mubr.f32.gmra.mxu0 %v711
        %v939 = vpop.f32.mrf.mxu0
        %v940 = vadd.f32 %v704, %v939
        %v941 = vpop.f32.mrf.mxu0
        %v942 = vadd.f32 %v704, %v941
        %943 = vdwg.mxu0
        %944 = vmatprep.subr.mxu0 0.0
        %945 = vmatpush1.msra.mxu0 0.0
        %946 = vmatprep.subr.mxu0 0.0
        %947 = vmatpush1.msra.mxu0 0.0
        %948 = vmatprep.subr.mxu0 0.0
        %949 = vmatpush1.msra.mxu0 0.0
        %950 = vmatprep.subr.mxu0 0.0
        %951 = vmatpush1.msra.mxu0 0.0
        %952 = vmatprep.subr.mxu0 0.0
        %953 = vmatpush1.msra.mxu0 0.0
        %954 = vmatprep.subr.mxu0 0.0
        %955 = vmatpush1.msra.mxu0 0.0
        %956 = vmatprep.subr.mxu0 0.0
        %957 = vmatpush1.msra.mxu0 0.0
        %958 = vmatprep.subr.mxu0 0.0
        %959 = vmatpush1.msra.mxu0 0.0
        %960 = vmatprep.subr.mxu0 0.0
        %961 = vmatpush1.msra.mxu0 0.0
        %962 = vmatprep.subr.mxu0 0.0
        %963 = vmatpush1.msra.mxu0 0.0
        %964 = vmatprep.subr.mxu0 0.0
        %965 = vmatpush1.msra.mxu0 0.0
        %966 = vmatprep.subr.mxu0 0.0
        %967 = vmatpush1.msra.mxu0 0.0
        %968 = vmatprep.subr.mxu0 0.0
        %969 = vmatpush1.msra.mxu0 0.0
        %970 = vmatprep.subr.mxu0 0.0
        %971 = vmatpush1.msra.mxu0 0.0
        %972 = vmatprep.subr.mxu0 %v689
        %973 = vmatpush1.msra.mxu0 %v688
        %974 = vmatprep.subr.mxu0 %v675
        %975 = vmatpush1.msra.mxu0 %v674
        %976 = vmatprep.subr.mxu0 0.0
        %977 = vmatpush2.msra.mxu0 0.0
        %978 = vmatprep.subr.mxu0 0.0
        %979 = vmatpush2.msra.mxu0 0.0
        %980 = vmatprep.subr.mxu0 0.0
        %981 = vmatpush2.msra.mxu0 0.0
        %982 = vmatprep.subr.mxu0 0.0
        %983 = vmatpush2.msra.mxu0 0.0
        %984 = vmatprep.subr.mxu0 0.0
        %985 = vmatpush2.msra.mxu0 0.0
        %986 = vmatprep.subr.mxu0 0.0
        %987 = vmatpush2.msra.mxu0 0.0
        %988 = vmatprep.subr.mxu0 0.0
        %989 = vmatpush2.msra.mxu0 0.0
        %990 = vmatprep.subr.mxu0 0.0
        %991 = vmatpush2.msra.mxu0 0.0
        %992 = vmatprep.subr.mxu0 0.0
        %993 = vmatpush2.msra.mxu0 0.0
        %994 = vmatprep.subr.mxu0 0.0
        %995 = vmatpush2.msra.mxu0 0.0
        %996 = vmatprep.subr.mxu0 0.0
        %997 = vmatpush2.msra.mxu0 0.0
        %998 = vmatprep.subr.mxu0 0.0
        %999 = vmatpush2.msra.mxu0 0.0
        %1000 = vmatprep.subr.mxu0 0.0
        %1001 = vmatpush2.msra.mxu0 0.0
        %1002 = vmatprep.subr.mxu0 0.0
        %1003 = vmatpush2.msra.mxu0 0.0
        %1004 = vmatprep.subr.mxu0 0.0
        %1005 = vmatpush2.msra.mxu0 0.0
        %1006 = vmatprep.subr.mxu0 0.0
        %1007 = vmatpush2.msra.mxu0 0.0
        %1008 = vmatprep.mubr.f32.mxu0 0.0
        %1009 = vmatmul.mubr.f32.gmra.mxu0 %v708
        %v1010 = vpop.f32.mrf.mxu0
        %v1011 = vadd.f32 %v699, %v1010
        %v1012 = vpop.f32.mrf.mxu0
        %v1013 = vadd.f32 %v699, %v1012
        %1014 = vmatprep.mubr.f32.mxu0 0.0
        %1015 = vmatmul.mubr.f32.gmra.mxu0 %v711
        %v1016 = vpop.f32.mrf.mxu0
        %v1017 = vadd.f32 %v704, %v1016
        %v1018 = vpop.f32.mrf.mxu0
        %v1019 = vadd.f32 %v704, %v1018
        %1020 = vdwg.mxu0
        %1021 = vmatprep.subr.mxu0 0.0
        %1022 = vmatpush1.msra.mxu0 0.0
        %1023 = vmatprep.subr.mxu0 0.0
        %1024 = vmatpush1.msra.mxu0 0.0
        %1025 = vmatprep.subr.mxu0 0.0
        %1026 = vmatpush1.msra.mxu0 0.0
        %1027 = vmatprep.subr.mxu0 0.0
        %1028 = vmatpush1.msra.mxu0 0.0
        %1029 = vmatprep.subr.mxu0 0.0
        %1030 = vmatpush1.msra.mxu0 0.0
        %1031 = vmatprep.subr.mxu0 0.0
        %1032 = vmatpush1.msra.mxu0 0.0
        %1033 = vmatprep.subr.mxu0 0.0
        %1034 = vmatpush1.msra.mxu0 0.0
        %1035 = vmatprep.subr.mxu0 0.0
        %1036 = vmatpush1.msra.mxu0 0.0
        %1037 = vmatprep.subr.mxu0 0.0
        %1038 = vmatpush1.msra.mxu0 0.0
        %1039 = vmatprep.subr.mxu0 0.0
        %1040 = vmatpush1.msra.mxu0 0.0
        %1041 = vmatprep.subr.mxu0 0.0
        %1042 = vmatpush1.msra.mxu0 0.0
        %1043 = vmatprep.subr.mxu0 0.0
        %1044 = vmatpush1.msra.mxu0 0.0
        %1045 = vmatprep.subr.mxu0 0.0
        %1046 = vmatpush1.msra.mxu0 0.0
        %1047 = vmatprep.subr.mxu0 0.0
        %1048 = vmatpush1.msra.mxu0 0.0
        %1049 = vmatprep.subr.mxu0 %v691
        %1050 = vmatpush1.msra.mxu0 %v690
        %1051 = vmatprep.subr.mxu0 %v677
        %1052 = vmatpush1.msra.mxu0 %v676
        %1053 = vmatprep.subr.mxu0 0.0
        %1054 = vmatpush2.msra.mxu0 0.0
        %1055 = vmatprep.subr.mxu0 0.0
        %1056 = vmatpush2.msra.mxu0 0.0
        %1057 = vmatprep.subr.mxu0 0.0
        %1058 = vmatpush2.msra.mxu0 0.0
        %1059 = vmatprep.subr.mxu0 0.0
        %1060 = vmatpush2.msra.mxu0 0.0
        %1061 = vmatprep.subr.mxu0 0.0
        %1062 = vmatpush2.msra.mxu0 0.0
        %1063 = vmatprep.subr.mxu0 0.0
        %1064 = vmatpush2.msra.mxu0 0.0
        %1065 = vmatprep.subr.mxu0 0.0
        %1066 = vmatpush2.msra.mxu0 0.0
        %1067 = vmatprep.subr.mxu0 0.0
        %1068 = vmatpush2.msra.mxu0 0.0
        %1069 = vmatprep.subr.mxu0 0.0
        %1070 = vmatpush2.msra.mxu0 0.0
        %1071 = vmatprep.subr.mxu0 0.0
        %1072 = vmatpush2.msra.mxu0 0.0
        %1073 = vmatprep.subr.mxu0 0.0
        %1074 = vmatpush2.msra.mxu0 0.0
        %1075 = vmatprep.subr.mxu0 0.0
        %1076 = vmatpush2.msra.mxu0 0.0
        %1077 = vmatprep.subr.mxu0 0.0
        %1078 = vmatpush2.msra.mxu0 0.0
        %1079 = vmatprep.subr.mxu0 0.0
        %1080 = vmatpush2.msra.mxu0 0.0
        %1081 = vmatprep.subr.mxu0 0.0
        %1082 = vmatpush2.msra.mxu0 0.0
        %1083 = vmatprep.subr.mxu0 0.0
        %1084 = vmatpush2.msra.mxu0 0.0
        %1085 = vmatprep.mubr.f32.mxu0 0.0
        %1086 = vmatmul.mubr.f32.gmra.mxu0 %v708
        %v1087 = vpop.f32.mrf.mxu0
        %v1088 = vadd.f32 %v699, %v1087
        %v1089 = vpop.f32.mrf.mxu0
        %v1090 = vadd.f32 %v699, %v1089
        %1091 = vmatprep.mubr.f32.mxu0 0.0
        %1092 = vmatmul.mubr.f32.gmra.mxu0 %v711
        %v1093 = vpop.f32.mrf.mxu0
        %v1094 = vadd.f32 %v704, %v1093
        %v1095 = vpop.f32.mrf.mxu0
        %v1096 = vadd.f32 %v704, %v1095
        %1097 = vdwg.mxu0
        %1098 = vmatprep.subr.mxu0 0.0
        %1099 = vmatpush1.msra.mxu0 0.0
        %1100 = vmatprep.subr.mxu0 0.0
        %1101 = vmatpush1.msra.mxu0 0.0
        %1102 = vmatprep.subr.mxu0 0.0
        %1103 = vmatpush1.msra.mxu0 0.0
        %1104 = vmatprep.subr.mxu0 0.0
        %1105 = vmatpush1.msra.mxu0 0.0
        %1106 = vmatprep.subr.mxu0 0.0
        %1107 = vmatpush1.msra.mxu0 0.0
        %1108 = vmatprep.subr.mxu0 0.0
        %1109 = vmatpush1.msra.mxu0 0.0
        %1110 = vmatprep.subr.mxu0 0.0
        %1111 = vmatpush1.msra.mxu0 0.0
        %1112 = vmatprep.subr.mxu0 0.0
        %1113 = vmatpush1.msra.mxu0 0.0
        %1114 = vmatprep.subr.mxu0 0.0
        %1115 = vmatpush1.msra.mxu0 0.0
        %1116 = vmatprep.subr.mxu0 0.0
        %1117 = vmatpush1.msra.mxu0 0.0
        %1118 = vmatprep.subr.mxu0 0.0
        %1119 = vmatpush1.msra.mxu0 0.0
        %1120 = vmatprep.subr.mxu0 0.0
        %1121 = vmatpush1.msra.mxu0 0.0
        %1122 = vmatprep.subr.mxu0 0.0
        %1123 = vmatpush1.msra.mxu0 0.0
        %1124 = vmatprep.subr.mxu0 0.0
        %1125 = vmatpush1.msra.mxu0 0.0
        %1126 = vmatprep.subr.mxu0 %v693
        %1127 = vmatpush1.msra.mxu0 %v692
        %1128 = vmatprep.subr.mxu0 %v679
        %1129 = vmatpush1.msra.mxu0 %v678
        %1130 = vmatprep.subr.mxu0 0.0
        %1131 = vmatpush2.msra.mxu0 0.0
        %1132 = vmatprep.subr.mxu0 0.0
        %1133 = vmatpush2.msra.mxu0 0.0
        %1134 = vmatprep.subr.mxu0 0.0
        %1135 = vmatpush2.msra.mxu0 0.0
        %1136 = vmatprep.subr.mxu0 0.0
        %1137 = vmatpush2.msra.mxu0 0.0
        %1138 = vmatprep.subr.mxu0 0.0
        %1139 = vmatpush2.msra.mxu0 0.0
        %1140 = vmatprep.subr.mxu0 0.0
        %1141 = vmatpush2.msra.mxu0 0.0
        %1142 = vmatprep.subr.mxu0 0.0
        %1143 = vmatpush2.msra.mxu0 0.0
        %1144 = vmatprep.subr.mxu0 0.0
        %1145 = vmatpush2.msra.mxu0 0.0
        %1146 = vmatprep.subr.mxu0 0.0
        %1147 = vmatpush2.msra.mxu0 0.0
        %1148 = vmatprep.subr.mxu0 0.0
        %1149 = vmatpush2.msra.mxu0 0.0
        %1150 = vmatprep.subr.mxu0 0.0
        %1151 = vmatpush2.msra.mxu0 0.0
        %1152 = vmatprep.subr.mxu0 0.0
        %1153 = vmatpush2.msra.mxu0 0.0
        %1154 = vmatprep.subr.mxu0 0.0
        %1155 = vmatpush2.msra.mxu0 0.0
        %1156 = vmatprep.subr.mxu0 0.0
        %1157 = vmatpush2.msra.mxu0 0.0
        %1158 = vmatprep.subr.mxu0 0.0
        %1159 = vmatpush2.msra.mxu0 0.0
        %1160 = vmatprep.subr.mxu0 0.0
        %1161 = vmatpush2.msra.mxu0 0.0
        %1162 = vmatprep.mubr.f32.mxu0 0.0
        %1163 = vmatmul.mubr.f32.gmra.mxu0 %v708
        %v1164 = vpop.f32.mrf.mxu0
        %v1165 = vadd.f32 %v699, %v1164
        %v1166 = vpop.f32.mrf.mxu0
        %v1167 = vadd.f32 %v699, %v1166
        %1168 = vmatprep.mubr.f32.mxu0 0.0
        %1169 = vmatmul.mubr.f32.gmra.mxu0 %v711
        %v1170 = vpop.f32.mrf.mxu0
        %v1171 = vadd.f32 %v704, %v1170
        %v1172 = vpop.f32.mrf.mxu0
        %v1173 = vadd.f32 %v704, %v1172
        %1174 = vdwg.mxu0
        %1175 = vmatprep.subr.mxu0 0.0
        %1176 = vmatpush1.msra.mxu0 0.0
        %1177 = vmatprep.subr.mxu0 0.0
        %1178 = vmatpush1.msra.mxu0 0.0
        %1179 = vmatprep.subr.mxu0 0.0
        %1180 = vmatpush1.msra.mxu0 0.0
        %1181 = vmatprep.subr.mxu0 0.0
        %1182 = vmatpush1.msra.mxu0 0.0
        %1183 = vmatprep.subr.mxu0 0.0
        %1184 = vmatpush1.msra.mxu0 0.0
        %1185 = vmatprep.subr.mxu0 0.0
        %1186 = vmatpush1.msra.mxu0 0.0
        %1187 = vmatprep.subr.mxu0 0.0
        %1188 = vmatpush1.msra.mxu0 0.0
        %1189 = vmatprep.subr.mxu0 0.0
        %1190 = vmatpush1.msra.mxu0 0.0
        %1191 = vmatprep.subr.mxu0 0.0
        %1192 = vmatpush1.msra.mxu0 0.0
        %1193 = vmatprep.subr.mxu0 0.0
        %1194 = vmatpush1.msra.mxu0 0.0
        %1195 = vmatprep.subr.mxu0 0.0
        %1196 = vmatpush1.msra.mxu0 0.0
        %1197 = vmatprep.subr.mxu0 0.0
        %1198 = vmatpush1.msra.mxu0 0.0
        %1199 = vmatprep.subr.mxu0 0.0
        %1200 = vmatpush1.msra.mxu0 0.0
        %1201 = vmatprep.subr.mxu0 0.0
        %1202 = vmatpush1.msra.mxu0 0.0
        %1203 = vmatprep.subr.mxu0 %v695
        %1204 = vmatpush1.msra.mxu0 %v694
        %1205 = vmatprep.subr.mxu0 %v681
        %1206 = vmatpush1.msra.mxu0 %v680
        %1207 = vmatprep.subr.mxu0 0.0
        %1208 = vmatpush2.msra.mxu0 0.0
        %1209 = vmatprep.subr.mxu0 0.0
        %1210 = vmatpush2.msra.mxu0 0.0
        %1211 = vmatprep.subr.mxu0 0.0
        %1212 = vmatpush2.msra.mxu0 0.0
        %1213 = vmatprep.subr.mxu0 0.0
        %1214 = vmatpush2.msra.mxu0 0.0
        %1215 = vmatprep.subr.mxu0 0.0
        %1216 = vmatpush2.msra.mxu0 0.0
        %1217 = vmatprep.subr.mxu0 0.0
        %1218 = vmatpush2.msra.mxu0 0.0
        %1219 = vmatprep.subr.mxu0 0.0
        %1220 = vmatpush2.msra.mxu0 0.0
        %1221 = vmatprep.subr.mxu0 0.0
        %1222 = vmatpush2.msra.mxu0 0.0
        %1223 = vmatprep.subr.mxu0 0.0
        %1224 = vmatpush2.msra.mxu0 0.0
        %1225 = vmatprep.subr.mxu0 0.0
        %1226 = vmatpush2.msra.mxu0 0.0
        %1227 = vmatprep.subr.mxu0 0.0
        %1228 = vmatpush2.msra.mxu0 0.0
        %1229 = vmatprep.subr.mxu0 0.0
        %1230 = vmatpush2.msra.mxu0 0.0
        %1231 = vmatprep.subr.mxu0 0.0
        %1232 = vmatpush2.msra.mxu0 0.0
        %1233 = vmatprep.subr.mxu0 0.0
        %1234 = vmatpush2.msra.mxu0 0.0
        %1235 = vmatprep.subr.mxu0 0.0
        %1236 = vmatpush2.msra.mxu0 0.0
        %1237 = vmatprep.subr.mxu0 0.0
        %1238 = vmatpush2.msra.mxu0 0.0
        %1239 = vmatprep.mubr.f32.mxu0 0.0
        %1240 = vmatmul.mubr.f32.gmra.mxu0 %v708
        %v1241 = vpop.f32.mrf.mxu0
        %v1242 = vadd.f32 %v699, %v1241
        %v1243 = vpop.f32.mrf.mxu0
        %v1244 = vadd.f32 %v699, %v1243
        %1245 = vmatprep.mubr.f32.mxu0 0.0
        %1246 = vmatmul.mubr.f32.gmra.mxu0 %v711
        %v1247 = vpop.f32.mrf.mxu0
        %v1248 = vadd.f32 %v704, %v1247
        %v1249 = vpop.f32.mrf.mxu0
        %v1250 = vadd.f32 %v704, %v1249
        %1251 = vdwg.mxu0
        %v1252 = vmax.f32 %v780, 0.0
        %v1253 = vmax.f32 %v782, 0.0
        %v1254 = vmax.f32 %v857, 0.0
        %v1255 = vmax.f32 %v859, 0.0
        %v1256 = vmax.f32 %v934, 0.0
        %v1257 = vmax.f32 %v936, 0.0
        %v1258 = vmax.f32 %v1011, 0.0
        %v1259 = vmax.f32 %v1013, 0.0
        %v1260 = vmax.f32 %v1088, 0.0
        %v1261 = vmax.f32 %v1090, 0.0
        %v1262 = vmax.f32 %v1165, 0.0
        %v1263 = vmax.f32 %v1167, 0.0
        %v1264 = vmax.f32 %v1242, 0.0
        %v1265 = vmax.f32 %v1244, 0.0
        %v1266 = vmax.f32 %v786, 0.0
        %v1267 = vmax.f32 %v788, 0.0
        %v1268 = vmax.f32 %v863, 0.0
        %v1269 = vmax.f32 %v865, 0.0
        %v1270 = vmax.f32 %v940, 0.0
        %v1271 = vmax.f32 %v942, 0.0
        %v1272 = vmax.f32 %v1017, 0.0
        %v1273 = vmax.f32 %v1019, 0.0
        %v1274 = vmax.f32 %v1094, 0.0
        %v1275 = vmax.f32 %v1096, 0.0
        %v1276 = vmax.f32 %v1171, 0.0
        %v1277 = vmax.f32 %v1173, 0.0
        %v1278 = vmax.f32 %v1248, 0.0
        %v1279 = vmax.f32 %v1250, 0.0
        %1281 = vset.pattern.permute.xlu0 0
        %1282 = vperm.xlu0 %1281, %v666
        %v1283 = vpop.permute.xlu0 %1282
        %1286 = vset.pattern.permute.xlu0 0
        %1287 = vperm.xlu0 %1286, %v667
        %v1288 = vpop.permute.xlu0 %1287
        %v1290 = vmul.f32 %v1252, %v1283
        %v1291 = vmul.f32 %v1253, %v1283
        %v1292 = vmul.f32 %v1254, %v1283
        %v1293 = vmul.f32 %v1255, %v1283
        %v1294 = vmul.f32 %v1256, %v1283
        %v1295 = vmul.f32 %v1257, %v1283
        %v1296 = vmul.f32 %v1258, %v1283
        %v1297 = vmul.f32 %v1259, %v1283
        %v1298 = vmul.f32 %v1260, %v1283
        %v1299 = vmul.f32 %v1261, %v1283
        %v1300 = vmul.f32 %v1262, %v1283
        %v1301 = vmul.f32 %v1263, %v1283
        %v1302 = vmul.f32 %v1264, %v1283
        %v1303 = vmul.f32 %v1265, %v1283
        %v1304 = vmul.f32 %v1266, %v1288
        %v1305 = vmul.f32 %v1267, %v1288
        %v1306 = vmul.f32 %v1268, %v1288
        %v1307 = vmul.f32 %v1269, %v1288
        %v1308 = vmul.f32 %v1270, %v1288
        %v1309 = vmul.f32 %v1271, %v1288
        %v1310 = vmul.f32 %v1272, %v1288
        %v1311 = vmul.f32 %v1273, %v1288
        %v1312 = vmul.f32 %v1274, %v1288
        %v1313 = vmul.f32 %v1275, %v1288
        %v1314 = vmul.f32 %v1276, %v1288
        %v1315 = vmul.f32 %v1277, %v1288
        %v1316 = vmul.f32 %v1278, %v1288
        %v1317 = vmul.f32 %v1279, %v1288
        %v1318 = vadd.f32 %v1290, %v1304
        %v1319 = vrot.slane %v1318, 4
        %v1320 = vadd.f32 %v1318, %v1319
        %v1321 = vrot.slane %v1320, 2
        %v1322 = vadd.f32 %v1320, %v1321
        %v1323 = vrot.slane %v1322, 1
        %v1324 = vadd.f32 %v1322, %v1323
        %v1325 = vadd.f32 %v1291, %v1305
        %v1326 = vrot.slane %v1325, 4
        %v1327 = vadd.f32 %v1325, %v1326
        %v1328 = vrot.slane %v1327, 2
        %v1329 = vadd.f32 %v1327, %v1328
        %v1330 = vrot.slane %v1329, 1
        %v1331 = vadd.f32 %v1329, %v1330
        %v1332 = vadd.f32 %v1292, %v1306
        %v1333 = vrot.slane %v1332, 4
        %v1334 = vadd.f32 %v1332, %v1333
        %v1335 = vrot.slane %v1334, 2
        %v1336 = vadd.f32 %v1334, %v1335
        %v1337 = vrot.slane %v1336, 1
        %v1338 = vadd.f32 %v1336, %v1337
        %v1339 = vadd.f32 %v1293, %v1307
        %v1340 = vrot.slane %v1339, 4
        %v1341 = vadd.f32 %v1339, %v1340
        %v1342 = vrot.slane %v1341, 2
        %v1343 = vadd.f32 %v1341, %v1342
        %v1344 = vrot.slane %v1343, 1
        %v1345 = vadd.f32 %v1343, %v1344
        %v1346 = vadd.f32 %v1294, %v1308
        %v1347 = vrot.slane %v1346, 4
        %v1348 = vadd.f32 %v1346, %v1347
        %v1349 = vrot.slane %v1348, 2
        %v1350 = vadd.f32 %v1348, %v1349
        %v1351 = vrot.slane %v1350, 1
        %v1352 = vadd.f32 %v1350, %v1351
        %v1353 = vadd.f32 %v1295, %v1309
        %v1354 = vrot.slane %v1353, 4
        %v1355 = vadd.f32 %v1353, %v1354
        %v1356 = vrot.slane %v1355, 2
        %v1357 = vadd.f32 %v1355, %v1356
        %v1358 = vrot.slane %v1357, 1
        %v1359 = vadd.f32 %v1357, %v1358
        %v1360 = vadd.f32 %v1296, %v1310
        %v1361 = vrot.slane %v1360, 4
        %v1362 = vadd.f32 %v1360, %v1361
        %v1363 = vrot.slane %v1362, 2
        %v1364 = vadd.f32 %v1362, %v1363
        %v1365 = vrot.slane %v1364, 1
        %v1366 = vadd.f32 %v1364, %v1365
        %v1367 = vadd.f32 %v1297, %v1311
        %v1368 = vrot.slane %v1367, 4
        %v1369 = vadd.f32 %v1367, %v1368
        %v1370 = vrot.slane %v1369, 2
        %v1371 = vadd.f32 %v1369, %v1370
        %v1372 = vrot.slane %v1371, 1
        %v1373 = vadd.f32 %v1371, %v1372
        %v1374 = vadd.f32 %v1298, %v1312
        %v1375 = vrot.slane %v1374, 4
        %v1376 = vadd.f32 %v1374, %v1375
        %v1377 = vrot.slane %v1376, 2
        %v1378 = vadd.f32 %v1376, %v1377
        %v1379 = vrot.slane %v1378, 1
        %v1380 = vadd.f32 %v1378, %v1379
        %v1381 = vadd.f32 %v1299, %v1313
        %v1382 = vrot.slane %v1381, 4
        %v1383 = vadd.f32 %v1381, %v1382
        %v1384 = vrot.slane %v1383, 2
        %v1385 = vadd.f32 %v1383, %v1384
        %v1386 = vrot.slane %v1385, 1
        %v1387 = vadd.f32 %v1385, %v1386
        %v1388 = vadd.f32 %v1300, %v1314
        %v1389 = vrot.slane %v1388, 4
        %v1390 = vadd.f32 %v1388, %v1389
        %v1391 = vrot.slane %v1390, 2
        %v1392 = vadd.f32 %v1390, %v1391
        %v1393 = vrot.slane %v1392, 1
        %v1394 = vadd.f32 %v1392, %v1393
        %v1395 = vadd.f32 %v1301, %v1315
        %v1396 = vrot.slane %v1395, 4
        %v1397 = vadd.f32 %v1395, %v1396
        %v1398 = vrot.slane %v1397, 2
        %v1399 = vadd.f32 %v1397, %v1398
        %v1400 = vrot.slane %v1399, 1
        %v1401 = vadd.f32 %v1399, %v1400
        %v1402 = vadd.f32 %v1302, %v1316
        %v1403 = vrot.slane %v1402, 4
        %v1404 = vadd.f32 %v1402, %v1403
        %v1405 = vrot.slane %v1404, 2
        %v1406 = vadd.f32 %v1404, %v1405
        %v1407 = vrot.slane %v1406, 1
        %v1408 = vadd.f32 %v1406, %v1407
        %v1409 = vadd.f32 %v1303, %v1317
        %v1410 = vrot.slane %v1409, 4
        %v1411 = vadd.f32 %v1409, %v1410
        %v1412 = vrot.slane %v1411, 2
        %v1413 = vadd.f32 %v1411, %v1412
        %v1414 = vrot.slane %v1413, 1
        %v1415 = vadd.f32 %v1413, %v1414
        %v1418 = vcombine.low %v1324, %v1331
        %v1420 = vunpack.c.l.s4 1966171168
        %v1421 = vunpack.c.0.s8 %v1420
        %v1422 = vlaneseq
        %v1423 = vshrl.u32 %v1422, 7
        %v1424 = vsub.s32 %v1421, %v1423
        %v1425 = vrot.slane %v1418, %v1424
        %v1427 = vunpack.c.l.s4 1966171168
        %v1428 = vunpack.c.0.s8 %v1427
        %v1429 = vlaneseq
        %v1430 = vshrl.u32 %v1429, 7
        %v1431 = vsub.s32 %v1428, %v1430
        %v1432 = vrot.slane %v1425, %v1431
        %v1434 = vlaneseq
        %vm1435 = vcmp.ge.s32.totalorder %v1434, 0
        %vm1436 = vcmp.lt.s32.totalorder %v1434, 256
        %vm1437 = vmand %vm1435, %vm1436
        %1438 = vst.msk [vmem:[#allocation3] ss:$8 sm:$0x3] %vm1437, %v1432
        %1439 = vst.msk [vmem:[#allocation3] ss:$8 sm:$0x0] %vm1437, %v1432
        %v1442 = vcombine.low %v1338, %v1345
        %v1444 = vunpack.c.l.s4 1966171168
        %v1445 = vunpack.c.0.s8 %v1444
        %v1446 = vlaneseq
        %v1447 = vshrl.u32 %v1446, 7
        %v1448 = vsub.s32 %v1445, %v1447
        %v1449 = vrot.slane %v1442, %v1448
        %v1451 = vunpack.c.l.s4 1966171168
        %v1452 = vunpack.c.0.s8 %v1451
        %v1453 = vlaneseq
        %v1454 = vshrl.u32 %v1453, 7
        %v1455 = vsub.s32 %v1452, %v1454
        %v1456 = vrot.slane %v1449, %v1455
        %s1458 = scalar_lea.vmem [#allocation3], 1
        %1459 = vst.msk [vmem:[%s1458] ss:$8 sm:$0x3] %vm1437, %v1456
        %1460 = vst.msk [vmem:[%s1458] ss:$8 sm:$0x0] %vm1437, %v1456
        %v1463 = vcombine.low %v1352, %v1359
        %v1465 = vunpack.c.l.s4 1966171168
        %v1466 = vunpack.c.0.s8 %v1465
        %v1467 = vlaneseq
        %v1468 = vshrl.u32 %v1467, 7
        %v1469 = vsub.s32 %v1466, %v1468
        %v1470 = vrot.slane %v1463, %v1469
        %v1472 = vunpack.c.l.s4 1966171168
        %v1473 = vunpack.c.0.s8 %v1472
        %v1474 = vlaneseq
        %v1475 = vshrl.u32 %v1474, 7
        %v1476 = vsub.s32 %v1473, %v1475
        %v1477 = vrot.slane %v1470, %v1476
        %s1479 = scalar_lea.vmem [#allocation3], 2
        %1480 = vst.msk [vmem:[%s1479] ss:$8 sm:$0x3] %vm1437, %v1477
        %1481 = vst.msk [vmem:[%s1479] ss:$8 sm:$0x0] %vm1437, %v1477
        %v1484 = vcombine.low %v1366, %v1373
        %v1486 = vunpack.c.l.s4 1966171168
        %v1487 = vunpack.c.0.s8 %v1486
        %v1488 = vlaneseq
        %v1489 = vshrl.u32 %v1488, 7
        %v1490 = vsub.s32 %v1487, %v1489
        %v1491 = vrot.slane %v1484, %v1490
        %v1493 = vunpack.c.l.s4 1966171168
        %v1494 = vunpack.c.0.s8 %v1493
        %v1495 = vlaneseq
        %v1496 = vshrl.u32 %v1495, 7
        %v1497 = vsub.s32 %v1494, %v1496
        %v1498 = vrot.slane %v1491, %v1497
        %s1500 = scalar_lea.vmem [#allocation3], 3
        %1501 = vst.msk [vmem:[%s1500] ss:$8 sm:$0x3] %vm1437, %v1498
        %1502 = vst.msk [vmem:[%s1500] ss:$8 sm:$0x0] %vm1437, %v1498
        %v1505 = vcombine.low %v1380, %v1387
        %v1507 = vunpack.c.l.s4 1966171168
        %v1508 = vunpack.c.0.s8 %v1507
        %v1509 = vlaneseq
        %v1510 = vshrl.u32 %v1509, 7
        %v1511 = vsub.s32 %v1508, %v1510
        %v1512 = vrot.slane %v1505, %v1511
        %v1514 = vunpack.c.l.s4 1966171168
        %v1515 = vunpack.c.0.s8 %v1514
        %v1516 = vlaneseq
        %v1517 = vshrl.u32 %v1516, 7
        %v1518 = vsub.s32 %v1515, %v1517
        %v1519 = vrot.slane %v1512, %v1518
        %s1521 = scalar_lea.vmem [#allocation3], 4
        %1522 = vst.msk [vmem:[%s1521] ss:$8 sm:$0x3] %vm1437, %v1519
        %1523 = vst.msk [vmem:[%s1521] ss:$8 sm:$0x0] %vm1437, %v1519
        %v1526 = vcombine.low %v1394, %v1401
        %v1528 = vunpack.c.l.s4 1966171168
        %v1529 = vunpack.c.0.s8 %v1528
        %v1530 = vlaneseq
        %v1531 = vshrl.u32 %v1530, 7
        %v1532 = vsub.s32 %v1529, %v1531
        %v1533 = vrot.slane %v1526, %v1532
        %v1535 = vunpack.c.l.s4 1966171168
        %v1536 = vunpack.c.0.s8 %v1535
        %v1537 = vlaneseq
        %v1538 = vshrl.u32 %v1537, 7
        %v1539 = vsub.s32 %v1536, %v1538
        %v1540 = vrot.slane %v1533, %v1539
        %s1542 = scalar_lea.vmem [#allocation3], 5
        %1543 = vst.msk [vmem:[%s1542] ss:$8 sm:$0x3] %vm1437, %v1540
        %1544 = vst.msk [vmem:[%s1542] ss:$8 sm:$0x0] %vm1437, %v1540
        %v1547 = vcombine.low %v1408, %v1415
        %v1549 = vunpack.c.l.s4 1966171168
        %v1550 = vunpack.c.0.s8 %v1549
        %v1551 = vlaneseq
        %v1552 = vshrl.u32 %v1551, 7
        %v1553 = vsub.s32 %v1550, %v1552
        %v1554 = vrot.slane %v1547, %v1553
        %v1556 = vunpack.c.l.s4 1966171168
        %v1557 = vunpack.c.0.s8 %v1556
        %v1558 = vlaneseq
        %v1559 = vshrl.u32 %v1558, 7
        %v1560 = vsub.s32 %v1557, %v1559
        %v1561 = vrot.slane %v1554, %v1560
        %s1563 = scalar_lea.vmem [#allocation3], 6
        %1564 = vst.msk [vmem:[%s1563] ss:$8 sm:$0x3] %vm1437, %v1561
        %1565 = vst.msk [vmem:[%s1563] ss:$8 sm:$0x0] %vm1437, %v1561
        %v1566 = vld [vmem:[#allocation2 + $0x70] sm:$0xff]
        %v1567 = vld [vmem:[#allocation2 + $0x78] sm:$0xff]
        %v1568 = vld [vmem:[#allocation2 + $0x80] sm:$0xff]
        %v1569 = vld [vmem:[#allocation2 + $0x88] sm:$0xff]
        %v1570 = vld [vmem:[#allocation2 + $0x90] sm:$0xff]
        %v1571 = vld [vmem:[#allocation2 + $0x98] sm:$0xff]
        %v1572 = vld [vmem:[#allocation2 + $0xa0] sm:$0xff]
        %v1573 = vld [vmem:[#allocation2 + $0xa8] sm:$0xff]
        %v1574 = vld [vmem:[#allocation2 + $0xb0] sm:$0xff]
        %v1575 = vld [vmem:[#allocation2 + $0xb8] sm:$0xff]
        %v1576 = vld [vmem:[#allocation2 + $0xc0] sm:$0xff]
        %v1577 = vld [vmem:[#allocation2 + $0xc8] sm:$0xff]
        %v1578 = vld [vmem:[#allocation2 + $0xd0] sm:$0xff]
        %v1579 = vld [vmem:[#allocation2 + $0xd8] sm:$0xff]
        %v1580 = vld [vmem:[#allocation2 + $0x230] sm:$0xff]
        %v1581 = vld [vmem:[#allocation2 + $0x238] sm:$0xff]
        %v1582 = vld [vmem:[#allocation2 + $0x240] sm:$0xff]
        %v1583 = vld [vmem:[#allocation2 + $0x248] sm:$0xff]
        %v1584 = vld [vmem:[#allocation2 + $0x250] sm:$0xff]
        %v1585 = vld [vmem:[#allocation2 + $0x258] sm:$0xff]
        %v1586 = vld [vmem:[#allocation2 + $0x260] sm:$0xff]
        %v1587 = vld [vmem:[#allocation2 + $0x268] sm:$0xff]
        %v1588 = vld [vmem:[#allocation2 + $0x270] sm:$0xff]
        %v1589 = vld [vmem:[#allocation2 + $0x278] sm:$0xff]
        %v1590 = vld [vmem:[#allocation2 + $0x280] sm:$0xff]
        %v1591 = vld [vmem:[#allocation2 + $0x288] sm:$0xff]
        %v1592 = vld [vmem:[#allocation2 + $0x290] sm:$0xff]
        %v1593 = vld [vmem:[#allocation2 + $0x298] sm:$0xff]
        %1594 = vmatprep.subr.mxu0 0.0
        %1595 = vmatpush1.msra.mxu0 0.0
        %1596 = vmatprep.subr.mxu0 0.0
        %1597 = vmatpush1.msra.mxu0 0.0
        %1598 = vmatprep.subr.mxu0 0.0
        %1599 = vmatpush1.msra.mxu0 0.0
        %1600 = vmatprep.subr.mxu0 0.0
        %1601 = vmatpush1.msra.mxu0 0.0
        %1602 = vmatprep.subr.mxu0 0.0
        %1603 = vmatpush1.msra.mxu0 0.0
        %1604 = vmatprep.subr.mxu0 0.0
        %1605 = vmatpush1.msra.mxu0 0.0
        %1606 = vmatprep.subr.mxu0 0.0
        %1607 = vmatpush1.msra.mxu0 0.0
        %1608 = vmatprep.subr.mxu0 0.0
        %1609 = vmatpush1.msra.mxu0 0.0
        %1610 = vmatprep.subr.mxu0 0.0
        %1611 = vmatpush1.msra.mxu0 0.0
        %1612 = vmatprep.subr.mxu0 0.0
        %1613 = vmatpush1.msra.mxu0 0.0
        %1614 = vmatprep.subr.mxu0 0.0
        %1615 = vmatpush1.msra.mxu0 0.0
        %1616 = vmatprep.subr.mxu0 0.0
        %1617 = vmatpush1.msra.mxu0 0.0
        %1618 = vmatprep.subr.mxu0 0.0
        %1619 = vmatpush1.msra.mxu0 0.0
        %1620 = vmatprep.subr.mxu0 0.0
        %1621 = vmatpush1.msra.mxu0 0.0
        %1622 = vmatprep.subr.mxu0 %v1581
        %1623 = vmatpush1.msra.mxu0 %v1580
        %1624 = vmatprep.subr.mxu0 %v1567
        %1625 = vmatpush1.msra.mxu0 %v1566
        %1626 = vmatprep.subr.mxu0 0.0
        %1627 = vmatpush2.msra.mxu0 0.0
        %1628 = vmatprep.subr.mxu0 0.0
        %1629 = vmatpush2.msra.mxu0 0.0
        %1630 = vmatprep.subr.mxu0 0.0
        %1631 = vmatpush2.msra.mxu0 0.0
        %1632 = vmatprep.subr.mxu0 0.0
        %1633 = vmatpush2.msra.mxu0 0.0
        %1634 = vmatprep.subr.mxu0 0.0
        %1635 = vmatpush2.msra.mxu0 0.0
        %1636 = vmatprep.subr.mxu0 0.0
        %1637 = vmatpush2.msra.mxu0 0.0
        %1638 = vmatprep.subr.mxu0 0.0
        %1639 = vmatpush2.msra.mxu0 0.0
        %1640 = vmatprep.subr.mxu0 0.0
        %1641 = vmatpush2.msra.mxu0 0.0
        %1642 = vmatprep.subr.mxu0 0.0
        %1643 = vmatpush2.msra.mxu0 0.0
        %1644 = vmatprep.subr.mxu0 0.0
        %1645 = vmatpush2.msra.mxu0 0.0
        %1646 = vmatprep.subr.mxu0 0.0
        %1647 = vmatpush2.msra.mxu0 0.0
        %1648 = vmatprep.subr.mxu0 0.0
        %1649 = vmatpush2.msra.mxu0 0.0
        %1650 = vmatprep.subr.mxu0 0.0
        %1651 = vmatpush2.msra.mxu0 0.0
        %1652 = vmatprep.subr.mxu0 0.0
        %1653 = vmatpush2.msra.mxu0 0.0
        %1654 = vmatprep.subr.mxu0 0.0
        %1655 = vmatpush2.msra.mxu0 0.0
        %1656 = vmatprep.subr.mxu0 0.0
        %1657 = vmatpush2.msra.mxu0 0.0
        %1658 = vmatprep.mubr.f32.mxu0 0.0
        %1659 = vmatmul.mubr.f32.gmra.mxu0 %v708
        %v1660 = vpop.f32.mrf.mxu0
        %v1661 = vadd.f32 %v699, %v1660
        %v1662 = vpop.f32.mrf.mxu0
        %v1663 = vadd.f32 %v699, %v1662
        %1664 = vmatprep.mubr.f32.mxu0 0.0
        %1665 = vmatmul.mubr.f32.gmra.mxu0 %v711
        %v1666 = vpop.f32.mrf.mxu0
        %v1667 = vadd.f32 %v704, %v1666
        %v1668 = vpop.f32.mrf.mxu0
        %v1669 = vadd.f32 %v704, %v1668
        %1670 = vdwg.mxu0
        %1671 = vmatprep.subr.mxu0 0.0
        %1672 = vmatpush1.msra.mxu0 0.0
        %1673 = vmatprep.subr.mxu0 0.0
        %1674 = vmatpush1.msra.mxu0 0.0
        %1675 = vmatprep.subr.mxu0 0.0
        %1676 = vmatpush1.msra.mxu0 0.0
        %1677 = vmatprep.subr.mxu0 0.0
        %1678 = vmatpush1.msra.mxu0 0.0
        %1679 = vmatprep.subr.mxu0 0.0
        %1680 = vmatpush1.msra.mxu0 0.0
        %1681 = vmatprep.subr.mxu0 0.0
        %1682 = vmatpush1.msra.mxu0 0.0
        %1683 = vmatprep.subr.mxu0 0.0
        %1684 = vmatpush1.msra.mxu0 0.0
        %1685 = vmatprep.subr.mxu0 0.0
        %1686 = vmatpush1.msra.mxu0 0.0
        %1687 = vmatprep.subr.mxu0 0.0
        %1688 = vmatpush1.msra.mxu0 0.0
        %1689 = vmatprep.subr.mxu0 0.0
        %1690 = vmatpush1.msra.mxu0 0.0
        %1691 = vmatprep.subr.mxu0 0.0
        %1692 = vmatpush1.msra.mxu0 0.0
        %1693 = vmatprep.subr.mxu0 0.0
        %1694 = vmatpush1.msra.mxu0 0.0
        %1695 = vmatprep.subr.mxu0 0.0
        %1696 = vmatpush1.msra.mxu0 0.0
        %1697 = vmatprep.subr.mxu0 0.0
        %1698 = vmatpush1.msra.mxu0 0.0
        %1699 = vmatprep.subr.mxu0 %v1583
        %1700 = vmatpush1.msra.mxu0 %v1582
        %1701 = vmatprep.subr.mxu0 %v1569
        %1702 = vmatpush1.msra.mxu0 %v1568
        %1703 = vmatprep.subr.mxu0 0.0
        %1704 = vmatpush2.msra.mxu0 0.0
        %1705 = vmatprep.subr.mxu0 0.0
        %1706 = vmatpush2.msra.mxu0 0.0
        %1707 = vmatprep.subr.mxu0 0.0
        %1708 = vmatpush2.msra.mxu0 0.0
        %1709 = vmatprep.subr.mxu0 0.0
        %1710 = vmatpush2.msra.mxu0 0.0
        %1711 = vmatprep.subr.mxu0 0.0
        %1712 = vmatpush2.msra.mxu0 0.0
        %1713 = vmatprep.subr.mxu0 0.0
        %1714 = vmatpush2.msra.mxu0 0.0
        %1715 = vmatprep.subr.mxu0 0.0
        %1716 = vmatpush2.msra.mxu0 0.0
        %1717 = vmatprep.subr.mxu0 0.0
        %1718 = vmatpush2.msra.mxu0 0.0
        %1719 = vmatprep.subr.mxu0 0.0
        %1720 = vmatpush2.msra.mxu0 0.0
        %1721 = vmatprep.subr.mxu0 0.0
        %1722 = vmatpush2.msra.mxu0 0.0
        %1723 = vmatprep.subr.mxu0 0.0
        %1724 = vmatpush2.msra.mxu0 0.0
        %1725 = vmatprep.subr.mxu0 0.0
        %1726 = vmatpush2.msra.mxu0 0.0
        %1727 = vmatprep.subr.mxu0 0.0
        %1728 = vmatpush2.msra.mxu0 0.0
        %1729 = vmatprep.subr.mxu0 0.0
        %1730 = vmatpush2.msra.mxu0 0.0
        %1731 = vmatprep.subr.mxu0 0.0
        %1732 = vmatpush2.msra.mxu0 0.0
        %1733 = vmatprep.subr.mxu0 0.0
        %1734 = vmatpush2.msra.mxu0 0.0
        %1735 = vmatprep.mubr.f32.mxu0 0.0
        %1736 = vmatmul.mubr.f32.gmra.mxu0 %v708
        %v1737 = vpop.f32.mrf.mxu0
        %v1738 = vadd.f32 %v699, %v1737
        %v1739 = vpop.f32.mrf.mxu0
        %v1740 = vadd.f32 %v699, %v1739
        %1741 = vmatprep.mubr.f32.mxu0 0.0
        %1742 = vmatmul.mubr.f32.gmra.mxu0 %v711
        %v1743 = vpop.f32.mrf.mxu0
        %v1744 = vadd.f32 %v704, %v1743
        %v1745 = vpop.f32.mrf.mxu0
        %v1746 = vadd.f32 %v704, %v1745
        %1747 = vdwg.mxu0
        %1748 = vmatprep.subr.mxu0 0.0
        %1749 = vmatpush1.msra.mxu0 0.0
        %1750 = vmatprep.subr.mxu0 0.0
        %1751 = vmatpush1.msra.mxu0 0.0
        %1752 = vmatprep.subr.mxu0 0.0
        %1753 = vmatpush1.msra.mxu0 0.0
        %1754 = vmatprep.subr.mxu0 0.0
        %1755 = vmatpush1.msra.mxu0 0.0
        %1756 = vmatprep.subr.mxu0 0.0
        %1757 = vmatpush1.msra.mxu0 0.0
        %1758 = vmatprep.subr.mxu0 0.0
        %1759 = vmatpush1.msra.mxu0 0.0
        %1760 = vmatprep.subr.mxu0 0.0
        %1761 = vmatpush1.msra.mxu0 0.0
        %1762 = vmatprep.subr.mxu0 0.0
        %1763 = vmatpush1.msra.mxu0 0.0
        %1764 = vmatprep.subr.mxu0 0.0
        %1765 = vmatpush1.msra.mxu0 0.0
        %1766 = vmatprep.subr.mxu0 0.0
        %1767 = vmatpush1.msra.mxu0 0.0
        %1768 = vmatprep.subr.mxu0 0.0
        %1769 = vmatpush1.msra.mxu0 0.0
        %1770 = vmatprep.subr.mxu0 0.0
        %1771 = vmatpush1.msra.mxu0 0.0
        %1772 = vmatprep.subr.mxu0 0.0
        %1773 = vmatpush1.msra.mxu0 0.0
        %1774 = vmatprep.subr.mxu0 0.0
        %1775 = vmatpush1.msra.mxu0 0.0
        %1776 = vmatprep.subr.mxu0 %v1585
        %1777 = vmatpush1.msra.mxu0 %v1584
        %1778 = vmatprep.subr.mxu0 %v1571
        %1779 = vmatpush1.msra.mxu0 %v1570
        %1780 = vmatprep.subr.mxu0 0.0
        %1781 = vmatpush2.msra.mxu0 0.0
        %1782 = vmatprep.subr.mxu0 0.0
        %1783 = vmatpush2.msra.mxu0 0.0
        %1784 = vmatprep.subr.mxu0 0.0
        %1785 = vmatpush2.msra.mxu0 0.0
        %1786 = vmatprep.subr.mxu0 0.0
        %1787 = vmatpush2.msra.mxu0 0.0
        %1788 = vmatprep.subr.mxu0 0.0
        %1789 = vmatpush2.msra.mxu0 0.0
        %1790 = vmatprep.subr.mxu0 0.0
        %1791 = vmatpush2.msra.mxu0 0.0
        %1792 = vmatprep.subr.mxu0 0.0
        %1793 = vmatpush2.msra.mxu0 0.0
        %1794 = vmatprep.subr.mxu0 0.0
        %1795 = vmatpush2.msra.mxu0 0.0
        %1796 = vmatprep.subr.mxu0 0.0
        %1797 = vmatpush2.msra.mxu0 0.0
        %1798 = vmatprep.subr.mxu0 0.0
        %1799 = vmatpush2.msra.mxu0 0.0
        %1800 = vmatprep.subr.mxu0 0.0
        %1801 = vmatpush2.msra.mxu0 0.0
        %1802 = vmatprep.subr.mxu0 0.0
        %1803 = vmatpush2.msra.mxu0 0.0
        %1804 = vmatprep.subr.mxu0 0.0
        %1805 = vmatpush2.msra.mxu0 0.0
        %1806 = vmatprep.subr.mxu0 0.0
        %1807 = vmatpush2.msra.mxu0 0.0
        %1808 = vmatprep.subr.mxu0 0.0
        %1809 = vmatpush2.msra.mxu0 0.0
        %1810 = vmatprep.subr.mxu0 0.0
        %1811 = vmatpush2.msra.mxu0 0.0
        %1812 = vmatprep.mubr.f32.mxu0 0.0
        %1813 = vmatmul.mubr.f32.gmra.mxu0 %v708
        %v1814 = vpop.f32.mrf.mxu0
        %v1815 = vadd.f32 %v699, %v1814
        %v1816 = vpop.f32.mrf.mxu0
        %v1817 = vadd.f32 %v699, %v1816
        %1818 = vmatprep.mubr.f32.mxu0 0.0
        %1819 = vmatmul.mubr.f32.gmra.mxu0 %v711
        %v1820 = vpop.f32.mrf.mxu0
        %v1821 = vadd.f32 %v704, %v1820
        %v1822 = vpop.f32.mrf.mxu0
        %v1823 = vadd.f32 %v704, %v1822
        %1824 = vdwg.mxu0
        %1825 = vmatprep.subr.mxu0 0.0
        %1826 = vmatpush1.msra.mxu0 0.0
        %1827 = vmatprep.subr.mxu0 0.0
        %1828 = vmatpush1.msra.mxu0 0.0
        %1829 = vmatprep.subr.mxu0 0.0
        %1830 = vmatpush1.msra.mxu0 0.0
        %1831 = vmatprep.subr.mxu0 0.0
        %1832 = vmatpush1.msra.mxu0 0.0
        %1833 = vmatprep.subr.mxu0 0.0
        %1834 = vmatpush1.msra.mxu0 0.0
        %1835 = vmatprep.subr.mxu0 0.0
        %1836 = vmatpush1.msra.mxu0 0.0
        %1837 = vmatprep.subr.mxu0 0.0
        %1838 = vmatpush1.msra.mxu0 0.0
        %1839 = vmatprep.subr.mxu0 0.0
        %1840 = vmatpush1.msra.mxu0 0.0
        %1841 = vmatprep.subr.mxu0 0.0
        %1842 = vmatpush1.msra.mxu0 0.0
        %1843 = vmatprep.subr.mxu0 0.0
        %1844 = vmatpush1.msra.mxu0 0.0
        %1845 = vmatprep.subr.mxu0 0.0
        %1846 = vmatpush1.msra.mxu0 0.0
        %1847 = vmatprep.subr.mxu0 0.0
        %1848 = vmatpush1.msra.mxu0 0.0
        %1849 = vmatprep.subr.mxu0 0.0
        %1850 = vmatpush1.msra.mxu0 0.0
        %1851 = vmatprep.subr.mxu0 0.0
        %1852 = vmatpush1.msra.mxu0 0.0
        %1853 = vmatprep.subr.mxu0 %v1587
        %1854 = vmatpush1.msra.mxu0 %v1586
        %1855 = vmatprep.subr.mxu0 %v1573
        %1856 = vmatpush1.msra.mxu0 %v1572
        %1857 = vmatprep.subr.mxu0 0.0
        %1858 = vmatpush2.msra.mxu0 0.0
        %1859 = vmatprep.subr.mxu0 0.0
        %1860 = vmatpush2.msra.mxu0 0.0
        %1861 = vmatprep.subr.mxu0 0.0
        %1862 = vmatpush2.msra.mxu0 0.0
        %1863 = vmatprep.subr.mxu0 0.0
        %1864 = vmatpush2.msra.mxu0 0.0
        %1865 = vmatprep.subr.mxu0 0.0
        %1866 = vmatpush2.msra.mxu0 0.0
        %1867 = vmatprep.subr.mxu0 0.0
        %1868 = vmatpush2.msra.mxu0 0.0
        %1869 = vmatprep.subr.mxu0 0.0
        %1870 = vmatpush2.msra.mxu0 0.0
        %1871 = vmatprep.subr.mxu0 0.0
        %1872 = vmatpush2.msra.mxu0 0.0
        %1873 = vmatprep.subr.mxu0 0.0
        %1874 = vmatpush2.msra.mxu0 0.0
        %1875 = vmatprep.subr.mxu0 0.0
        %1876 = vmatpush2.msra.mxu0 0.0
        %1877 = vmatprep.subr.mxu0 0.0
        %1878 = vmatpush2.msra.mxu0 0.0
        %1879 = vmatprep.subr.mxu0 0.0
        %1880 = vmatpush2.msra.mxu0 0.0
        %1881 = vmatprep.subr.mxu0 0.0
        %1882 = vmatpush2.msra.mxu0 0.0
        %1883 = vmatprep.subr.mxu0 0.0
        %1884 = vmatpush2.msra.mxu0 0.0
        %1885 = vmatprep.subr.mxu0 0.0
        %1886 = vmatpush2.msra.mxu0 0.0
        %1887 = vmatprep.subr.mxu0 0.0
        %1888 = vmatpush2.msra.mxu0 0.0
        %1889 = vmatprep.mubr.f32.mxu0 0.0
        %1890 = vmatmul.mubr.f32.gmra.mxu0 %v708
        %v1891 = vpop.f32.mrf.mxu0
        %v1892 = vadd.f32 %v699, %v1891
        %v1893 = vpop.f32.mrf.mxu0
        %v1894 = vadd.f32 %v699, %v1893
        %1895 = vmatprep.mubr.f32.mxu0 0.0
        %1896 = vmatmul.mubr.f32.gmra.mxu0 %v711
        %v1897 = vpop.f32.mrf.mxu0
        %v1898 = vadd.f32 %v704, %v1897
        %v1899 = vpop.f32.mrf.mxu0
        %v1900 = vadd.f32 %v704, %v1899
        %1901 = vdwg.mxu0
        %1902 = vmatprep.subr.mxu0 0.0
        %1903 = vmatpush1.msra.mxu0 0.0
        %1904 = vmatprep.subr.mxu0 0.0
        %1905 = vmatpush1.msra.mxu0 0.0
        %1906 = vmatprep.subr.mxu0 0.0
        %1907 = vmatpush1.msra.mxu0 0.0
        %1908 = vmatprep.subr.mxu0 0.0
        %1909 = vmatpush1.msra.mxu0 0.0
        %1910 = vmatprep.subr.mxu0 0.0
        %1911 = vmatpush1.msra.mxu0 0.0
        %1912 = vmatprep.subr.mxu0 0.0
        %1913 = vmatpush1.msra.mxu0 0.0
        %1914 = vmatprep.subr.mxu0 0.0
        %1915 = vmatpush1.msra.mxu0 0.0
        %1916 = vmatprep.subr.mxu0 0.0
        %1917 = vmatpush1.msra.mxu0 0.0
        %1918 = vmatprep.subr.mxu0 0.0
        %1919 = vmatpush1.msra.mxu0 0.0
        %1920 = vmatprep.subr.mxu0 0.0
        %1921 = vmatpush1.msra.mxu0 0.0
        %1922 = vmatprep.subr.mxu0 0.0
        %1923 = vmatpush1.msra.mxu0 0.0
        %1924 = vmatprep.subr.mxu0 0.0
        %1925 = vmatpush1.msra.mxu0 0.0
        %1926 = vmatprep.subr.mxu0 0.0
        %1927 = vmatpush1.msra.mxu0 0.0
        %1928 = vmatprep.subr.mxu0 0.0
        %1929 = vmatpush1.msra.mxu0 0.0
        %1930 = vmatprep.subr.mxu0 %v1589
        %1931 = vmatpush1.msra.mxu0 %v1588
        %1932 = vmatprep.subr.mxu0 %v1575
        %1933 = vmatpush1.msra.mxu0 %v1574
        %1934 = vmatprep.subr.mxu0 0.0
        %1935 = vmatpush2.msra.mxu0 0.0
        %1936 = vmatprep.subr.mxu0 0.0
        %1937 = vmatpush2.msra.mxu0 0.0
        %1938 = vmatprep.subr.mxu0 0.0
        %1939 = vmatpush2.msra.mxu0 0.0
        %1940 = vmatprep.subr.mxu0 0.0
        %1941 = vmatpush2.msra.mxu0 0.0
        %1942 = vmatprep.subr.mxu0 0.0
        %1943 = vmatpush2.msra.mxu0 0.0
        %1944 = vmatprep.subr.mxu0 0.0
        %1945 = vmatpush2.msra.mxu0 0.0
        %1946 = vmatprep.subr.mxu0 0.0
        %1947 = vmatpush2.msra.mxu0 0.0
        %1948 = vmatprep.subr.mxu0 0.0
        %1949 = vmatpush2.msra.mxu0 0.0
        %1950 = vmatprep.subr.mxu0 0.0
        %1951 = vmatpush2.msra.mxu0 0.0
        %1952 = vmatprep.subr.mxu0 0.0
        %1953 = vmatpush2.msra.mxu0 0.0
        %1954 = vmatprep.subr.mxu0 0.0
        %1955 = vmatpush2.msra.mxu0 0.0
        %1956 = vmatprep.subr.mxu0 0.0
        %1957 = vmatpush2.msra.mxu0 0.0
        %1958 = vmatprep.subr.mxu0 0.0
        %1959 = vmatpush2.msra.mxu0 0.0
        %1960 = vmatprep.subr.mxu0 0.0
        %1961 = vmatpush2.msra.mxu0 0.0
        %1962 = vmatprep.subr.mxu0 0.0
        %1963 = vmatpush2.msra.mxu0 0.0
        %1964 = vmatprep.subr.mxu0 0.0
        %1965 = vmatpush2.msra.mxu0 0.0
        %1966 = vmatprep.mubr.f32.mxu0 0.0
        %1967 = vmatmul.mubr.f32.gmra.mxu0 %v708
        %v1968 = vpop.f32.mrf.mxu0
        %v1969 = vadd.f32 %v699, %v1968
        %v1970 = vpop.f32.mrf.mxu0
        %v1971 = vadd.f32 %v699, %v1970
        %1972 = vmatprep.mubr.f32.mxu0 0.0
        %1973 = vmatmul.mubr.f32.gmra.mxu0 %v711
        %v1974 = vpop.f32.mrf.mxu0
        %v1975 = vadd.f32 %v704, %v1974
        %v1976 = vpop.f32.mrf.mxu0
        %v1977 = vadd.f32 %v704, %v1976
        %1978 = vdwg.mxu0
        %1979 = vmatprep.subr.mxu0 0.0
        %1980 = vmatpush1.msra.mxu0 0.0
        %1981 = vmatprep.subr.mxu0 0.0
        %1982 = vmatpush1.msra.mxu0 0.0
        %1983 = vmatprep.subr.mxu0 0.0
        %1984 = vmatpush1.msra.mxu0 0.0
        %1985 = vmatprep.subr.mxu0 0.0
        %1986 = vmatpush1.msra.mxu0 0.0
        %1987 = vmatprep.subr.mxu0 0.0
        %1988 = vmatpush1.msra.mxu0 0.0
        %1989 = vmatprep.subr.mxu0 0.0
        %1990 = vmatpush1.msra.mxu0 0.0
        %1991 = vmatprep.subr.mxu0 0.0
        %1992 = vmatpush1.msra.mxu0 0.0
        %1993 = vmatprep.subr.mxu0 0.0
        %1994 = vmatpush1.msra.mxu0 0.0
        %1995 = vmatprep.subr.mxu0 0.0
        %1996 = vmatpush1.msra.mxu0 0.0
        %1997 = vmatprep.subr.mxu0 0.0
        %1998 = vmatpush1.msra.mxu0 0.0
        %1999 = vmatprep.subr.mxu0 0.0
        %2000 = vmatpush1.msra.mxu0 0.0
        %2001 = vmatprep.subr.mxu0 0.0
        %2002 = vmatpush1.msra.mxu0 0.0
        %2003 = vmatprep.subr.mxu0 0.0
        %2004 = vmatpush1.msra.mxu0 0.0
        %2005 = vmatprep.subr.mxu0 0.0
        %2006 = vmatpush1.msra.mxu0 0.0
        %2007 = vmatprep.subr.mxu0 %v1591
        %2008 = vmatpush1.msra.mxu0 %v1590
        %2009 = vmatprep.subr.mxu0 %v1577
        %2010 = vmatpush1.msra.mxu0 %v1576
        %2011 = vmatprep.subr.mxu0 0.0
        %2012 = vmatpush2.msra.mxu0 0.0
        %2013 = vmatprep.subr.mxu0 0.0
        %2014 = vmatpush2.msra.mxu0 0.0
        %2015 = vmatprep.subr.mxu0 0.0
        %2016 = vmatpush2.msra.mxu0 0.0
        %2017 = vmatprep.subr.mxu0 0.0
        %2018 = vmatpush2.msra.mxu0 0.0
        %2019 = vmatprep.subr.mxu0 0.0
        %2020 = vmatpush2.msra.mxu0 0.0
        %2021 = vmatprep.subr.mxu0 0.0
        %2022 = vmatpush2.msra.mxu0 0.0
        %2023 = vmatprep.subr.mxu0 0.0
        %2024 = vmatpush2.msra.mxu0 0.0
        %2025 = vmatprep.subr.mxu0 0.0
        %2026 = vmatpush2.msra.mxu0 0.0
        %2027 = vmatprep.subr.mxu0 0.0
        %2028 = vmatpush2.msra.mxu0 0.0
        %2029 = vmatprep.subr.mxu0 0.0
        %2030 = vmatpush2.msra.mxu0 0.0
        %2031 = vmatprep.subr.mxu0 0.0
        %2032 = vmatpush2.msra.mxu0 0.0
        %2033 = vmatprep.subr.mxu0 0.0
        %2034 = vmatpush2.msra.mxu0 0.0
        %2035 = vmatprep.subr.mxu0 0.0
        %2036 = vmatpush2.msra.mxu0 0.0
        %2037 = vmatprep.subr.mxu0 0.0
        %2038 = vmatpush2.msra.mxu0 0.0
        %2039 = vmatprep.subr.mxu0 0.0
        %2040 = vmatpush2.msra.mxu0 0.0
        %2041 = vmatprep.subr.mxu0 0.0
        %2042 = vmatpush2.msra.mxu0 0.0
        %2043 = vmatprep.mubr.f32.mxu0 0.0
        %2044 = vmatmul.mubr.f32.gmra.mxu0 %v708
        %v2045 = vpop.f32.mrf.mxu0
        %v2046 = vadd.f32 %v699, %v2045
        %v2047 = vpop.f32.mrf.mxu0
        %v2048 = vadd.f32 %v699, %v2047
        %2049 = vmatprep.mubr.f32.mxu0 0.0
        %2050 = vmatmul.mubr.f32.gmra.mxu0 %v711
        %v2051 = vpop.f32.mrf.mxu0
        %v2052 = vadd.f32 %v704, %v2051
        %v2053 = vpop.f32.mrf.mxu0
        %v2054 = vadd.f32 %v704, %v2053
        %2055 = vdwg.mxu0
        %2056 = vmatprep.subr.mxu0 0.0
        %2057 = vmatpush1.msra.mxu0 0.0
        %2058 = vmatprep.subr.mxu0 0.0
        %2059 = vmatpush1.msra.mxu0 0.0
        %2060 = vmatprep.subr.mxu0 0.0
        %2061 = vmatpush1.msra.mxu0 0.0
        %2062 = vmatprep.subr.mxu0 0.0
        %2063 = vmatpush1.msra.mxu0 0.0
        %2064 = vmatprep.subr.mxu0 0.0
        %2065 = vmatpush1.msra.mxu0 0.0
        %2066 = vmatprep.subr.mxu0 0.0
        %2067 = vmatpush1.msra.mxu0 0.0
        %2068 = vmatprep.subr.mxu0 0.0
        %2069 = vmatpush1.msra.mxu0 0.0
        %2070 = vmatprep.subr.mxu0 0.0
        %2071 = vmatpush1.msra.mxu0 0.0
        %2072 = vmatprep.subr.mxu0 0.0
        %2073 = vmatpush1.msra.mxu0 0.0
        %2074 = vmatprep.subr.mxu0 0.0
        %2075 = vmatpush1.msra.mxu0 0.0
        %2076 = vmatprep.subr.mxu0 0.0
        %2077 = vmatpush1.msra.mxu0 0.0
        %2078 = vmatprep.subr.mxu0 0.0
        %2079 = vmatpush1.msra.mxu0 0.0
        %2080 = vmatprep.subr.mxu0 0.0
        %2081 = vmatpush1.msra.mxu0 0.0
        %2082 = vmatprep.subr.mxu0 0.0
        %2083 = vmatpush1.msra.mxu0 0.0
        %2084 = vmatprep.subr.mxu0 %v1593
        %2085 = vmatpush1.msra.mxu0 %v1592
        %2086 = vmatprep.subr.mxu0 %v1579
        %2087 = vmatpush1.msra.mxu0 %v1578
        %2088 = vmatprep.subr.mxu0 0.0
        %2089 = vmatpush2.msra.mxu0 0.0
        %2090 = vmatprep.subr.mxu0 0.0
        %2091 = vmatpush2.msra.mxu0 0.0
        %2092 = vmatprep.subr.mxu0 0.0
        %2093 = vmatpush2.msra.mxu0 0.0
        %2094 = vmatprep.subr.mxu0 0.0
        %2095 = vmatpush2.msra.mxu0 0.0
        %2096 = vmatprep.subr.mxu0 0.0
        %2097 = vmatpush2.msra.mxu0 0.0
        %2098 = vmatprep.subr.mxu0 0.0
        %2099 = vmatpush2.msra.mxu0 0.0
        %2100 = vmatprep.subr.mxu0 0.0
        %2101 = vmatpush2.msra.mxu0 0.0
        %2102 = vmatprep.subr.mxu0 0.0
        %2103 = vmatpush2.msra.mxu0 0.0
        %2104 = vmatprep.subr.mxu0 0.0
        %2105 = vmatpush2.msra.mxu0 0.0
        %2106 = vmatprep.subr.mxu0 0.0
        %2107 = vmatpush2.msra.mxu0 0.0
        %2108 = vmatprep.subr.mxu0 0.0
        %2109 = vmatpush2.msra.mxu0 0.0
        %2110 = vmatprep.subr.mxu0 0.0
        %2111 = vmatpush2.msra.mxu0 0.0
        %2112 = vmatprep.subr.mxu0 0.0
        %2113 = vmatpush2.msra.mxu0 0.0
        %2114 = vmatprep.subr.mxu0 0.0
        %2115 = vmatpush2.msra.mxu0 0.0
        %2116 = vmatprep.subr.mxu0 0.0
        %2117 = vmatpush2.msra.mxu0 0.0
        %2118 = vmatprep.subr.mxu0 0.0
        %2119 = vmatpush2.msra.mxu0 0.0
        %2120 = vmatprep.mubr.f32.mxu0 0.0
        %2121 = vmatmul.mubr.f32.gmra.mxu0 %v708
        %v2122 = vpop.f32.mrf.mxu0
        %v2123 = vadd.f32 %v699, %v2122
        %v2124 = vpop.f32.mrf.mxu0
        %v2125 = vadd.f32 %v699, %v2124
        %2126 = vmatprep.mubr.f32.mxu0 0.0
        %2127 = vmatmul.mubr.f32.gmra.mxu0 %v711
        %v2128 = vpop.f32.mrf.mxu0
        %v2129 = vadd.f32 %v704, %v2128
        %v2130 = vpop.f32.mrf.mxu0
        %v2131 = vadd.f32 %v704, %v2130
        %2132 = vdwg.mxu0
        %v2133 = vmax.f32 %v1661, 0.0
        %v2134 = vmax.f32 %v1663, 0.0
        %v2135 = vmax.f32 %v1738, 0.0
        %v2136 = vmax.f32 %v1740, 0.0
        %v2137 = vmax.f32 %v1815, 0.0
        %v2138 = vmax.f32 %v1817, 0.0
        %v2139 = vmax.f32 %v1892, 0.0
        %v2140 = vmax.f32 %v1894, 0.0
        %v2141 = vmax.f32 %v1969, 0.0
        %v2142 = vmax.f32 %v1971, 0.0
        %v2143 = vmax.f32 %v2046, 0.0
        %v2144 = vmax.f32 %v2048, 0.0
        %v2145 = vmax.f32 %v2123, 0.0
        %v2146 = vmax.f32 %v2125, 0.0
        %v2147 = vmax.f32 %v1667, 0.0
        %v2148 = vmax.f32 %v1669, 0.0
        %v2149 = vmax.f32 %v1744, 0.0
        %v2150 = vmax.f32 %v1746, 0.0
        %v2151 = vmax.f32 %v1821, 0.0
        %v2152 = vmax.f32 %v1823, 0.0
        %v2153 = vmax.f32 %v1898, 0.0
        %v2154 = vmax.f32 %v1900, 0.0
        %v2155 = vmax.f32 %v1975, 0.0
        %v2156 = vmax.f32 %v1977, 0.0
        %v2157 = vmax.f32 %v2052, 0.0
        %v2158 = vmax.f32 %v2054, 0.0
        %v2159 = vmax.f32 %v2129, 0.0
        %v2160 = vmax.f32 %v2131, 0.0
        %v2161 = vmul.f32 %v2133, %v1283
        %v2162 = vmul.f32 %v2134, %v1283
        %v2163 = vmul.f32 %v2135, %v1283
        %v2164 = vmul.f32 %v2136, %v1283
        %v2165 = vmul.f32 %v2137, %v1283
        %v2166 = vmul.f32 %v2138, %v1283
        %v2167 = vmul.f32 %v2139, %v1283
        %v2168 = vmul.f32 %v2140, %v1283
        %v2169 = vmul.f32 %v2141, %v1283
        %v2170 = vmul.f32 %v2142, %v1283
        %v2171 = vmul.f32 %v2143, %v1283
        %v2172 = vmul.f32 %v2144, %v1283
        %v2173 = vmul.f32 %v2145, %v1283
        %v2174 = vmul.f32 %v2146, %v1283
        %v2175 = vmul.f32 %v2147, %v1288
        %v2176 = vmul.f32 %v2148, %v1288
        %v2177 = vmul.f32 %v2149, %v1288
        %v2178 = vmul.f32 %v2150, %v1288
        %v2179 = vmul.f32 %v2151, %v1288
        %v2180 = vmul.f32 %v2152, %v1288
        %v2181 = vmul.f32 %v2153, %v1288
        %v2182 = vmul.f32 %v2154, %v1288
        %v2183 = vmul.f32 %v2155, %v1288
        %v2184 = vmul.f32 %v2156, %v1288
        %v2185 = vmul.f32 %v2157, %v1288
        %v2186 = vmul.f32 %v2158, %v1288
        %v2187 = vmul.f32 %v2159, %v1288
        %v2188 = vmul.f32 %v2160, %v1288
        %v2189 = vadd.f32 %v2161, %v2175
        %v2190 = vrot.slane %v2189, 4
        %v2191 = vadd.f32 %v2189, %v2190
        %v2192 = vrot.slane %v2191, 2
        %v2193 = vadd.f32 %v2191, %v2192
        %v2194 = vrot.slane %v2193, 1
        %v2195 = vadd.f32 %v2193, %v2194
        %v2196 = vadd.f32 %v2162, %v2176
        %v2197 = vrot.slane %v2196, 4
        %v2198 = vadd.f32 %v2196, %v2197
        %v2199 = vrot.slane %v2198, 2
        %v2200 = vadd.f32 %v2198, %v2199
        %v2201 = vrot.slane %v2200, 1
        %v2202 = vadd.f32 %v2200, %v2201
        %v2203 = vadd.f32 %v2163, %v2177
        %v2204 = vrot.slane %v2203, 4
        %v2205 = vadd.f32 %v2203, %v2204
        %v2206 = vrot.slane %v2205, 2
        %v2207 = vadd.f32 %v2205, %v2206
        %v2208 = vrot.slane %v2207, 1
        %v2209 = vadd.f32 %v2207, %v2208
        %v2210 = vadd.f32 %v2164, %v2178
        %v2211 = vrot.slane %v2210, 4
        %v2212 = vadd.f32 %v2210, %v2211
        %v2213 = vrot.slane %v2212, 2
        %v2214 = vadd.f32 %v2212, %v2213
        %v2215 = vrot.slane %v2214, 1
        %v2216 = vadd.f32 %v2214, %v2215
        %v2217 = vadd.f32 %v2165, %v2179
        %v2218 = vrot.slane %v2217, 4
        %v2219 = vadd.f32 %v2217, %v2218
        %v2220 = vrot.slane %v2219, 2
        %v2221 = vadd.f32 %v2219, %v2220
        %v2222 = vrot.slane %v2221, 1
        %v2223 = vadd.f32 %v2221, %v2222
        %v2224 = vadd.f32 %v2166, %v2180
        %v2225 = vrot.slane %v2224, 4
        %v2226 = vadd.f32 %v2224, %v2225
        %v2227 = vrot.slane %v2226, 2
        %v2228 = vadd.f32 %v2226, %v2227
        %v2229 = vrot.slane %v2228, 1
        %v2230 = vadd.f32 %v2228, %v2229
        %v2231 = vadd.f32 %v2167, %v2181
        %v2232 = vrot.slane %v2231, 4
        %v2233 = vadd.f32 %v2231, %v2232
        %v2234 = vrot.slane %v2233, 2
        %v2235 = vadd.f32 %v2233, %v2234
        %v2236 = vrot.slane %v2235, 1
        %v2237 = vadd.f32 %v2235, %v2236
        %v2238 = vadd.f32 %v2168, %v2182
        %v2239 = vrot.slane %v2238, 4
        %v2240 = vadd.f32 %v2238, %v2239
        %v2241 = vrot.slane %v2240, 2
        %v2242 = vadd.f32 %v2240, %v2241
        %v2243 = vrot.slane %v2242, 1
        %v2244 = vadd.f32 %v2242, %v2243
        %v2245 = vadd.f32 %v2169, %v2183
        %v2246 = vrot.slane %v2245, 4
        %v2247 = vadd.f32 %v2245, %v2246
        %v2248 = vrot.slane %v2247, 2
        %v2249 = vadd.f32 %v2247, %v2248
        %v2250 = vrot.slane %v2249, 1
        %v2251 = vadd.f32 %v2249, %v2250
        %v2252 = vadd.f32 %v2170, %v2184
        %v2253 = vrot.slane %v2252, 4
        %v2254 = vadd.f32 %v2252, %v2253
        %v2255 = vrot.slane %v2254, 2
        %v2256 = vadd.f32 %v2254, %v2255
        %v2257 = vrot.slane %v2256, 1
        %v2258 = vadd.f32 %v2256, %v2257
        %v2259 = vadd.f32 %v2171, %v2185
        %v2260 = vrot.slane %v2259, 4
        %v2261 = vadd.f32 %v2259, %v2260
        %v2262 = vrot.slane %v2261, 2
        %v2263 = vadd.f32 %v2261, %v2262
        %v2264 = vrot.slane %v2263, 1
        %v2265 = vadd.f32 %v2263, %v2264
        %v2266 = vadd.f32 %v2172, %v2186
        %v2267 = vrot.slane %v2266, 4
        %v2268 = vadd.f32 %v2266, %v2267
        %v2269 = vrot.slane %v2268, 2
        %v2270 = vadd.f32 %v2268, %v2269
        %v2271 = vrot.slane %v2270, 1
        %v2272 = vadd.f32 %v2270, %v2271
        %v2273 = vadd.f32 %v2173, %v2187
        %v2274 = vrot.slane %v2273, 4
        %v2275 = vadd.f32 %v2273, %v2274
        %v2276 = vrot.slane %v2275, 2
        %v2277 = vadd.f32 %v2275, %v2276
        %v2278 = vrot.slane %v2277, 1
        %v2279 = vadd.f32 %v2277, %v2278
        %v2280 = vadd.f32 %v2174, %v2188
        %v2281 = vrot.slane %v2280, 4
        %v2282 = vadd.f32 %v2280, %v2281
        %v2283 = vrot.slane %v2282, 2
        %v2284 = vadd.f32 %v2282, %v2283
        %v2285 = vrot.slane %v2284, 1
        %v2286 = vadd.f32 %v2284, %v2285
        %v2289 = vcombine.low %v2195, %v2202
        %v2291 = vunpack.c.l.s4 1966171168
        %v2292 = vunpack.c.0.s8 %v2291
        %v2293 = vlaneseq
        %v2294 = vshrl.u32 %v2293, 7
        %v2295 = vsub.s32 %v2292, %v2294
        %v2296 = vrot.slane %v2289, %v2295
        %v2298 = vunpack.c.l.s4 1966171168
        %v2299 = vunpack.c.0.s8 %v2298
        %v2300 = vlaneseq
        %v2301 = vshrl.u32 %v2300, 7
        %v2302 = vsub.s32 %v2299, %v2301
        %v2303 = vrot.slane %v2296, %v2302
        %s2305 = scalar_lea.vmem [#allocation3], 7
        %2306 = vst.msk [vmem:[%s2305] ss:$8 sm:$0x3] %vm1437, %v2303
        %2307 = vst.msk [vmem:[%s2305] ss:$8 sm:$0x0] %vm1437, %v2303
        %v2310 = vcombine.low %v2209, %v2216
        %v2312 = vunpack.c.l.s4 1966171168
        %v2313 = vunpack.c.0.s8 %v2312
        %v2314 = vlaneseq
        %v2315 = vshrl.u32 %v2314, 7
        %v2316 = vsub.s32 %v2313, %v2315
        %v2317 = vrot.slane %v2310, %v2316
        %v2319 = vunpack.c.l.s4 1966171168
        %v2320 = vunpack.c.0.s8 %v2319
        %v2321 = vlaneseq
        %v2322 = vshrl.u32 %v2321, 7
        %v2323 = vsub.s32 %v2320, %v2322
        %v2324 = vrot.slane %v2317, %v2323
        %s2326 = scalar_lea.vmem [#allocation3], 16
        %2327 = vst.msk [vmem:[%s2326] ss:$8 sm:$0x3] %vm1437, %v2324
        %2328 = vst.msk [vmem:[%s2326] ss:$8 sm:$0x0] %vm1437, %v2324
        %v2331 = vcombine.low %v2223, %v2230
        %v2333 = vunpack.c.l.s4 1966171168
        %v2334 = vunpack.c.0.s8 %v2333
        %v2335 = vlaneseq
        %v2336 = vshrl.u32 %v2335, 7
        %v2337 = vsub.s32 %v2334, %v2336
        %v2338 = vrot.slane %v2331, %v2337
        %v2340 = vunpack.c.l.s4 1966171168
        %v2341 = vunpack.c.0.s8 %v2340
        %v2342 = vlaneseq
        %v2343 = vshrl.u32 %v2342, 7
        %v2344 = vsub.s32 %v2341, %v2343
        %v2345 = vrot.slane %v2338, %v2344
        %s2347 = scalar_lea.vmem [#allocation3], 17
        %2348 = vst.msk [vmem:[%s2347] ss:$8 sm:$0x3] %vm1437, %v2345
        %2349 = vst.msk [vmem:[%s2347] ss:$8 sm:$0x0] %vm1437, %v2345
        %v2352 = vcombine.low %v2237, %v2244
        %v2354 = vunpack.c.l.s4 1966171168
        %v2355 = vunpack.c.0.s8 %v2354
        %v2356 = vlaneseq
        %v2357 = vshrl.u32 %v2356, 7
        %v2358 = vsub.s32 %v2355, %v2357
        %v2359 = vrot.slane %v2352, %v2358
        %v2361 = vunpack.c.l.s4 1966171168
        %v2362 = vunpack.c.0.s8 %v2361
        %v2363 = vlaneseq
        %v2364 = vshrl.u32 %v2363, 7
        %v2365 = vsub.s32 %v2362, %v2364
        %v2366 = vrot.slane %v2359, %v2365
        %s2368 = scalar_lea.vmem [#allocation3], 18
        %2369 = vst.msk [vmem:[%s2368] ss:$8 sm:$0x3] %vm1437, %v2366
        %2370 = vst.msk [vmem:[%s2368] ss:$8 sm:$0x0] %vm1437, %v2366
        %v2373 = vcombine.low %v2251, %v2258
        %v2375 = vunpack.c.l.s4 1966171168
        %v2376 = vunpack.c.0.s8 %v2375
        %v2377 = vlaneseq
        %v2378 = vshrl.u32 %v2377, 7
        %v2379 = vsub.s32 %v2376, %v2378
        %v2380 = vrot.slane %v2373, %v2379
        %v2382 = vunpack.c.l.s4 1966171168
        %v2383 = vunpack.c.0.s8 %v2382
        %v2384 = vlaneseq
        %v2385 = vshrl.u32 %v2384, 7
        %v2386 = vsub.s32 %v2383, %v2385
        %v2387 = vrot.slane %v2380, %v2386
        %s2389 = scalar_lea.vmem [#allocation3], 19
        %2390 = vst.msk [vmem:[%s2389] ss:$8 sm:$0x3] %vm1437, %v2387
        %2391 = vst.msk [vmem:[%s2389] ss:$8 sm:$0x0] %vm1437, %v2387
        %v2394 = vcombine.low %v2265, %v2272
        %v2396 = vunpack.c.l.s4 1966171168
        %v2397 = vunpack.c.0.s8 %v2396
        %v2398 = vlaneseq
        %v2399 = vshrl.u32 %v2398, 7
        %v2400 = vsub.s32 %v2397, %v2399
        %v2401 = vrot.slane %v2394, %v2400
        %v2403 = vunpack.c.l.s4 1966171168
        %v2404 = vunpack.c.0.s8 %v2403
        %v2405 = vlaneseq
        %v2406 = vshrl.u32 %v2405, 7
        %v2407 = vsub.s32 %v2404, %v2406
        %v2408 = vrot.slane %v2401, %v2407
        %s2410 = scalar_lea.vmem [#allocation3], 20
        %2411 = vst.msk [vmem:[%s2410] ss:$8 sm:$0x3] %vm1437, %v2408
        %2412 = vst.msk [vmem:[%s2410] ss:$8 sm:$0x0] %vm1437, %v2408
        %v2415 = vcombine.low %v2279, %v2286
        %v2417 = vunpack.c.l.s4 1966171168
        %v2418 = vunpack.c.0.s8 %v2417
        %v2419 = vlaneseq
        %v2420 = vshrl.u32 %v2419, 7
        %v2421 = vsub.s32 %v2418, %v2420
        %v2422 = vrot.slane %v2415, %v2421
        %v2424 = vunpack.c.l.s4 1966171168
        %v2425 = vunpack.c.0.s8 %v2424
        %v2426 = vlaneseq
        %v2427 = vshrl.u32 %v2426, 7
        %v2428 = vsub.s32 %v2425, %v2427
        %v2429 = vrot.slane %v2422, %v2428
        %s2431 = scalar_lea.vmem [#allocation3], 21
        %2432 = vst.msk [vmem:[%s2431] ss:$8 sm:$0x3] %vm1437, %v2429
        %2433 = vst.msk [vmem:[%s2431] ss:$8 sm:$0x0] %vm1437, %v2429
        %v2434 = vld [vmem:[#allocation2 + $0xe0] sm:$0xff]
        %v2435 = vld [vmem:[#allocation2 + $0xe8] sm:$0xff]
        %v2436 = vld [vmem:[#allocation2 + $0xf0] sm:$0xff]
        %v2437 = vld [vmem:[#allocation2 + $0xf8] sm:$0xff]
        %v2438 = vld [vmem:[#allocation2 + $0x100] sm:$0xff]
        %v2439 = vld [vmem:[#allocation2 + $0x108] sm:$0xff]
        %v2440 = vld [vmem:[#allocation2 + $0x110] sm:$0xff]
        %v2441 = vld [vmem:[#allocation2 + $0x118] sm:$0xff]
        %v2442 = vld [vmem:[#allocation2 + $0x120] sm:$0xff]
        %v2443 = vld [vmem:[#allocation2 + $0x128] sm:$0xff]
        %v2444 = vld [vmem:[#allocation2 + $0x130] sm:$0xff]
        %v2445 = vld [vmem:[#allocation2 + $0x138] sm:$0xff]
        %v2446 = vld [vmem:[#allocation2 + $0x140] sm:$0xff]
        %v2447 = vld [vmem:[#allocation2 + $0x148] sm:$0xff]
        %v2448 = vld [vmem:[#allocation2 + $0x2a0] sm:$0xff]
        %v2449 = vld [vmem:[#allocation2 + $0x2a8] sm:$0xff]
        %v2450 = vld [vmem:[#allocation2 + $0x2b0] sm:$0xff]
        %v2451 = vld [vmem:[#allocation2 + $0x2b8] sm:$0xff]
        %v2452 = vld [vmem:[#allocation2 + $0x2c0] sm:$0xff]
        %v2453 = vld [vmem:[#allocation2 + $0x2c8] sm:$0xff]
        %v2454 = vld [vmem:[#allocation2 + $0x2d0] sm:$0xff]
        %v2455 = vld [vmem:[#allocation2 + $0x2d8] sm:$0xff]
        %v2456 = vld [vmem:[#allocation2 + $0x2e0] sm:$0xff]
        %v2457 = vld [vmem:[#allocation2 + $0x2e8] sm:$0xff]
        %v2458 = vld [vmem:[#allocation2 + $0x2f0] sm:$0xff]
        %v2459 = vld [vmem:[#allocation2 + $0x2f8] sm:$0xff]
        %v2460 = vld [vmem:[#allocation2 + $0x300] sm:$0xff]
        %v2461 = vld [vmem:[#allocation2 + $0x308] sm:$0xff]
        %2462 = vmatprep.subr.mxu0 0.0
        %2463 = vmatpush1.msra.mxu0 0.0
        %2464 = vmatprep.subr.mxu0 0.0
        %2465 = vmatpush1.msra.mxu0 0.0
        %2466 = vmatprep.subr.mxu0 0.0
        %2467 = vmatpush1.msra.mxu0 0.0
        %2468 = vmatprep.subr.mxu0 0.0
        %2469 = vmatpush1.msra.mxu0 0.0
        %2470 = vmatprep.subr.mxu0 0.0
        %2471 = vmatpush1.msra.mxu0 0.0
        %2472 = vmatprep.subr.mxu0 0.0
        %2473 = vmatpush1.msra.mxu0 0.0
        %2474 = vmatprep.subr.mxu0 0.0
        %2475 = vmatpush1.msra.mxu0 0.0
        %2476 = vmatprep.subr.mxu0 0.0
        %2477 = vmatpush1.msra.mxu0 0.0
        %2478 = vmatprep.subr.mxu0 0.0
        %2479 = vmatpush1.msra.mxu0 0.0
        %2480 = vmatprep.subr.mxu0 0.0
        %2481 = vmatpush1.msra.mxu0 0.0
        %2482 = vmatprep.subr.mxu0 0.0
        %2483 = vmatpush1.msra.mxu0 0.0
        %2484 = vmatprep.subr.mxu0 0.0
        %2485 = vmatpush1.msra.mxu0 0.0
        %2486 = vmatprep.subr.mxu0 0.0
        %2487 = vmatpush1.msra.mxu0 0.0
        %2488 = vmatprep.subr.mxu0 0.0
        %2489 = vmatpush1.msra.mxu0 0.0
        %2490 = vmatprep.subr.mxu0 %v2449
        %2491 = vmatpush1.msra.mxu0 %v2448
        %2492 = vmatprep.subr.mxu0 %v2435
        %2493 = vmatpush1.msra.mxu0 %v2434
        %2494 = vmatprep.subr.mxu0 0.0
        %2495 = vmatpush2.msra.mxu0 0.0
        %2496 = vmatprep.subr.mxu0 0.0
        %2497 = vmatpush2.msra.mxu0 0.0
        %2498 = vmatprep.subr.mxu0 0.0
        %2499 = vmatpush2.msra.mxu0 0.0
        %2500 = vmatprep.subr.mxu0 0.0
        %2501 = vmatpush2.msra.mxu0 0.0
        %2502 = vmatprep.subr.mxu0 0.0
        %2503 = vmatpush2.msra.mxu0 0.0
        %2504 = vmatprep.subr.mxu0 0.0
        %2505 = vmatpush2.msra.mxu0 0.0
        %2506 = vmatprep.subr.mxu0 0.0
        %2507 = vmatpush2.msra.mxu0 0.0
        %2508 = vmatprep.subr.mxu0 0.0
        %2509 = vmatpush2.msra.mxu0 0.0
        %2510 = vmatprep.subr.mxu0 0.0
        %2511 = vmatpush2.msra.mxu0 0.0
        %2512 = vmatprep.subr.mxu0 0.0
        %2513 = vmatpush2.msra.mxu0 0.0
        %2514 = vmatprep.subr.mxu0 0.0
        %2515 = vmatpush2.msra.mxu0 0.0
        %2516 = vmatprep.subr.mxu0 0.0
        %2517 = vmatpush2.msra.mxu0 0.0
        %2518 = vmatprep.subr.mxu0 0.0
        %2519 = vmatpush2.msra.mxu0 0.0
        %2520 = vmatprep.subr.mxu0 0.0
        %2521 = vmatpush2.msra.mxu0 0.0
        %2522 = vmatprep.subr.mxu0 0.0
        %2523 = vmatpush2.msra.mxu0 0.0
        %2524 = vmatprep.subr.mxu0 0.0
        %2525 = vmatpush2.msra.mxu0 0.0
        %2526 = vmatprep.mubr.f32.mxu0 0.0
        %2527 = vmatmul.mubr.f32.gmra.mxu0 %v708
        %v2528 = vpop.f32.mrf.mxu0
        %v2529 = vadd.f32 %v699, %v2528
        %v2530 = vpop.f32.mrf.mxu0
        %v2531 = vadd.f32 %v699, %v2530
        %2532 = vmatprep.mubr.f32.mxu0 0.0
        %2533 = vmatmul.mubr.f32.gmra.mxu0 %v711
        %v2534 = vpop.f32.mrf.mxu0
        %v2535 = vadd.f32 %v704, %v2534
        %v2536 = vpop.f32.mrf.mxu0
        %v2537 = vadd.f32 %v704, %v2536
        %2538 = vdwg.mxu0
        %2539 = vmatprep.subr.mxu0 0.0
        %2540 = vmatpush1.msra.mxu0 0.0
        %2541 = vmatprep.subr.mxu0 0.0
        %2542 = vmatpush1.msra.mxu0 0.0
        %2543 = vmatprep.subr.mxu0 0.0
        %2544 = vmatpush1.msra.mxu0 0.0
        %2545 = vmatprep.subr.mxu0 0.0
        %2546 = vmatpush1.msra.mxu0 0.0
        %2547 = vmatprep.subr.mxu0 0.0
        %2548 = vmatpush1.msra.mxu0 0.0
        %2549 = vmatprep.subr.mxu0 0.0
        %2550 = vmatpush1.msra.mxu0 0.0
        %2551 = vmatprep.subr.mxu0 0.0
        %2552 = vmatpush1.msra.mxu0 0.0
        %2553 = vmatprep.subr.mxu0 0.0
        %2554 = vmatpush1.msra.mxu0 0.0
        %2555 = vmatprep.subr.mxu0 0.0
        %2556 = vmatpush1.msra.mxu0 0.0
        %2557 = vmatprep.subr.mxu0 0.0
        %2558 = vmatpush1.msra.mxu0 0.0
        %2559 = vmatprep.subr.mxu0 0.0
        %2560 = vmatpush1.msra.mxu0 0.0
        %2561 = vmatprep.subr.mxu0 0.0
        %2562 = vmatpush1.msra.mxu0 0.0
        %2563 = vmatprep.subr.mxu0 0.0
        %2564 = vmatpush1.msra.mxu0 0.0
        %2565 = vmatprep.subr.mxu0 0.0
        %2566 = vmatpush1.msra.mxu0 0.0
        %2567 = vmatprep.subr.mxu0 %v2451
        %2568 = vmatpush1.msra.mxu0 %v2450
        %2569 = vmatprep.subr.mxu0 %v2437
        %2570 = vmatpush1.msra.mxu0 %v2436
        %2571 = vmatprep.subr.mxu0 0.0
        %2572 = vmatpush2.msra.mxu0 0.0
        %2573 = vmatprep.subr.mxu0 0.0
        %2574 = vmatpush2.msra.mxu0 0.0
        %2575 = vmatprep.subr.mxu0 0.0
        %2576 = vmatpush2.msra.mxu0 0.0
        %2577 = vmatprep.subr.mxu0 0.0
        %2578 = vmatpush2.msra.mxu0 0.0
        %2579 = vmatprep.subr.mxu0 0.0
        %2580 = vmatpush2.msra.mxu0 0.0
        %2581 = vmatprep.subr.mxu0 0.0
        %2582 = vmatpush2.msra.mxu0 0.0
        %2583 = vmatprep.subr.mxu0 0.0
        %2584 = vmatpush2.msra.mxu0 0.0
        %2585 = vmatprep.subr.mxu0 0.0
        %2586 = vmatpush2.msra.mxu0 0.0
        %2587 = vmatprep.subr.mxu0 0.0
        %2588 = vmatpush2.msra.mxu0 0.0
        %2589 = vmatprep.subr.mxu0 0.0
        %2590 = vmatpush2.msra.mxu0 0.0
        %2591 = vmatprep.subr.mxu0 0.0
        %2592 = vmatpush2.msra.mxu0 0.0
        %2593 = vmatprep.subr.mxu0 0.0
        %2594 = vmatpush2.msra.mxu0 0.0
        %2595 = vmatprep.subr.mxu0 0.0
        %2596 = vmatpush2.msra.mxu0 0.0
        %2597 = vmatprep.subr.mxu0 0.0
        %2598 = vmatpush2.msra.mxu0 0.0
        %2599 = vmatprep.subr.mxu0 0.0
        %2600 = vmatpush2.msra.mxu0 0.0
        %2601 = vmatprep.subr.mxu0 0.0
        %2602 = vmatpush2.msra.mxu0 0.0
        %2603 = vmatprep.mubr.f32.mxu0 0.0
        %2604 = vmatmul.mubr.f32.gmra.mxu0 %v708
        %v2605 = vpop.f32.mrf.mxu0
        %v2606 = vadd.f32 %v699, %v2605
        %v2607 = vpop.f32.mrf.mxu0
        %v2608 = vadd.f32 %v699, %v2607
        %2609 = vmatprep.mubr.f32.mxu0 0.0
        %2610 = vmatmul.mubr.f32.gmra.mxu0 %v711
        %v2611 = vpop.f32.mrf.mxu0
        %v2612 = vadd.f32 %v704, %v2611
        %v2613 = vpop.f32.mrf.mxu0
        %v2614 = vadd.f32 %v704, %v2613
        %2615 = vdwg.mxu0
        %2616 = vmatprep.subr.mxu0 0.0
        %2617 = vmatpush1.msra.mxu0 0.0
        %2618 = vmatprep.subr.mxu0 0.0
        %2619 = vmatpush1.msra.mxu0 0.0
        %2620 = vmatprep.subr.mxu0 0.0
        %2621 = vmatpush1.msra.mxu0 0.0
        %2622 = vmatprep.subr.mxu0 0.0
        %2623 = vmatpush1.msra.mxu0 0.0
        %2624 = vmatprep.subr.mxu0 0.0
        %2625 = vmatpush1.msra.mxu0 0.0
        %2626 = vmatprep.subr.mxu0 0.0
        %2627 = vmatpush1.msra.mxu0 0.0
        %2628 = vmatprep.subr.mxu0 0.0
        %2629 = vmatpush1.msra.mxu0 0.0
        %2630 = vmatprep.subr.mxu0 0.0
        %2631 = vmatpush1.msra.mxu0 0.0
        %2632 = vmatprep.subr.mxu0 0.0
        %2633 = vmatpush1.msra.mxu0 0.0
        %2634 = vmatprep.subr.mxu0 0.0
        %2635 = vmatpush1.msra.mxu0 0.0
        %2636 = vmatprep.subr.mxu0 0.0
        %2637 = vmatpush1.msra.mxu0 0.0
        %2638 = vmatprep.subr.mxu0 0.0
        %2639 = vmatpush1.msra.mxu0 0.0
        %2640 = vmatprep.subr.mxu0 0.0
        %2641 = vmatpush1.msra.mxu0 0.0
        %2642 = vmatprep.subr.mxu0 0.0
        %2643 = vmatpush1.msra.mxu0 0.0
        %2644 = vmatprep.subr.mxu0 %v2453
        %2645 = vmatpush1.msra.mxu0 %v2452
        %2646 = vmatprep.subr.mxu0 %v2439
        %2647 = vmatpush1.msra.mxu0 %v2438
        %2648 = vmatprep.subr.mxu0 0.0
        %2649 = vmatpush2.msra.mxu0 0.0
        %2650 = vmatprep.subr.mxu0 0.0
        %2651 = vmatpush2.msra.mxu0 0.0
        %2652 = vmatprep.subr.mxu0 0.0
        %2653 = vmatpush2.msra.mxu0 0.0
        %2654 = vmatprep.subr.mxu0 0.0
        %2655 = vmatpush2.msra.mxu0 0.0
        %2656 = vmatprep.subr.mxu0 0.0
        %2657 = vmatpush2.msra.mxu0 0.0
        %2658 = vmatprep.subr.mxu0 0.0
        %2659 = vmatpush2.msra.mxu0 0.0
        %2660 = vmatprep.subr.mxu0 0.0
        %2661 = vmatpush2.msra.mxu0 0.0
        %2662 = vmatprep.subr.mxu0 0.0
        %2663 = vmatpush2.msra.mxu0 0.0
        %2664 = vmatprep.subr.mxu0 0.0
        %2665 = vmatpush2.msra.mxu0 0.0
        %2666 = vmatprep.subr.mxu0 0.0
        %2667 = vmatpush2.msra.mxu0 0.0
        %2668 = vmatprep.subr.mxu0 0.0
        %2669 = vmatpush2.msra.mxu0 0.0
        %2670 = vmatprep.subr.mxu0 0.0
        %2671 = vmatpush2.msra.mxu0 0.0
        %2672 = vmatprep.subr.mxu0 0.0
        %2673 = vmatpush2.msra.mxu0 0.0
        %2674 = vmatprep.subr.mxu0 0.0
        %2675 = vmatpush2.msra.mxu0 0.0
        %2676 = vmatprep.subr.mxu0 0.0
        %2677 = vmatpush2.msra.mxu0 0.0
        %2678 = vmatprep.subr.mxu0 0.0
        %2679 = vmatpush2.msra.mxu0 0.0
        %2680 = vmatprep.mubr.f32.mxu0 0.0
        %2681 = vmatmul.mubr.f32.gmra.mxu0 %v708
        %v2682 = vpop.f32.mrf.mxu0
        %v2683 = vadd.f32 %v699, %v2682
        %v2684 = vpop.f32.mrf.mxu0
        %v2685 = vadd.f32 %v699, %v2684
        %2686 = vmatprep.mubr.f32.mxu0 0.0
        %2687 = vmatmul.mubr.f32.gmra.mxu0 %v711
        %v2688 = vpop.f32.mrf.mxu0
        %v2689 = vadd.f32 %v704, %v2688
        %v2690 = vpop.f32.mrf.mxu0
        %v2691 = vadd.f32 %v704, %v2690
        %2692 = vdwg.mxu0
        %2693 = vmatprep.subr.mxu0 0.0
        %2694 = vmatpush1.msra.mxu0 0.0
        %2695 = vmatprep.subr.mxu0 0.0
        %2696 = vmatpush1.msra.mxu0 0.0
        %2697 = vmatprep.subr.mxu0 0.0
        %2698 = vmatpush1.msra.mxu0 0.0
        %2699 = vmatprep.subr.mxu0 0.0
        %2700 = vmatpush1.msra.mxu0 0.0
        %2701 = vmatprep.subr.mxu0 0.0
        %2702 = vmatpush1.msra.mxu0 0.0
        %2703 = vmatprep.subr.mxu0 0.0
        %2704 = vmatpush1.msra.mxu0 0.0
        %2705 = vmatprep.subr.mxu0 0.0
        %2706 = vmatpush1.msra.mxu0 0.0
        %2707 = vmatprep.subr.mxu0 0.0
        %2708 = vmatpush1.msra.mxu0 0.0
        %2709 = vmatprep.subr.mxu0 0.0
        %2710 = vmatpush1.msra.mxu0 0.0
        %2711 = vmatprep.subr.mxu0 0.0
        %2712 = vmatpush1.msra.mxu0 0.0
        %2713 = vmatprep.subr.mxu0 0.0
        %2714 = vmatpush1.msra.mxu0 0.0
        %2715 = vmatprep.subr.mxu0 0.0
        %2716 = vmatpush1.msra.mxu0 0.0
        %2717 = vmatprep.subr.mxu0 0.0
        %2718 = vmatpush1.msra.mxu0 0.0
        %2719 = vmatprep.subr.mxu0 0.0
        %2720 = vmatpush1.msra.mxu0 0.0
        %2721 = vmatprep.subr.mxu0 %v2455
        %2722 = vmatpush1.msra.mxu0 %v2454
        %2723 = vmatprep.subr.mxu0 %v2441
        %2724 = vmatpush1.msra.mxu0 %v2440
        %2725 = vmatprep.subr.mxu0 0.0
        %2726 = vmatpush2.msra.mxu0 0.0
        %2727 = vmatprep.subr.mxu0 0.0
        %2728 = vmatpush2.msra.mxu0 0.0
        %2729 = vmatprep.subr.mxu0 0.0
        %2730 = vmatpush2.msra.mxu0 0.0
        %2731 = vmatprep.subr.mxu0 0.0
        %2732 = vmatpush2.msra.mxu0 0.0
        %2733 = vmatprep.subr.mxu0 0.0
        %2734 = vmatpush2.msra.mxu0 0.0
        %2735 = vmatprep.subr.mxu0 0.0
        %2736 = vmatpush2.msra.mxu0 0.0
        %2737 = vmatprep.subr.mxu0 0.0
        %2738 = vmatpush2.msra.mxu0 0.0
        %2739 = vmatprep.subr.mxu0 0.0
        %2740 = vmatpush2.msra.mxu0 0.0
        %2741 = vmatprep.subr.mxu0 0.0
        %2742 = vmatpush2.msra.mxu0 0.0
        %2743 = vmatprep.subr.mxu0 0.0
        %2744 = vmatpush2.msra.mxu0 0.0
        %2745 = vmatprep.subr.mxu0 0.0
        %2746 = vmatpush2.msra.mxu0 0.0
        %2747 = vmatprep.subr.mxu0 0.0
        %2748 = vmatpush2.msra.mxu0 0.0
        %2749 = vmatprep.subr.mxu0 0.0
        %2750 = vmatpush2.msra.mxu0 0.0
        %2751 = vmatprep.subr.mxu0 0.0
        %2752 = vmatpush2.msra.mxu0 0.0
        %2753 = vmatprep.subr.mxu0 0.0
        %2754 = vmatpush2.msra.mxu0 0.0
        %2755 = vmatprep.subr.mxu0 0.0
        %2756 = vmatpush2.msra.mxu0 0.0
        %2757 = vmatprep.mubr.f32.mxu0 0.0
        %2758 = vmatmul.mubr.f32.gmra.mxu0 %v708
        %v2759 = vpop.f32.mrf.mxu0
        %v2760 = vadd.f32 %v699, %v2759
        %v2761 = vpop.f32.mrf.mxu0
        %v2762 = vadd.f32 %v699, %v2761
        %2763 = vmatprep.mubr.f32.mxu0 0.0
        %2764 = vmatmul.mubr.f32.gmra.mxu0 %v711
        %v2765 = vpop.f32.mrf.mxu0
        %v2766 = vadd.f32 %v704, %v2765
        %v2767 = vpop.f32.mrf.mxu0
        %v2768 = vadd.f32 %v704, %v2767
        %2769 = vdwg.mxu0
        %2770 = vmatprep.subr.mxu0 0.0
        %2771 = vmatpush1.msra.mxu0 0.0
        %2772 = vmatprep.subr.mxu0 0.0
        %2773 = vmatpush1.msra.mxu0 0.0
        %2774 = vmatprep.subr.mxu0 0.0
        %2775 = vmatpush1.msra.mxu0 0.0
        %2776 = vmatprep.subr.mxu0 0.0
        %2777 = vmatpush1.msra.mxu0 0.0
        %2778 = vmatprep.subr.mxu0 0.0
        %2779 = vmatpush1.msra.mxu0 0.0
        %2780 = vmatprep.subr.mxu0 0.0
        %2781 = vmatpush1.msra.mxu0 0.0
        %2782 = vmatprep.subr.mxu0 0.0
        %2783 = vmatpush1.msra.mxu0 0.0
        %2784 = vmatprep.subr.mxu0 0.0
        %2785 = vmatpush1.msra.mxu0 0.0
        %2786 = vmatprep.subr.mxu0 0.0
        %2787 = vmatpush1.msra.mxu0 0.0
        %2788 = vmatprep.subr.mxu0 0.0
        %2789 = vmatpush1.msra.mxu0 0.0
        %2790 = vmatprep.subr.mxu0 0.0
        %2791 = vmatpush1.msra.mxu0 0.0
        %2792 = vmatprep.subr.mxu0 0.0
        %2793 = vmatpush1.msra.mxu0 0.0
        %2794 = vmatprep.subr.mxu0 0.0
        %2795 = vmatpush1.msra.mxu0 0.0
        %2796 = vmatprep.subr.mxu0 0.0
        %2797 = vmatpush1.msra.mxu0 0.0
        %2798 = vmatprep.subr.mxu0 %v2457
        %2799 = vmatpush1.msra.mxu0 %v2456
        %2800 = vmatprep.subr.mxu0 %v2443
        %2801 = vmatpush1.msra.mxu0 %v2442
        %2802 = vmatprep.subr.mxu0 0.0
        %2803 = vmatpush2.msra.mxu0 0.0
        %2804 = vmatprep.subr.mxu0 0.0
        %2805 = vmatpush2.msra.mxu0 0.0
        %2806 = vmatprep.subr.mxu0 0.0
        %2807 = vmatpush2.msra.mxu0 0.0
        %2808 = vmatprep.subr.mxu0 0.0
        %2809 = vmatpush2.msra.mxu0 0.0
        %2810 = vmatprep.subr.mxu0 0.0
        %2811 = vmatpush2.msra.mxu0 0.0
        %2812 = vmatprep.subr.mxu0 0.0
        %2813 = vmatpush2.msra.mxu0 0.0
        %2814 = vmatprep.subr.mxu0 0.0
        %2815 = vmatpush2.msra.mxu0 0.0
        %2816 = vmatprep.subr.mxu0 0.0
        %2817 = vmatpush2.msra.mxu0 0.0
        %2818 = vmatprep.subr.mxu0 0.0
        %2819 = vmatpush2.msra.mxu0 0.0
        %2820 = vmatprep.subr.mxu0 0.0
        %2821 = vmatpush2.msra.mxu0 0.0
        %2822 = vmatprep.subr.mxu0 0.0
        %2823 = vmatpush2.msra.mxu0 0.0
        %2824 = vmatprep.subr.mxu0 0.0
        %2825 = vmatpush2.msra.mxu0 0.0
        %2826 = vmatprep.subr.mxu0 0.0
        %2827 = vmatpush2.msra.mxu0 0.0
        %2828 = vmatprep.subr.mxu0 0.0
        %2829 = vmatpush2.msra.mxu0 0.0
        %2830 = vmatprep.subr.mxu0 0.0
        %2831 = vmatpush2.msra.mxu0 0.0
        %2832 = vmatprep.subr.mxu0 0.0
        %2833 = vmatpush2.msra.mxu0 0.0
        %2834 = vmatprep.mubr.f32.mxu0 0.0
        %2835 = vmatmul.mubr.f32.gmra.mxu0 %v708
        %v2836 = vpop.f32.mrf.mxu0
        %v2837 = vadd.f32 %v699, %v2836
        %v2838 = vpop.f32.mrf.mxu0
        %v2839 = vadd.f32 %v699, %v2838
        %2840 = vmatprep.mubr.f32.mxu0 0.0
        %2841 = vmatmul.mubr.f32.gmra.mxu0 %v711
        %v2842 = vpop.f32.mrf.mxu0
        %v2843 = vadd.f32 %v704, %v2842
        %v2844 = vpop.f32.mrf.mxu0
        %v2845 = vadd.f32 %v704, %v2844
        %2846 = vdwg.mxu0
        %2847 = vmatprep.subr.mxu0 0.0
        %2848 = vmatpush1.msra.mxu0 0.0
        %2849 = vmatprep.subr.mxu0 0.0
        %2850 = vmatpush1.msra.mxu0 0.0
        %2851 = vmatprep.subr.mxu0 0.0
        %2852 = vmatpush1.msra.mxu0 0.0
        %2853 = vmatprep.subr.mxu0 0.0
        %2854 = vmatpush1.msra.mxu0 0.0
        %2855 = vmatprep.subr.mxu0 0.0
        %2856 = vmatpush1.msra.mxu0 0.0
        %2857 = vmatprep.subr.mxu0 0.0
        %2858 = vmatpush1.msra.mxu0 0.0
        %2859 = vmatprep.subr.mxu0 0.0
        %2860 = vmatpush1.msra.mxu0 0.0
        %2861 = vmatprep.subr.mxu0 0.0
        %2862 = vmatpush1.msra.mxu0 0.0
        %2863 = vmatprep.subr.mxu0 0.0
        %2864 = vmatpush1.msra.mxu0 0.0
        %2865 = vmatprep.subr.mxu0 0.0
        %2866 = vmatpush1.msra.mxu0 0.0
        %2867 = vmatprep.subr.mxu0 0.0
        %2868 = vmatpush1.msra.mxu0 0.0
        %2869 = vmatprep.subr.mxu0 0.0
        %2870 = vmatpush1.msra.mxu0 0.0
        %2871 = vmatprep.subr.mxu0 0.0
        %2872 = vmatpush1.msra.mxu0 0.0
        %2873 = vmatprep.subr.mxu0 0.0
        %2874 = vmatpush1.msra.mxu0 0.0
        %2875 = vmatprep.subr.mxu0 %v2459
        %2876 = vmatpush1.msra.mxu0 %v2458
        %2877 = vmatprep.subr.mxu0 %v2445
        %2878 = vmatpush1.msra.mxu0 %v2444
        %2879 = vmatprep.subr.mxu0 0.0
        %2880 = vmatpush2.msra.mxu0 0.0
        %2881 = vmatprep.subr.mxu0 0.0
        %2882 = vmatpush2.msra.mxu0 0.0
        %2883 = vmatprep.subr.mxu0 0.0
        %2884 = vmatpush2.msra.mxu0 0.0
        %2885 = vmatprep.subr.mxu0 0.0
        %2886 = vmatpush2.msra.mxu0 0.0
        %2887 = vmatprep.subr.mxu0 0.0
        %2888 = vmatpush2.msra.mxu0 0.0
        %2889 = vmatprep.subr.mxu0 0.0
        %2890 = vmatpush2.msra.mxu0 0.0
        %2891 = vmatprep.subr.mxu0 0.0
        %2892 = vmatpush2.msra.mxu0 0.0
        %2893 = vmatprep.subr.mxu0 0.0
        %2894 = vmatpush2.msra.mxu0 0.0
        %2895 = vmatprep.subr.mxu0 0.0
        %2896 = vmatpush2.msra.mxu0 0.0
        %2897 = vmatprep.subr.mxu0 0.0
        %2898 = vmatpush2.msra.mxu0 0.0
        %2899 = vmatprep.subr.mxu0 0.0
        %2900 = vmatpush2.msra.mxu0 0.0
        %2901 = vmatprep.subr.mxu0 0.0
        %2902 = vmatpush2.msra.mxu0 0.0
        %2903 = vmatprep.subr.mxu0 0.0
        %2904 = vmatpush2.msra.mxu0 0.0
        %2905 = vmatprep.subr.mxu0 0.0
        %2906 = vmatpush2.msra.mxu0 0.0
        %2907 = vmatprep.subr.mxu0 0.0
        %2908 = vmatpush2.msra.mxu0 0.0
        %2909 = vmatprep.subr.mxu0 0.0
        %2910 = vmatpush2.msra.mxu0 0.0
        %2911 = vmatprep.mubr.f32.mxu0 0.0
        %2912 = vmatmul.mubr.f32.gmra.mxu0 %v708
        %v2913 = vpop.f32.mrf.mxu0
        %v2914 = vadd.f32 %v699, %v2913
        %v2915 = vpop.f32.mrf.mxu0
        %v2916 = vadd.f32 %v699, %v2915
        %2917 = vmatprep.mubr.f32.mxu0 0.0
        %2918 = vmatmul.mubr.f32.gmra.mxu0 %v711
        %v2919 = vpop.f32.mrf.mxu0
        %v2920 = vadd.f32 %v704, %v2919
        %v2921 = vpop.f32.mrf.mxu0
        %v2922 = vadd.f32 %v704, %v2921
        %2923 = vdwg.mxu0
        %2924 = vmatprep.subr.mxu0 0.0
        %2925 = vmatpush1.msra.mxu0 0.0
        %2926 = vmatprep.subr.mxu0 0.0
        %2927 = vmatpush1.msra.mxu0 0.0
        %2928 = vmatprep.subr.mxu0 0.0
        %2929 = vmatpush1.msra.mxu0 0.0
        %2930 = vmatprep.subr.mxu0 0.0
        %2931 = vmatpush1.msra.mxu0 0.0
        %2932 = vmatprep.subr.mxu0 0.0
        %2933 = vmatpush1.msra.mxu0 0.0
        %2934 = vmatprep.subr.mxu0 0.0
        %2935 = vmatpush1.msra.mxu0 0.0
        %2936 = vmatprep.subr.mxu0 0.0
        %2937 = vmatpush1.msra.mxu0 0.0
        %2938 = vmatprep.subr.mxu0 0.0
        %2939 = vmatpush1.msra.mxu0 0.0
        %2940 = vmatprep.subr.mxu0 0.0
        %2941 = vmatpush1.msra.mxu0 0.0
        %2942 = vmatprep.subr.mxu0 0.0
        %2943 = vmatpush1.msra.mxu0 0.0
        %2944 = vmatprep.subr.mxu0 0.0
        %2945 = vmatpush1.msra.mxu0 0.0
        %2946 = vmatprep.subr.mxu0 0.0
        %2947 = vmatpush1.msra.mxu0 0.0
        %2948 = vmatprep.subr.mxu0 0.0
        %2949 = vmatpush1.msra.mxu0 0.0
        %2950 = vmatprep.subr.mxu0 0.0
        %2951 = vmatpush1.msra.mxu0 0.0
        %2952 = vmatprep.subr.mxu0 %v2461
        %2953 = vmatpush1.msra.mxu0 %v2460
        %2954 = vmatprep.subr.mxu0 %v2447
        %2955 = vmatpush1.msra.mxu0 %v2446
        %2956 = vmatprep.subr.mxu0 0.0
        %2957 = vmatpush2.msra.mxu0 0.0
        %2958 = vmatprep.subr.mxu0 0.0
        %2959 = vmatpush2.msra.mxu0 0.0
        %2960 = vmatprep.subr.mxu0 0.0
        %2961 = vmatpush2.msra.mxu0 0.0
        %2962 = vmatprep.subr.mxu0 0.0
        %2963 = vmatpush2.msra.mxu0 0.0
        %2964 = vmatprep.subr.mxu0 0.0
        %2965 = vmatpush2.msra.mxu0 0.0
        %2966 = vmatprep.subr.mxu0 0.0
        %2967 = vmatpush2.msra.mxu0 0.0
        %2968 = vmatprep.subr.mxu0 0.0
        %2969 = vmatpush2.msra.mxu0 0.0
        %2970 = vmatprep.subr.mxu0 0.0
        %2971 = vmatpush2.msra.mxu0 0.0
        %2972 = vmatprep.subr.mxu0 0.0
        %2973 = vmatpush2.msra.mxu0 0.0
        %2974 = vmatprep.subr.mxu0 0.0
        %2975 = vmatpush2.msra.mxu0 0.0
        %2976 = vmatprep.subr.mxu0 0.0
        %2977 = vmatpush2.msra.mxu0 0.0
        %2978 = vmatprep.subr.mxu0 0.0
        %2979 = vmatpush2.msra.mxu0 0.0
        %2980 = vmatprep.subr.mxu0 0.0
        %2981 = vmatpush2.msra.mxu0 0.0
        %2982 = vmatprep.subr.mxu0 0.0
        %2983 = vmatpush2.msra.mxu0 0.0
        %2984 = vmatprep.subr.mxu0 0.0
        %2985 = vmatpush2.msra.mxu0 0.0
        %2986 = vmatprep.subr.mxu0 0.0
        %2987 = vmatpush2.msra.mxu0 0.0
        %2988 = vmatprep.mubr.f32.mxu0 0.0
        %2989 = vmatmul.mubr.f32.gmra.mxu0 %v708
        %v2990 = vpop.f32.mrf.mxu0
        %v2991 = vadd.f32 %v699, %v2990
        %v2992 = vpop.f32.mrf.mxu0
        %v2993 = vadd.f32 %v699, %v2992
        %2994 = vmatprep.mubr.f32.mxu0 0.0
        %2995 = vmatmul.mubr.f32.gmra.mxu0 %v711
        %v2996 = vpop.f32.mrf.mxu0
        %v2997 = vadd.f32 %v704, %v2996
        %v2998 = vpop.f32.mrf.mxu0
        %v2999 = vadd.f32 %v704, %v2998
        %3000 = vdwg.mxu0
        %v3001 = vmax.f32 %v2529, 0.0
        %v3002 = vmax.f32 %v2531, 0.0
        %v3003 = vmax.f32 %v2606, 0.0
        %v3004 = vmax.f32 %v2608, 0.0
        %v3005 = vmax.f32 %v2683, 0.0
        %v3006 = vmax.f32 %v2685, 0.0
        %v3007 = vmax.f32 %v2760, 0.0
        %v3008 = vmax.f32 %v2762, 0.0
        %v3009 = vmax.f32 %v2837, 0.0
        %v3010 = vmax.f32 %v2839, 0.0
        %v3011 = vmax.f32 %v2914, 0.0
        %v3012 = vmax.f32 %v2916, 0.0
        %v3013 = vmax.f32 %v2991, 0.0
        %v3014 = vmax.f32 %v2993, 0.0
        %v3015 = vmax.f32 %v2535, 0.0
        %v3016 = vmax.f32 %v2537, 0.0
        %v3017 = vmax.f32 %v2612, 0.0
        %v3018 = vmax.f32 %v2614, 0.0
        %v3019 = vmax.f32 %v2689, 0.0
        %v3020 = vmax.f32 %v2691, 0.0
        %v3021 = vmax.f32 %v2766, 0.0
        %v3022 = vmax.f32 %v2768, 0.0
        %v3023 = vmax.f32 %v2843, 0.0
        %v3024 = vmax.f32 %v2845, 0.0
        %v3025 = vmax.f32 %v2920, 0.0
        %v3026 = vmax.f32 %v2922, 0.0
        %v3027 = vmax.f32 %v2997, 0.0
        %v3028 = vmax.f32 %v2999, 0.0
        %v3029 = vmul.f32 %v3001, %v1283
        %v3030 = vmul.f32 %v3002, %v1283
        %v3031 = vmul.f32 %v3003, %v1283
        %v3032 = vmul.f32 %v3004, %v1283
        %v3033 = vmul.f32 %v3005, %v1283
        %v3034 = vmul.f32 %v3006, %v1283
        %v3035 = vmul.f32 %v3007, %v1283
        %v3036 = vmul.f32 %v3008, %v1283
        %v3037 = vmul.f32 %v3009, %v1283
        %v3038 = vmul.f32 %v3010, %v1283
        %v3039 = vmul.f32 %v3011, %v1283
        %v3040 = vmul.f32 %v3012, %v1283
        %v3041 = vmul.f32 %v3013, %v1283
        %v3042 = vmul.f32 %v3014, %v1283
        %v3043 = vmul.f32 %v3015, %v1288
        %v3044 = vmul.f32 %v3016, %v1288
        %v3045 = vmul.f32 %v3017, %v1288
        %v3046 = vmul.f32 %v3018, %v1288
        %v3047 = vmul.f32 %v3019, %v1288
        %v3048 = vmul.f32 %v3020, %v1288
        %v3049 = vmul.f32 %v3021, %v1288
        %v3050 = vmul.f32 %v3022, %v1288
        %v3051 = vmul.f32 %v3023, %v1288
        %v3052 = vmul.f32 %v3024, %v1288
        %v3053 = vmul.f32 %v3025, %v1288
        %v3054 = vmul.f32 %v3026, %v1288
        %v3055 = vmul.f32 %v3027, %v1288
        %v3056 = vmul.f32 %v3028, %v1288
        %v3057 = vadd.f32 %v3029, %v3043
        %v3058 = vrot.slane %v3057, 4
        %v3059 = vadd.f32 %v3057, %v3058
        %v3060 = vrot.slane %v3059, 2
        %v3061 = vadd.f32 %v3059, %v3060
        %v3062 = vrot.slane %v3061, 1
        %v3063 = vadd.f32 %v3061, %v3062
        %v3064 = vadd.f32 %v3030, %v3044
        %v3065 = vrot.slane %v3064, 4
        %v3066 = vadd.f32 %v3064, %v3065
        %v3067 = vrot.slane %v3066, 2
        %v3068 = vadd.f32 %v3066, %v3067
        %v3069 = vrot.slane %v3068, 1
        %v3070 = vadd.f32 %v3068, %v3069
        %v3071 = vadd.f32 %v3031, %v3045
        %v3072 = vrot.slane %v3071, 4
        %v3073 = vadd.f32 %v3071, %v3072
        %v3074 = vrot.slane %v3073, 2
        %v3075 = vadd.f32 %v3073, %v3074
        %v3076 = vrot.slane %v3075, 1
        %v3077 = vadd.f32 %v3075, %v3076
        %v3078 = vadd.f32 %v3032, %v3046
        %v3079 = vrot.slane %v3078, 4
        %v3080 = vadd.f32 %v3078, %v3079
        %v3081 = vrot.slane %v3080, 2
        %v3082 = vadd.f32 %v3080, %v3081
        %v3083 = vrot.slane %v3082, 1
        %v3084 = vadd.f32 %v3082, %v3083
        %v3085 = vadd.f32 %v3033, %v3047
        %v3086 = vrot.slane %v3085, 4
        %v3087 = vadd.f32 %v3085, %v3086
        %v3088 = vrot.slane %v3087, 2
        %v3089 = vadd.f32 %v3087, %v3088
        %v3090 = vrot.slane %v3089, 1
        %v3091 = vadd.f32 %v3089, %v3090
        %v3092 = vadd.f32 %v3034, %v3048
        %v3093 = vrot.slane %v3092, 4
        %v3094 = vadd.f32 %v3092, %v3093
        %v3095 = vrot.slane %v3094, 2
        %v3096 = vadd.f32 %v3094, %v3095
        %v3097 = vrot.slane %v3096, 1
        %v3098 = vadd.f32 %v3096, %v3097
        %v3099 = vadd.f32 %v3035, %v3049
        %v3100 = vrot.slane %v3099, 4
        %v3101 = vadd.f32 %v3099, %v3100
        %v3102 = vrot.slane %v3101, 2
        %v3103 = vadd.f32 %v3101, %v3102
        %v3104 = vrot.slane %v3103, 1
        %v3105 = vadd.f32 %v3103, %v3104
        %v3106 = vadd.f32 %v3036, %v3050
        %v3107 = vrot.slane %v3106, 4
        %v3108 = vadd.f32 %v3106, %v3107
        %v3109 = vrot.slane %v3108, 2
        %v3110 = vadd.f32 %v3108, %v3109
        %v3111 = vrot.slane %v3110, 1
        %v3112 = vadd.f32 %v3110, %v3111
        %v3113 = vadd.f32 %v3037, %v3051
        %v3114 = vrot.slane %v3113, 4
        %v3115 = vadd.f32 %v3113, %v3114
        %v3116 = vrot.slane %v3115, 2
        %v3117 = vadd.f32 %v3115, %v3116
        %v3118 = vrot.slane %v3117, 1
        %v3119 = vadd.f32 %v3117, %v3118
        %v3120 = vadd.f32 %v3038, %v3052
        %v3121 = vrot.slane %v3120, 4
        %v3122 = vadd.f32 %v3120, %v3121
        %v3123 = vrot.slane %v3122, 2
        %v3124 = vadd.f32 %v3122, %v3123
        %v3125 = vrot.slane %v3124, 1
        %v3126 = vadd.f32 %v3124, %v3125
        %v3127 = vadd.f32 %v3039, %v3053
        %v3128 = vrot.slane %v3127, 4
        %v3129 = vadd.f32 %v3127, %v3128
        %v3130 = vrot.slane %v3129, 2
        %v3131 = vadd.f32 %v3129, %v3130
        %v3132 = vrot.slane %v3131, 1
        %v3133 = vadd.f32 %v3131, %v3132
        %v3134 = vadd.f32 %v3040, %v3054
        %v3135 = vrot.slane %v3134, 4
        %v3136 = vadd.f32 %v3134, %v3135
        %v3137 = vrot.slane %v3136, 2
        %v3138 = vadd.f32 %v3136, %v3137
        %v3139 = vrot.slane %v3138, 1
        %v3140 = vadd.f32 %v3138, %v3139
        %v3141 = vadd.f32 %v3041, %v3055
        %v3142 = vrot.slane %v3141, 4
        %v3143 = vadd.f32 %v3141, %v3142
        %v3144 = vrot.slane %v3143, 2
        %v3145 = vadd.f32 %v3143, %v3144
        %v3146 = vrot.slane %v3145, 1
        %v3147 = vadd.f32 %v3145, %v3146
        %v3148 = vadd.f32 %v3042, %v3056
        %v3149 = vrot.slane %v3148, 4
        %v3150 = vadd.f32 %v3148, %v3149
        %v3151 = vrot.slane %v3150, 2
        %v3152 = vadd.f32 %v3150, %v3151
        %v3153 = vrot.slane %v3152, 1
        %v3154 = vadd.f32 %v3152, %v3153
        %v3157 = vcombine.low %v3063, %v3070
        %v3159 = vunpack.c.l.s4 1966171168
        %v3160 = vunpack.c.0.s8 %v3159
        %v3161 = vlaneseq
        %v3162 = vshrl.u32 %v3161, 7
        %v3163 = vsub.s32 %v3160, %v3162
        %v3164 = vrot.slane %v3157, %v3163
        %v3166 = vunpack.c.l.s4 1966171168
        %v3167 = vunpack.c.0.s8 %v3166
        %v3168 = vlaneseq
        %v3169 = vshrl.u32 %v3168, 7
        %v3170 = vsub.s32 %v3167, %v3169
        %v3171 = vrot.slane %v3164, %v3170
        %s3173 = scalar_lea.vmem [#allocation3], 22
        %3174 = vst.msk [vmem:[%s3173] ss:$8 sm:$0x3] %vm1437, %v3171
        %3175 = vst.msk [vmem:[%s3173] ss:$8 sm:$0x0] %vm1437, %v3171
        %v3178 = vcombine.low %v3077, %v3084
        %v3180 = vunpack.c.l.s4 1966171168
        %v3181 = vunpack.c.0.s8 %v3180
        %v3182 = vlaneseq
        %v3183 = vshrl.u32 %v3182, 7
        %v3184 = vsub.s32 %v3181, %v3183
        %v3185 = vrot.slane %v3178, %v3184
        %v3187 = vunpack.c.l.s4 1966171168
        %v3188 = vunpack.c.0.s8 %v3187
        %v3189 = vlaneseq
        %v3190 = vshrl.u32 %v3189, 7
        %v3191 = vsub.s32 %v3188, %v3190
        %v3192 = vrot.slane %v3185, %v3191
        %s3194 = scalar_lea.vmem [#allocation3], 23
        %3195 = vst.msk [vmem:[%s3194] ss:$8 sm:$0x3] %vm1437, %v3192
        %3196 = vst.msk [vmem:[%s3194] ss:$8 sm:$0x0] %vm1437, %v3192
        %v3199 = vcombine.low %v3091, %v3098
        %v3201 = vunpack.c.l.s4 1966171168
        %v3202 = vunpack.c.0.s8 %v3201
        %v3203 = vlaneseq
        %v3204 = vshrl.u32 %v3203, 7
        %v3205 = vsub.s32 %v3202, %v3204
        %v3206 = vrot.slane %v3199, %v3205
        %v3208 = vunpack.c.l.s4 1966171168
        %v3209 = vunpack.c.0.s8 %v3208
        %v3210 = vlaneseq
        %v3211 = vshrl.u32 %v3210, 7
        %v3212 = vsub.s32 %v3209, %v3211
        %v3213 = vrot.slane %v3206, %v3212
        %s3215 = scalar_lea.vmem [#allocation3], 32
        %3216 = vst.msk [vmem:[%s3215] ss:$8 sm:$0x3] %vm1437, %v3213
        %3217 = vst.msk [vmem:[%s3215] ss:$8 sm:$0x0] %vm1437, %v3213
        %v3220 = vcombine.low %v3105, %v3112
        %v3222 = vunpack.c.l.s4 1966171168
        %v3223 = vunpack.c.0.s8 %v3222
        %v3224 = vlaneseq
        %v3225 = vshrl.u32 %v3224, 7
        %v3226 = vsub.s32 %v3223, %v3225
        %v3227 = vrot.slane %v3220, %v3226
        %v3229 = vunpack.c.l.s4 1966171168
        %v3230 = vunpack.c.0.s8 %v3229
        %v3231 = vlaneseq
        %v3232 = vshrl.u32 %v3231, 7
        %v3233 = vsub.s32 %v3230, %v3232
        %v3234 = vrot.slane %v3227, %v3233
        %s3236 = scalar_lea.vmem [#allocation3], 33
        %3237 = vst.msk [vmem:[%s3236] ss:$8 sm:$0x3] %vm1437, %v3234
        %3238 = vst.msk [vmem:[%s3236] ss:$8 sm:$0x0] %vm1437, %v3234
        %v3241 = vcombine.low %v3119, %v3126
        %v3243 = vunpack.c.l.s4 1966171168
        %v3244 = vunpack.c.0.s8 %v3243
        %v3245 = vlaneseq
        %v3246 = vshrl.u32 %v3245, 7
        %v3247 = vsub.s32 %v3244, %v3246
        %v3248 = vrot.slane %v3241, %v3247
        %v3250 = vunpack.c.l.s4 1966171168
        %v3251 = vunpack.c.0.s8 %v3250
        %v3252 = vlaneseq
        %v3253 = vshrl.u32 %v3252, 7
        %v3254 = vsub.s32 %v3251, %v3253
        %v3255 = vrot.slane %v3248, %v3254
        %s3257 = scalar_lea.vmem [#allocation3], 34
        %3258 = vst.msk [vmem:[%s3257] ss:$8 sm:$0x3] %vm1437, %v3255
        %3259 = vst.msk [vmem:[%s3257] ss:$8 sm:$0x0] %vm1437, %v3255
        %v3262 = vcombine.low %v3133, %v3140
        %v3264 = vunpack.c.l.s4 1966171168
        %v3265 = vunpack.c.0.s8 %v3264
        %v3266 = vlaneseq
        %v3267 = vshrl.u32 %v3266, 7
        %v3268 = vsub.s32 %v3265, %v3267
        %v3269 = vrot.slane %v3262, %v3268
        %v3271 = vunpack.c.l.s4 1966171168
        %v3272 = vunpack.c.0.s8 %v3271
        %v3273 = vlaneseq
        %v3274 = vshrl.u32 %v3273, 7
        %v3275 = vsub.s32 %v3272, %v3274
        %v3276 = vrot.slane %v3269, %v3275
        %s3278 = scalar_lea.vmem [#allocation3], 35
        %3279 = vst.msk [vmem:[%s3278] ss:$8 sm:$0x3] %vm1437, %v3276
        %3280 = vst.msk [vmem:[%s3278] ss:$8 sm:$0x0] %vm1437, %v3276
        %v3283 = vcombine.low %v3147, %v3154
        %v3285 = vunpack.c.l.s4 1966171168
        %v3286 = vunpack.c.0.s8 %v3285
        %v3287 = vlaneseq
        %v3288 = vshrl.u32 %v3287, 7
        %v3289 = vsub.s32 %v3286, %v3288
        %v3290 = vrot.slane %v3283, %v3289
        %v3292 = vunpack.c.l.s4 1966171168
        %v3293 = vunpack.c.0.s8 %v3292
        %v3294 = vlaneseq
        %v3295 = vshrl.u32 %v3294, 7
        %v3296 = vsub.s32 %v3293, %v3295
        %v3297 = vrot.slane %v3290, %v3296
        %s3299 = scalar_lea.vmem [#allocation3], 36
        %3300 = vst.msk [vmem:[%s3299] ss:$8 sm:$0x3] %vm1437, %v3297
        %3301 = vst.msk [vmem:[%s3299] ss:$8 sm:$0x0] %vm1437, %v3297
        %v3302 = vld [vmem:[#allocation2 + $0x150] sm:$0xff]
        %v3303 = vld [vmem:[#allocation2 + $0x158] sm:$0xff]
        %v3304 = vld [vmem:[#allocation2 + $0x160] sm:$0xff]
        %v3305 = vld [vmem:[#allocation2 + $0x168] sm:$0xff]
        %v3306 = vld [vmem:[#allocation2 + $0x170] sm:$0xff]
        %v3307 = vld [vmem:[#allocation2 + $0x178] sm:$0xff]
        %v3308 = vld [vmem:[#allocation2 + $0x180] sm:$0xff]
        %v3309 = vld [vmem:[#allocation2 + $0x188] sm:$0xff]
        %v3310 = vld [vmem:[#allocation2 + $0x190] sm:$0xff]
        %v3311 = vld [vmem:[#allocation2 + $0x198] sm:$0xff]
        %v3312 = vld [vmem:[#allocation2 + $0x1a0] sm:$0xff]
        %v3313 = vld [vmem:[#allocation2 + $0x1a8] sm:$0xff]
        %v3314 = vld [vmem:[#allocation2 + $0x1b0] sm:$0xff]
        %v3315 = vld [vmem:[#allocation2 + $0x1b8] sm:$0xff]
        %v3316 = vld [vmem:[#allocation2 + $0x310] sm:$0xff]
        %v3317 = vld [vmem:[#allocation2 + $0x318] sm:$0xff]
        %v3318 = vld [vmem:[#allocation2 + $0x320] sm:$0xff]
        %v3319 = vld [vmem:[#allocation2 + $0x328] sm:$0xff]
        %v3320 = vld [vmem:[#allocation2 + $0x330] sm:$0xff]
        %v3321 = vld [vmem:[#allocation2 + $0x338] sm:$0xff]
        %v3322 = vld [vmem:[#allocation2 + $0x340] sm:$0xff]
        %v3323 = vld [vmem:[#allocation2 + $0x348] sm:$0xff]
        %v3324 = vld [vmem:[#allocation2 + $0x350] sm:$0xff]
        %v3325 = vld [vmem:[#allocation2 + $0x358] sm:$0xff]
        %v3326 = vld [vmem:[#allocation2 + $0x360] sm:$0xff]
        %v3327 = vld [vmem:[#allocation2 + $0x368] sm:$0xff]
        %v3328 = vld [vmem:[#allocation2 + $0x370] sm:$0xff]
        %v3329 = vld [vmem:[#allocation2 + $0x378] sm:$0xff]
        %3330 = vmatprep.subr.mxu0 0.0
        %3331 = vmatpush1.msra.mxu0 0.0
        %3332 = vmatprep.subr.mxu0 0.0
        %3333 = vmatpush1.msra.mxu0 0.0
        %3334 = vmatprep.subr.mxu0 0.0
        %3335 = vmatpush1.msra.mxu0 0.0
        %3336 = vmatprep.subr.mxu0 0.0
        %3337 = vmatpush1.msra.mxu0 0.0
        %3338 = vmatprep.subr.mxu0 0.0
        %3339 = vmatpush1.msra.mxu0 0.0
        %3340 = vmatprep.subr.mxu0 0.0
        %3341 = vmatpush1.msra.mxu0 0.0
        %3342 = vmatprep.subr.mxu0 0.0
        %3343 = vmatpush1.msra.mxu0 0.0
        %3344 = vmatprep.subr.mxu0 0.0
        %3345 = vmatpush1.msra.mxu0 0.0
        %3346 = vmatprep.subr.mxu0 0.0
        %3347 = vmatpush1.msra.mxu0 0.0
        %3348 = vmatprep.subr.mxu0 0.0
        %3349 = vmatpush1.msra.mxu0 0.0
        %3350 = vmatprep.subr.mxu0 0.0
        %3351 = vmatpush1.msra.mxu0 0.0
        %3352 = vmatprep.subr.mxu0 0.0
        %3353 = vmatpush1.msra.mxu0 0.0
        %3354 = vmatprep.subr.mxu0 0.0
        %3355 = vmatpush1.msra.mxu0 0.0
        %3356 = vmatprep.subr.mxu0 0.0
        %3357 = vmatpush1.msra.mxu0 0.0
        %3358 = vmatprep.subr.mxu0 %v3317
        %3359 = vmatpush1.msra.mxu0 %v3316
        %3360 = vmatprep.subr.mxu0 %v3303
        %3361 = vmatpush1.msra.mxu0 %v3302
        %3362 = vmatprep.subr.mxu0 0.0
        %3363 = vmatpush2.msra.mxu0 0.0
        %3364 = vmatprep.subr.mxu0 0.0
        %3365 = vmatpush2.msra.mxu0 0.0
        %3366 = vmatprep.subr.mxu0 0.0
        %3367 = vmatpush2.msra.mxu0 0.0
        %3368 = vmatprep.subr.mxu0 0.0
        %3369 = vmatpush2.msra.mxu0 0.0
        %3370 = vmatprep.subr.mxu0 0.0
        %3371 = vmatpush2.msra.mxu0 0.0
        %3372 = vmatprep.subr.mxu0 0.0
        %3373 = vmatpush2.msra.mxu0 0.0
        %3374 = vmatprep.subr.mxu0 0.0
        %3375 = vmatpush2.msra.mxu0 0.0
        %3376 = vmatprep.subr.mxu0 0.0
        %3377 = vmatpush2.msra.mxu0 0.0
        %3378 = vmatprep.subr.mxu0 0.0
        %3379 = vmatpush2.msra.mxu0 0.0
        %3380 = vmatprep.subr.mxu0 0.0
        %3381 = vmatpush2.msra.mxu0 0.0
        %3382 = vmatprep.subr.mxu0 0.0
        %3383 = vmatpush2.msra.mxu0 0.0
        %3384 = vmatprep.subr.mxu0 0.0
        %3385 = vmatpush2.msra.mxu0 0.0
        %3386 = vmatprep.subr.mxu0 0.0
        %3387 = vmatpush2.msra.mxu0 0.0
        %3388 = vmatprep.subr.mxu0 0.0
        %3389 = vmatpush2.msra.mxu0 0.0
        %3390 = vmatprep.subr.mxu0 0.0
        %3391 = vmatpush2.msra.mxu0 0.0
        %3392 = vmatprep.subr.mxu0 0.0
        %3393 = vmatpush2.msra.mxu0 0.0
        %3394 = vmatprep.mubr.f32.mxu0 0.0
        %3395 = vmatmul.mubr.f32.gmra.mxu0 %v708
        %v3396 = vpop.f32.mrf.mxu0
        %v3397 = vadd.f32 %v699, %v3396
        %v3398 = vpop.f32.mrf.mxu0
        %v3399 = vadd.f32 %v699, %v3398
        %3400 = vmatprep.mubr.f32.mxu0 0.0
        %3401 = vmatmul.mubr.f32.gmra.mxu0 %v711
        %v3402 = vpop.f32.mrf.mxu0
        %v3403 = vadd.f32 %v704, %v3402
        %v3404 = vpop.f32.mrf.mxu0
        %v3405 = vadd.f32 %v704, %v3404
        %3406 = vdwg.mxu0
        %3407 = vmatprep.subr.mxu0 0.0
        %3408 = vmatpush1.msra.mxu0 0.0
        %3409 = vmatprep.subr.mxu0 0.0
        %3410 = vmatpush1.msra.mxu0 0.0
        %3411 = vmatprep.subr.mxu0 0.0
        %3412 = vmatpush1.msra.mxu0 0.0
        %3413 = vmatprep.subr.mxu0 0.0
        %3414 = vmatpush1.msra.mxu0 0.0
        %3415 = vmatprep.subr.mxu0 0.0
        %3416 = vmatpush1.msra.mxu0 0.0
        %3417 = vmatprep.subr.mxu0 0.0
        %3418 = vmatpush1.msra.mxu0 0.0
        %3419 = vmatprep.subr.mxu0 0.0
        %3420 = vmatpush1.msra.mxu0 0.0
        %3421 = vmatprep.subr.mxu0 0.0
        %3422 = vmatpush1.msra.mxu0 0.0
        %3423 = vmatprep.subr.mxu0 0.0
        %3424 = vmatpush1.msra.mxu0 0.0
        %3425 = vmatprep.subr.mxu0 0.0
        %3426 = vmatpush1.msra.mxu0 0.0
        %3427 = vmatprep.subr.mxu0 0.0
        %3428 = vmatpush1.msra.mxu0 0.0
        %3429 = vmatprep.subr.mxu0 0.0
        %3430 = vmatpush1.msra.mxu0 0.0
        %3431 = vmatprep.subr.mxu0 0.0
        %3432 = vmatpush1.msra.mxu0 0.0
        %3433 = vmatprep.subr.mxu0 0.0
        %3434 = vmatpush1.msra.mxu0 0.0
        %3435 = vmatprep.subr.mxu0 %v3319
        %3436 = vmatpush1.msra.mxu0 %v3318
        %3437 = vmatprep.subr.mxu0 %v3305
        %3438 = vmatpush1.msra.mxu0 %v3304
        %3439 = vmatprep.subr.mxu0 0.0
        %3440 = vmatpush2.msra.mxu0 0.0
        %3441 = vmatprep.subr.mxu0 0.0
        %3442 = vmatpush2.msra.mxu0 0.0
        %3443 = vmatprep.subr.mxu0 0.0
        %3444 = vmatpush2.msra.mxu0 0.0
        %3445 = vmatprep.subr.mxu0 0.0
        %3446 = vmatpush2.msra.mxu0 0.0
        %3447 = vmatprep.subr.mxu0 0.0
        %3448 = vmatpush2.msra.mxu0 0.0
        %3449 = vmatprep.subr.mxu0 0.0
        %3450 = vmatpush2.msra.mxu0 0.0
        %3451 = vmatprep.subr.mxu0 0.0
        %3452 = vmatpush2.msra.mxu0 0.0
        %3453 = vmatprep.subr.mxu0 0.0
        %3454 = vmatpush2.msra.mxu0 0.0
        %3455 = vmatprep.subr.mxu0 0.0
        %3456 = vmatpush2.msra.mxu0 0.0
        %3457 = vmatprep.subr.mxu0 0.0
        %3458 = vmatpush2.msra.mxu0 0.0
        %3459 = vmatprep.subr.mxu0 0.0
        %3460 = vmatpush2.msra.mxu0 0.0
        %3461 = vmatprep.subr.mxu0 0.0
        %3462 = vmatpush2.msra.mxu0 0.0
        %3463 = vmatprep.subr.mxu0 0.0
        %3464 = vmatpush2.msra.mxu0 0.0
        %3465 = vmatprep.subr.mxu0 0.0
        %3466 = vmatpush2.msra.mxu0 0.0
        %3467 = vmatprep.subr.mxu0 0.0
        %3468 = vmatpush2.msra.mxu0 0.0
        %3469 = vmatprep.subr.mxu0 0.0
        %3470 = vmatpush2.msra.mxu0 0.0
        %3471 = vmatprep.mubr.f32.mxu0 0.0
        %3472 = vmatmul.mubr.f32.gmra.mxu0 %v708
        %v3473 = vpop.f32.mrf.mxu0
        %v3474 = vadd.f32 %v699, %v3473
        %v3475 = vpop.f32.mrf.mxu0
        %v3476 = vadd.f32 %v699, %v3475
        %3477 = vmatprep.mubr.f32.mxu0 0.0
        %3478 = vmatmul.mubr.f32.gmra.mxu0 %v711
        %v3479 = vpop.f32.mrf.mxu0
        %v3480 = vadd.f32 %v704, %v3479
        %v3481 = vpop.f32.mrf.mxu0
        %v3482 = vadd.f32 %v704, %v3481
        %3483 = vdwg.mxu0
        %3484 = vmatprep.subr.mxu0 0.0
        %3485 = vmatpush1.msra.mxu0 0.0
        %3486 = vmatprep.subr.mxu0 0.0
        %3487 = vmatpush1.msra.mxu0 0.0
        %3488 = vmatprep.subr.mxu0 0.0
        %3489 = vmatpush1.msra.mxu0 0.0
        %3490 = vmatprep.subr.mxu0 0.0
        %3491 = vmatpush1.msra.mxu0 0.0
        %3492 = vmatprep.subr.mxu0 0.0
        %3493 = vmatpush1.msra.mxu0 0.0
        %3494 = vmatprep.subr.mxu0 0.0
        %3495 = vmatpush1.msra.mxu0 0.0
        %3496 = vmatprep.subr.mxu0 0.0
        %3497 = vmatpush1.msra.mxu0 0.0
        %3498 = vmatprep.subr.mxu0 0.0
        %3499 = vmatpush1.msra.mxu0 0.0
        %3500 = vmatprep.subr.mxu0 0.0
        %3501 = vmatpush1.msra.mxu0 0.0
        %3502 = vmatprep.subr.mxu0 0.0
        %3503 = vmatpush1.msra.mxu0 0.0
        %3504 = vmatprep.subr.mxu0 0.0
        %3505 = vmatpush1.msra.mxu0 0.0
        %3506 = vmatprep.subr.mxu0 0.0
        %3507 = vmatpush1.msra.mxu0 0.0
        %3508 = vmatprep.subr.mxu0 0.0
        %3509 = vmatpush1.msra.mxu0 0.0
        %3510 = vmatprep.subr.mxu0 0.0
        %3511 = vmatpush1.msra.mxu0 0.0
        %3512 = vmatprep.subr.mxu0 %v3321
        %3513 = vmatpush1.msra.mxu0 %v3320
        %3514 = vmatprep.subr.mxu0 %v3307
        %3515 = vmatpush1.msra.mxu0 %v3306
        %3516 = vmatprep.subr.mxu0 0.0
        %3517 = vmatpush2.msra.mxu0 0.0
        %3518 = vmatprep.subr.mxu0 0.0
        %3519 = vmatpush2.msra.mxu0 0.0
        %3520 = vmatprep.subr.mxu0 0.0
        %3521 = vmatpush2.msra.mxu0 0.0
        %3522 = vmatprep.subr.mxu0 0.0
        %3523 = vmatpush2.msra.mxu0 0.0
        %3524 = vmatprep.subr.mxu0 0.0
        %3525 = vmatpush2.msra.mxu0 0.0
        %3526 = vmatprep.subr.mxu0 0.0
        %3527 = vmatpush2.msra.mxu0 0.0
        %3528 = vmatprep.subr.mxu0 0.0
        %3529 = vmatpush2.msra.mxu0 0.0
        %3530 = vmatprep.subr.mxu0 0.0
        %3531 = vmatpush2.msra.mxu0 0.0
        %3532 = vmatprep.subr.mxu0 0.0
        %3533 = vmatpush2.msra.mxu0 0.0
        %3534 = vmatprep.subr.mxu0 0.0
        %3535 = vmatpush2.msra.mxu0 0.0
        %3536 = vmatprep.subr.mxu0 0.0
        %3537 = vmatpush2.msra.mxu0 0.0
        %3538 = vmatprep.subr.mxu0 0.0
        %3539 = vmatpush2.msra.mxu0 0.0
        %3540 = vmatprep.subr.mxu0 0.0
        %3541 = vmatpush2.msra.mxu0 0.0
        %3542 = vmatprep.subr.mxu0 0.0
        %3543 = vmatpush2.msra.mxu0 0.0
        %3544 = vmatprep.subr.mxu0 0.0
        %3545 = vmatpush2.msra.mxu0 0.0
        %3546 = vmatprep.subr.mxu0 0.0
        %3547 = vmatpush2.msra.mxu0 0.0
        %3548 = vmatprep.mubr.f32.mxu0 0.0
        %3549 = vmatmul.mubr.f32.gmra.mxu0 %v708
        %v3550 = vpop.f32.mrf.mxu0
        %v3551 = vadd.f32 %v699, %v3550
        %v3552 = vpop.f32.mrf.mxu0
        %v3553 = vadd.f32 %v699, %v3552
        %3554 = vmatprep.mubr.f32.mxu0 0.0
        %3555 = vmatmul.mubr.f32.gmra.mxu0 %v711
        %v3556 = vpop.f32.mrf.mxu0
        %v3557 = vadd.f32 %v704, %v3556
        %v3558 = vpop.f32.mrf.mxu0
        %v3559 = vadd.f32 %v704, %v3558
        %3560 = vdwg.mxu0
        %3561 = vmatprep.subr.mxu0 0.0
        %3562 = vmatpush1.msra.mxu0 0.0
        %3563 = vmatprep.subr.mxu0 0.0
        %3564 = vmatpush1.msra.mxu0 0.0
        %3565 = vmatprep.subr.mxu0 0.0
        %3566 = vmatpush1.msra.mxu0 0.0
        %3567 = vmatprep.subr.mxu0 0.0
        %3568 = vmatpush1.msra.mxu0 0.0
        %3569 = vmatprep.subr.mxu0 0.0
        %3570 = vmatpush1.msra.mxu0 0.0
        %3571 = vmatprep.subr.mxu0 0.0
        %3572 = vmatpush1.msra.mxu0 0.0
        %3573 = vmatprep.subr.mxu0 0.0
        %3574 = vmatpush1.msra.mxu0 0.0
        %3575 = vmatprep.subr.mxu0 0.0
        %3576 = vmatpush1.msra.mxu0 0.0
        %3577 = vmatprep.subr.mxu0 0.0
        %3578 = vmatpush1.msra.mxu0 0.0
        %3579 = vmatprep.subr.mxu0 0.0
        %3580 = vmatpush1.msra.mxu0 0.0
        %3581 = vmatprep.subr.mxu0 0.0
        %3582 = vmatpush1.msra.mxu0 0.0
        %3583 = vmatprep.subr.mxu0 0.0
        %3584 = vmatpush1.msra.mxu0 0.0
        %3585 = vmatprep.subr.mxu0 0.0
        %3586 = vmatpush1.msra.mxu0 0.0
        %3587 = vmatprep.subr.mxu0 0.0
        %3588 = vmatpush1.msra.mxu0 0.0
        %3589 = vmatprep.subr.mxu0 %v3323
        %3590 = vmatpush1.msra.mxu0 %v3322
        %3591 = vmatprep.subr.mxu0 %v3309
        %3592 = vmatpush1.msra.mxu0 %v3308
        %3593 = vmatprep.subr.mxu0 0.0
        %3594 = vmatpush2.msra.mxu0 0.0
        %3595 = vmatprep.subr.mxu0 0.0
        %3596 = vmatpush2.msra.mxu0 0.0
        %3597 = vmatprep.subr.mxu0 0.0
        %3598 = vmatpush2.msra.mxu0 0.0
        %3599 = vmatprep.subr.mxu0 0.0
        %3600 = vmatpush2.msra.mxu0 0.0
        %3601 = vmatprep.subr.mxu0 0.0
        %3602 = vmatpush2.msra.mxu0 0.0
        %3603 = vmatprep.subr.mxu0 0.0
        %3604 = vmatpush2.msra.mxu0 0.0
        %3605 = vmatprep.subr.mxu0 0.0
        %3606 = vmatpush2.msra.mxu0 0.0
        %3607 = vmatprep.subr.mxu0 0.0
        %3608 = vmatpush2.msra.mxu0 0.0
        %3609 = vmatprep.subr.mxu0 0.0
        %3610 = vmatpush2.msra.mxu0 0.0
        %3611 = vmatprep.subr.mxu0 0.0
        %3612 = vmatpush2.msra.mxu0 0.0
        %3613 = vmatprep.subr.mxu0 0.0
        %3614 = vmatpush2.msra.mxu0 0.0
        %3615 = vmatprep.subr.mxu0 0.0
        %3616 = vmatpush2.msra.mxu0 0.0
        %3617 = vmatprep.subr.mxu0 0.0
        %3618 = vmatpush2.msra.mxu0 0.0
        %3619 = vmatprep.subr.mxu0 0.0
        %3620 = vmatpush2.msra.mxu0 0.0
        %3621 = vmatprep.subr.mxu0 0.0
        %3622 = vmatpush2.msra.mxu0 0.0
        %3623 = vmatprep.subr.mxu0 0.0
        %3624 = vmatpush2.msra.mxu0 0.0
        %3625 = vmatprep.mubr.f32.mxu0 0.0
        %3626 = vmatmul.mubr.f32.gmra.mxu0 %v708
        %v3627 = vpop.f32.mrf.mxu0
        %v3628 = vadd.f32 %v699, %v3627
        %v3629 = vpop.f32.mrf.mxu0
        %v3630 = vadd.f32 %v699, %v3629
        %3631 = vmatprep.mubr.f32.mxu0 0.0
        %3632 = vmatmul.mubr.f32.gmra.mxu0 %v711
        %v3633 = vpop.f32.mrf.mxu0
        %v3634 = vadd.f32 %v704, %v3633
        %v3635 = vpop.f32.mrf.mxu0
        %v3636 = vadd.f32 %v704, %v3635
        %3637 = vdwg.mxu0
        %3638 = vmatprep.subr.mxu0 0.0
        %3639 = vmatpush1.msra.mxu0 0.0
        %3640 = vmatprep.subr.mxu0 0.0
        %3641 = vmatpush1.msra.mxu0 0.0
        %3642 = vmatprep.subr.mxu0 0.0
        %3643 = vmatpush1.msra.mxu0 0.0
        %3644 = vmatprep.subr.mxu0 0.0
        %3645 = vmatpush1.msra.mxu0 0.0
        %3646 = vmatprep.subr.mxu0 0.0
        %3647 = vmatpush1.msra.mxu0 0.0
        %3648 = vmatprep.subr.mxu0 0.0
        %3649 = vmatpush1.msra.mxu0 0.0
        %3650 = vmatprep.subr.mxu0 0.0
        %3651 = vmatpush1.msra.mxu0 0.0
        %3652 = vmatprep.subr.mxu0 0.0
        %3653 = vmatpush1.msra.mxu0 0.0
        %3654 = vmatprep.subr.mxu0 0.0
        %3655 = vmatpush1.msra.mxu0 0.0
        %3656 = vmatprep.subr.mxu0 0.0
        %3657 = vmatpush1.msra.mxu0 0.0
        %3658 = vmatprep.subr.mxu0 0.0
        %3659 = vmatpush1.msra.mxu0 0.0
        %3660 = vmatprep.subr.mxu0 0.0
        %3661 = vmatpush1.msra.mxu0 0.0
        %3662 = vmatprep.subr.mxu0 0.0
        %3663 = vmatpush1.msra.mxu0 0.0
        %3664 = vmatprep.subr.mxu0 0.0
        %3665 = vmatpush1.msra.mxu0 0.0
        %3666 = vmatprep.subr.mxu0 %v3325
        %3667 = vmatpush1.msra.mxu0 %v3324
        %3668 = vmatprep.subr.mxu0 %v3311
        %3669 = vmatpush1.msra.mxu0 %v3310
        %3670 = vmatprep.subr.mxu0 0.0
        %3671 = vmatpush2.msra.mxu0 0.0
        %3672 = vmatprep.subr.mxu0 0.0
        %3673 = vmatpush2.msra.mxu0 0.0
        %3674 = vmatprep.subr.mxu0 0.0
        %3675 = vmatpush2.msra.mxu0 0.0
        %3676 = vmatprep.subr.mxu0 0.0
        %3677 = vmatpush2.msra.mxu0 0.0
        %3678 = vmatprep.subr.mxu0 0.0
        %3679 = vmatpush2.msra.mxu0 0.0
        %3680 = vmatprep.subr.mxu0 0.0
        %3681 = vmatpush2.msra.mxu0 0.0
        %3682 = vmatprep.subr.mxu0 0.0
        %3683 = vmatpush2.msra.mxu0 0.0
        %3684 = vmatprep.subr.mxu0 0.0
        %3685 = vmatpush2.msra.mxu0 0.0
        %3686 = vmatprep.subr.mxu0 0.0
        %3687 = vmatpush2.msra.mxu0 0.0
        %3688 = vmatprep.subr.mxu0 0.0
        %3689 = vmatpush2.msra.mxu0 0.0
        %3690 = vmatprep.subr.mxu0 0.0
        %3691 = vmatpush2.msra.mxu0 0.0
        %3692 = vmatprep.subr.mxu0 0.0
        %3693 = vmatpush2.msra.mxu0 0.0
        %3694 = vmatprep.subr.mxu0 0.0
        %3695 = vmatpush2.msra.mxu0 0.0
        %3696 = vmatprep.subr.mxu0 0.0
        %3697 = vmatpush2.msra.mxu0 0.0
        %3698 = vmatprep.subr.mxu0 0.0
        %3699 = vmatpush2.msra.mxu0 0.0
        %3700 = vmatprep.subr.mxu0 0.0
        %3701 = vmatpush2.msra.mxu0 0.0
        %3702 = vmatprep.mubr.f32.mxu0 0.0
        %3703 = vmatmul.mubr.f32.gmra.mxu0 %v708
        %v3704 = vpop.f32.mrf.mxu0
        %v3705 = vadd.f32 %v699, %v3704
        %v3706 = vpop.f32.mrf.mxu0
        %v3707 = vadd.f32 %v699, %v3706
        %3708 = vmatprep.mubr.f32.mxu0 0.0
        %3709 = vmatmul.mubr.f32.gmra.mxu0 %v711
        %v3710 = vpop.f32.mrf.mxu0
        %v3711 = vadd.f32 %v704, %v3710
        %v3712 = vpop.f32.mrf.mxu0
        %v3713 = vadd.f32 %v704, %v3712
        %3714 = vdwg.mxu0
        %3715 = vmatprep.subr.mxu0 0.0
        %3716 = vmatpush1.msra.mxu0 0.0
        %3717 = vmatprep.subr.mxu0 0.0
        %3718 = vmatpush1.msra.mxu0 0.0
        %3719 = vmatprep.subr.mxu0 0.0
        %3720 = vmatpush1.msra.mxu0 0.0
        %3721 = vmatprep.subr.mxu0 0.0
        %3722 = vmatpush1.msra.mxu0 0.0
        %3723 = vmatprep.subr.mxu0 0.0
        %3724 = vmatpush1.msra.mxu0 0.0
        %3725 = vmatprep.subr.mxu0 0.0
        %3726 = vmatpush1.msra.mxu0 0.0
        %3727 = vmatprep.subr.mxu0 0.0
        %3728 = vmatpush1.msra.mxu0 0.0
        %3729 = vmatprep.subr.mxu0 0.0
        %3730 = vmatpush1.msra.mxu0 0.0
        %3731 = vmatprep.subr.mxu0 0.0
        %3732 = vmatpush1.msra.mxu0 0.0
        %3733 = vmatprep.subr.mxu0 0.0
        %3734 = vmatpush1.msra.mxu0 0.0
        %3735 = vmatprep.subr.mxu0 0.0
        %3736 = vmatpush1.msra.mxu0 0.0
        %3737 = vmatprep.subr.mxu0 0.0
        %3738 = vmatpush1.msra.mxu0 0.0
        %3739 = vmatprep.subr.mxu0 0.0
        %3740 = vmatpush1.msra.mxu0 0.0
        %3741 = vmatprep.subr.mxu0 0.0
        %3742 = vmatpush1.msra.mxu0 0.0
        %3743 = vmatprep.subr.mxu0 %v3327
        %3744 = vmatpush1.msra.mxu0 %v3326
        %3745 = vmatprep.subr.mxu0 %v3313
        %3746 = vmatpush1.msra.mxu0 %v3312
        %3747 = vmatprep.subr.mxu0 0.0
        %3748 = vmatpush2.msra.mxu0 0.0
        %3749 = vmatprep.subr.mxu0 0.0
        %3750 = vmatpush2.msra.mxu0 0.0
        %3751 = vmatprep.subr.mxu0 0.0
        %3752 = vmatpush2.msra.mxu0 0.0
        %3753 = vmatprep.subr.mxu0 0.0
        %3754 = vmatpush2.msra.mxu0 0.0
        %3755 = vmatprep.subr.mxu0 0.0
        %3756 = vmatpush2.msra.mxu0 0.0
        %3757 = vmatprep.subr.mxu0 0.0
        %3758 = vmatpush2.msra.mxu0 0.0
        %3759 = vmatprep.subr.mxu0 0.0
        %3760 = vmatpush2.msra.mxu0 0.0
        %3761 = vmatprep.subr.mxu0 0.0
        %3762 = vmatpush2.msra.mxu0 0.0
        %3763 = vmatprep.subr.mxu0 0.0
        %3764 = vmatpush2.msra.mxu0 0.0
        %3765 = vmatprep.subr.mxu0 0.0
        %3766 = vmatpush2.msra.mxu0 0.0
        %3767 = vmatprep.subr.mxu0 0.0
        %3768 = vmatpush2.msra.mxu0 0.0
        %3769 = vmatprep.subr.mxu0 0.0
        %3770 = vmatpush2.msra.mxu0 0.0
        %3771 = vmatprep.subr.mxu0 0.0
        %3772 = vmatpush2.msra.mxu0 0.0
        %3773 = vmatprep.subr.mxu0 0.0
        %3774 = vmatpush2.msra.mxu0 0.0
        %3775 = vmatprep.subr.mxu0 0.0
        %3776 = vmatpush2.msra.mxu0 0.0
        %3777 = vmatprep.subr.mxu0 0.0
        %3778 = vmatpush2.msra.mxu0 0.0
        %3779 = vmatprep.mubr.f32.mxu0 0.0
        %3780 = vmatmul.mubr.f32.gmra.mxu0 %v708
        %v3781 = vpop.f32.mrf.mxu0
        %v3782 = vadd.f32 %v699, %v3781
        %v3783 = vpop.f32.mrf.mxu0
        %v3784 = vadd.f32 %v699, %v3783
        %3785 = vmatprep.mubr.f32.mxu0 0.0
        %3786 = vmatmul.mubr.f32.gmra.mxu0 %v711
        %v3787 = vpop.f32.mrf.mxu0
        %v3788 = vadd.f32 %v704, %v3787
        %v3789 = vpop.f32.mrf.mxu0
        %v3790 = vadd.f32 %v704, %v3789
        %3791 = vdwg.mxu0
        %3792 = vmatprep.subr.mxu0 0.0
        %3793 = vmatpush1.msra.mxu0 0.0
        %3794 = vmatprep.subr.mxu0 0.0
        %3795 = vmatpush1.msra.mxu0 0.0
        %3796 = vmatprep.subr.mxu0 0.0
        %3797 = vmatpush1.msra.mxu0 0.0
        %3798 = vmatprep.subr.mxu0 0.0
        %3799 = vmatpush1.msra.mxu0 0.0
        %3800 = vmatprep.subr.mxu0 0.0
        %3801 = vmatpush1.msra.mxu0 0.0
        %3802 = vmatprep.subr.mxu0 0.0
        %3803 = vmatpush1.msra.mxu0 0.0
        %3804 = vmatprep.subr.mxu0 0.0
        %3805 = vmatpush1.msra.mxu0 0.0
        %3806 = vmatprep.subr.mxu0 0.0
        %3807 = vmatpush1.msra.mxu0 0.0
        %3808 = vmatprep.subr.mxu0 0.0
        %3809 = vmatpush1.msra.mxu0 0.0
        %3810 = vmatprep.subr.mxu0 0.0
        %3811 = vmatpush1.msra.mxu0 0.0
        %3812 = vmatprep.subr.mxu0 0.0
        %3813 = vmatpush1.msra.mxu0 0.0
        %3814 = vmatprep.subr.mxu0 0.0
        %3815 = vmatpush1.msra.mxu0 0.0
        %3816 = vmatprep.subr.mxu0 0.0
        %3817 = vmatpush1.msra.mxu0 0.0
        %3818 = vmatprep.subr.mxu0 0.0
        %3819 = vmatpush1.msra.mxu0 0.0
        %3820 = vmatprep.subr.mxu0 %v3329
        %3821 = vmatpush1.msra.mxu0 %v3328
        %3822 = vmatprep.subr.mxu0 %v3315
        %3823 = vmatpush1.msra.mxu0 %v3314
        %3824 = vmatprep.subr.mxu0 0.0
        %3825 = vmatpush2.msra.mxu0 0.0
        %3826 = vmatprep.subr.mxu0 0.0
        %3827 = vmatpush2.msra.mxu0 0.0
        %3828 = vmatprep.subr.mxu0 0.0
        %3829 = vmatpush2.msra.mxu0 0.0
        %3830 = vmatprep.subr.mxu0 0.0
        %3831 = vmatpush2.msra.mxu0 0.0
        %3832 = vmatprep.subr.mxu0 0.0
        %3833 = vmatpush2.msra.mxu0 0.0
        %3834 = vmatprep.subr.mxu0 0.0
        %3835 = vmatpush2.msra.mxu0 0.0
        %3836 = vmatprep.subr.mxu0 0.0
        %3837 = vmatpush2.msra.mxu0 0.0
        %3838 = vmatprep.subr.mxu0 0.0
        %3839 = vmatpush2.msra.mxu0 0.0
        %3840 = vmatprep.subr.mxu0 0.0
        %3841 = vmatpush2.msra.mxu0 0.0
        %3842 = vmatprep.subr.mxu0 0.0
        %3843 = vmatpush2.msra.mxu0 0.0
        %3844 = vmatprep.subr.mxu0 0.0
        %3845 = vmatpush2.msra.mxu0 0.0
        %3846 = vmatprep.subr.mxu0 0.0
        %3847 = vmatpush2.msra.mxu0 0.0
        %3848 = vmatprep.subr.mxu0 0.0
        %3849 = vmatpush2.msra.mxu0 0.0
        %3850 = vmatprep.subr.mxu0 0.0
        %3851 = vmatpush2.msra.mxu0 0.0
        %3852 = vmatprep.subr.mxu0 0.0
        %3853 = vmatpush2.msra.mxu0 0.0
        %3854 = vmatprep.subr.mxu0 0.0
        %3855 = vmatpush2.msra.mxu0 0.0
        %3856 = vmatprep.mubr.f32.mxu0 0.0
        %3857 = vmatmul.mubr.f32.gmra.mxu0 %v708
        %v3858 = vpop.f32.mrf.mxu0
        %v3859 = vadd.f32 %v699, %v3858
        %v3860 = vpop.f32.mrf.mxu0
        %v3861 = vadd.f32 %v699, %v3860
        %3862 = vmatprep.mubr.f32.mxu0 0.0
        %3863 = vmatmul.mubr.f32.gmra.mxu0 %v711
        %v3864 = vpop.f32.mrf.mxu0
        %v3865 = vadd.f32 %v704, %v3864
        %v3866 = vpop.f32.mrf.mxu0
        %v3867 = vadd.f32 %v704, %v3866
        %3868 = vdwg.mxu0
        %v3869 = vmax.f32 %v3397, 0.0
        %v3870 = vmax.f32 %v3399, 0.0
        %v3871 = vmax.f32 %v3474, 0.0
        %v3872 = vmax.f32 %v3476, 0.0
        %v3873 = vmax.f32 %v3551, 0.0
        %v3874 = vmax.f32 %v3553, 0.0
        %v3875 = vmax.f32 %v3628, 0.0
        %v3876 = vmax.f32 %v3630, 0.0
        %v3877 = vmax.f32 %v3705, 0.0
        %v3878 = vmax.f32 %v3707, 0.0
        %v3879 = vmax.f32 %v3782, 0.0
        %v3880 = vmax.f32 %v3784, 0.0
        %v3881 = vmax.f32 %v3859, 0.0
        %v3882 = vmax.f32 %v3861, 0.0
        %v3883 = vmax.f32 %v3403, 0.0
        %v3884 = vmax.f32 %v3405, 0.0
        %v3885 = vmax.f32 %v3480, 0.0
        %v3886 = vmax.f32 %v3482, 0.0
        %v3887 = vmax.f32 %v3557, 0.0
        %v3888 = vmax.f32 %v3559, 0.0
        %v3889 = vmax.f32 %v3634, 0.0
        %v3890 = vmax.f32 %v3636, 0.0
        %v3891 = vmax.f32 %v3711, 0.0
        %v3892 = vmax.f32 %v3713, 0.0
        %v3893 = vmax.f32 %v3788, 0.0
        %v3894 = vmax.f32 %v3790, 0.0
        %v3895 = vmax.f32 %v3865, 0.0
        %v3896 = vmax.f32 %v3867, 0.0
        %v3897 = vmul.f32 %v3869, %v1283
        %v3898 = vmul.f32 %v3870, %v1283
        %v3899 = vmul.f32 %v3871, %v1283
        %v3900 = vmul.f32 %v3872, %v1283
        %v3901 = vmul.f32 %v3873, %v1283
        %v3902 = vmul.f32 %v3874, %v1283
        %v3903 = vmul.f32 %v3875, %v1283
        %v3904 = vmul.f32 %v3876, %v1283
        %v3905 = vmul.f32 %v3877, %v1283
        %v3906 = vmul.f32 %v3878, %v1283
        %v3907 = vmul.f32 %v3879, %v1283
        %v3908 = vmul.f32 %v3880, %v1283
        %v3909 = vmul.f32 %v3881, %v1283
        %v3910 = vmul.f32 %v3882, %v1283
        %v3911 = vmul.f32 %v3883, %v1288
        %v3912 = vmul.f32 %v3884, %v1288
        %v3913 = vmul.f32 %v3885, %v1288
        %v3914 = vmul.f32 %v3886, %v1288
        %v3915 = vmul.f32 %v3887, %v1288
        %v3916 = vmul.f32 %v3888, %v1288
        %v3917 = vmul.f32 %v3889, %v1288
        %v3918 = vmul.f32 %v3890, %v1288
        %v3919 = vmul.f32 %v3891, %v1288
        %v3920 = vmul.f32 %v3892, %v1288
        %v3921 = vmul.f32 %v3893, %v1288
        %v3922 = vmul.f32 %v3894, %v1288
        %v3923 = vmul.f32 %v3895, %v1288
        %v3924 = vmul.f32 %v3896, %v1288
        %v3925 = vadd.f32 %v3897, %v3911
        %v3926 = vrot.slane %v3925, 4
        %v3927 = vadd.f32 %v3925, %v3926
        %v3928 = vrot.slane %v3927, 2
        %v3929 = vadd.f32 %v3927, %v3928
        %v3930 = vrot.slane %v3929, 1
        %v3931 = vadd.f32 %v3929, %v3930
        %v3932 = vadd.f32 %v3898, %v3912
        %v3933 = vrot.slane %v3932, 4
        %v3934 = vadd.f32 %v3932, %v3933
        %v3935 = vrot.slane %v3934, 2
        %v3936 = vadd.f32 %v3934, %v3935
        %v3937 = vrot.slane %v3936, 1
        %v3938 = vadd.f32 %v3936, %v3937
        %v3939 = vadd.f32 %v3899, %v3913
        %v3940 = vrot.slane %v3939, 4
        %v3941 = vadd.f32 %v3939, %v3940
        %v3942 = vrot.slane %v3941, 2
        %v3943 = vadd.f32 %v3941, %v3942
        %v3944 = vrot.slane %v3943, 1
        %v3945 = vadd.f32 %v3943, %v3944
        %v3946 = vadd.f32 %v3900, %v3914
        %v3947 = vrot.slane %v3946, 4
        %v3948 = vadd.f32 %v3946, %v3947
        %v3949 = vrot.slane %v3948, 2
        %v3950 = vadd.f32 %v3948, %v3949
        %v3951 = vrot.slane %v3950, 1
        %v3952 = vadd.f32 %v3950, %v3951
        %v3953 = vadd.f32 %v3901, %v3915
        %v3954 = vrot.slane %v3953, 4
        %v3955 = vadd.f32 %v3953, %v3954
        %v3956 = vrot.slane %v3955, 2
        %v3957 = vadd.f32 %v3955, %v3956
        %v3958 = vrot.slane %v3957, 1
        %v3959 = vadd.f32 %v3957, %v3958
        %v3960 = vadd.f32 %v3902, %v3916
        %v3961 = vrot.slane %v3960, 4
        %v3962 = vadd.f32 %v3960, %v3961
        %v3963 = vrot.slane %v3962, 2
        %v3964 = vadd.f32 %v3962, %v3963
        %v3965 = vrot.slane %v3964, 1
        %v3966 = vadd.f32 %v3964, %v3965
        %v3967 = vadd.f32 %v3903, %v3917
        %v3968 = vrot.slane %v3967, 4
        %v3969 = vadd.f32 %v3967, %v3968
        %v3970 = vrot.slane %v3969, 2
        %v3971 = vadd.f32 %v3969, %v3970
        %v3972 = vrot.slane %v3971, 1
        %v3973 = vadd.f32 %v3971, %v3972
        %v3974 = vadd.f32 %v3904, %v3918
        %v3975 = vrot.slane %v3974, 4
        %v3976 = vadd.f32 %v3974, %v3975
        %v3977 = vrot.slane %v3976, 2
        %v3978 = vadd.f32 %v3976, %v3977
        %v3979 = vrot.slane %v3978, 1
        %v3980 = vadd.f32 %v3978, %v3979
        %v3981 = vadd.f32 %v3905, %v3919
        %v3982 = vrot.slane %v3981, 4
        %v3983 = vadd.f32 %v3981, %v3982
        %v3984 = vrot.slane %v3983, 2
        %v3985 = vadd.f32 %v3983, %v3984
        %v3986 = vrot.slane %v3985, 1
        %v3987 = vadd.f32 %v3985, %v3986
        %v3988 = vadd.f32 %v3906, %v3920
        %v3989 = vrot.slane %v3988, 4
        %v3990 = vadd.f32 %v3988, %v3989
        %v3991 = vrot.slane %v3990, 2
        %v3992 = vadd.f32 %v3990, %v3991
        %v3993 = vrot.slane %v3992, 1
        %v3994 = vadd.f32 %v3992, %v3993
        %v3995 = vadd.f32 %v3907, %v3921
        %v3996 = vrot.slane %v3995, 4
        %v3997 = vadd.f32 %v3995, %v3996
        %v3998 = vrot.slane %v3997, 2
        %v3999 = vadd.f32 %v3997, %v3998
        %v4000 = vrot.slane %v3999, 1
        %v4001 = vadd.f32 %v3999, %v4000
        %v4002 = vadd.f32 %v3908, %v3922
        %v4003 = vrot.slane %v4002, 4
        %v4004 = vadd.f32 %v4002, %v4003
        %v4005 = vrot.slane %v4004, 2
        %v4006 = vadd.f32 %v4004, %v4005
        %v4007 = vrot.slane %v4006, 1
        %v4008 = vadd.f32 %v4006, %v4007
        %v4009 = vadd.f32 %v3909, %v3923
        %v4010 = vrot.slane %v4009, 4
        %v4011 = vadd.f32 %v4009, %v4010
        %v4012 = vrot.slane %v4011, 2
        %v4013 = vadd.f32 %v4011, %v4012
        %v4014 = vrot.slane %v4013, 1
        %v4015 = vadd.f32 %v4013, %v4014
        %v4016 = vadd.f32 %v3910, %v3924
        %v4017 = vrot.slane %v4016, 4
        %v4018 = vadd.f32 %v4016, %v4017
        %v4019 = vrot.slane %v4018, 2
        %v4020 = vadd.f32 %v4018, %v4019
        %v4021 = vrot.slane %v4020, 1
        %v4022 = vadd.f32 %v4020, %v4021
        %v4025 = vcombine.low %v3931, %v3938
        %v4027 = vunpack.c.l.s4 1966171168
        %v4028 = vunpack.c.0.s8 %v4027
        %v4029 = vlaneseq
        %v4030 = vshrl.u32 %v4029, 7
        %v4031 = vsub.s32 %v4028, %v4030
        %v4032 = vrot.slane %v4025, %v4031
        %v4034 = vunpack.c.l.s4 1966171168
        %v4035 = vunpack.c.0.s8 %v4034
        %v4036 = vlaneseq
        %v4037 = vshrl.u32 %v4036, 7
        %v4038 = vsub.s32 %v4035, %v4037
        %v4039 = vrot.slane %v4032, %v4038
        %s4041 = scalar_lea.vmem [#allocation3], 37
        %4042 = vst.msk [vmem:[%s4041] ss:$8 sm:$0x3] %vm1437, %v4039
        %4043 = vst.msk [vmem:[%s4041] ss:$8 sm:$0x0] %vm1437, %v4039
        %v4046 = vcombine.low %v3945, %v3952
        %v4048 = vunpack.c.l.s4 1966171168
        %v4049 = vunpack.c.0.s8 %v4048
        %v4050 = vlaneseq
        %v4051 = vshrl.u32 %v4050, 7
        %v4052 = vsub.s32 %v4049, %v4051
        %v4053 = vrot.slane %v4046, %v4052
        %v4055 = vunpack.c.l.s4 1966171168
        %v4056 = vunpack.c.0.s8 %v4055
        %v4057 = vlaneseq
        %v4058 = vshrl.u32 %v4057, 7
        %v4059 = vsub.s32 %v4056, %v4058
        %v4060 = vrot.slane %v4053, %v4059
        %s4062 = scalar_lea.vmem [#allocation3], 38
        %4063 = vst.msk [vmem:[%s4062] ss:$8 sm:$0x3] %vm1437, %v4060
        %4064 = vst.msk [vmem:[%s4062] ss:$8 sm:$0x0] %vm1437, %v4060
        %v4067 = vcombine.low %v3959, %v3966
        %v4069 = vunpack.c.l.s4 1966171168
        %v4070 = vunpack.c.0.s8 %v4069
        %v4071 = vlaneseq
        %v4072 = vshrl.u32 %v4071, 7
        %v4073 = vsub.s32 %v4070, %v4072
        %v4074 = vrot.slane %v4067, %v4073
        %v4076 = vunpack.c.l.s4 1966171168
        %v4077 = vunpack.c.0.s8 %v4076
        %v4078 = vlaneseq
        %v4079 = vshrl.u32 %v4078, 7
        %v4080 = vsub.s32 %v4077, %v4079
        %v4081 = vrot.slane %v4074, %v4080
        %s4083 = scalar_lea.vmem [#allocation3], 39
        %4084 = vst.msk [vmem:[%s4083] ss:$8 sm:$0x3] %vm1437, %v4081
        %4085 = vst.msk [vmem:[%s4083] ss:$8 sm:$0x0] %vm1437, %v4081
        %v4088 = vcombine.low %v3973, %v3980
        %v4090 = vunpack.c.l.s4 1966171168
        %v4091 = vunpack.c.0.s8 %v4090
        %v4092 = vlaneseq
        %v4093 = vshrl.u32 %v4092, 7
        %v4094 = vsub.s32 %v4091, %v4093
        %v4095 = vrot.slane %v4088, %v4094
        %v4097 = vunpack.c.l.s4 1966171168
        %v4098 = vunpack.c.0.s8 %v4097
        %v4099 = vlaneseq
        %v4100 = vshrl.u32 %v4099, 7
        %v4101 = vsub.s32 %v4098, %v4100
        %v4102 = vrot.slane %v4095, %v4101
        %s4104 = scalar_lea.vmem [#allocation3], 48
        %4105 = vst.msk [vmem:[%s4104] ss:$8 sm:$0x3] %vm1437, %v4102
        %4106 = vst.msk [vmem:[%s4104] ss:$8 sm:$0x0] %vm1437, %v4102
        %v4109 = vcombine.low %v3987, %v3994
        %v4111 = vunpack.c.l.s4 1966171168
        %v4112 = vunpack.c.0.s8 %v4111
        %v4113 = vlaneseq
        %v4114 = vshrl.u32 %v4113, 7
        %v4115 = vsub.s32 %v4112, %v4114
        %v4116 = vrot.slane %v4109, %v4115
        %v4118 = vunpack.c.l.s4 1966171168
        %v4119 = vunpack.c.0.s8 %v4118
        %v4120 = vlaneseq
        %v4121 = vshrl.u32 %v4120, 7
        %v4122 = vsub.s32 %v4119, %v4121
        %v4123 = vrot.slane %v4116, %v4122
        %s4125 = scalar_lea.vmem [#allocation3], 49
        %4126 = vst.msk [vmem:[%s4125] ss:$8 sm:$0x3] %vm1437, %v4123
        %4127 = vst.msk [vmem:[%s4125] ss:$8 sm:$0x0] %vm1437, %v4123
        %v4130 = vcombine.low %v4001, %v4008
        %v4132 = vunpack.c.l.s4 1966171168
        %v4133 = vunpack.c.0.s8 %v4132
        %v4134 = vlaneseq
        %v4135 = vshrl.u32 %v4134, 7
        %v4136 = vsub.s32 %v4133, %v4135
        %v4137 = vrot.slane %v4130, %v4136
        %v4139 = vunpack.c.l.s4 1966171168
        %v4140 = vunpack.c.0.s8 %v4139
        %v4141 = vlaneseq
        %v4142 = vshrl.u32 %v4141, 7
        %v4143 = vsub.s32 %v4140, %v4142
        %v4144 = vrot.slane %v4137, %v4143
        %s4146 = scalar_lea.vmem [#allocation3], 50
        %4147 = vst.msk [vmem:[%s4146] ss:$8 sm:$0x3] %vm1437, %v4144
        %4148 = vst.msk [vmem:[%s4146] ss:$8 sm:$0x0] %vm1437, %v4144
        %v4151 = vcombine.low %v4015, %v4022
        %v4153 = vunpack.c.l.s4 1966171168
        %v4154 = vunpack.c.0.s8 %v4153
        %v4155 = vlaneseq
        %v4156 = vshrl.u32 %v4155, 7
        %v4157 = vsub.s32 %v4154, %v4156
        %v4158 = vrot.slane %v4151, %v4157
        %v4160 = vunpack.c.l.s4 1966171168
        %v4161 = vunpack.c.0.s8 %v4160
        %v4162 = vlaneseq
        %v4163 = vshrl.u32 %v4162, 7
        %v4164 = vsub.s32 %v4161, %v4163
        %v4165 = vrot.slane %v4158, %v4164
        %s4167 = scalar_lea.vmem [#allocation3], 51
        %4168 = vst.msk [vmem:[%s4167] ss:$8 sm:$0x3] %vm1437, %v4165
        %4169 = vst.msk [vmem:[%s4167] ss:$8 sm:$0x0] %vm1437, %v4165
        %v4170 = vld [vmem:[#allocation3] sm:$0xff]
        %v4171 = vld [vmem:[#allocation3 + $0x8] sm:$0xff]
        %v4172 = vld [vmem:[#allocation3 + $0x10] sm:$0xff]
        %v4173 = vld [vmem:[#allocation3 + $0x18] sm:$0xff]
        %v4174 = vld [vmem:[#allocation3 + $0x20] sm:$0xff]
        %v4175 = vld [vmem:[#allocation3 + $0x28] sm:$0xff]
        %v4176 = vld [vmem:[#allocation3 + $0x30] sm:$0xf]
        %v4177 = vld [vmem:[#allocation3 + $0x38] sm:$0xf]
        %v4178 = vmax.f32 %v4170, %v4174
        %vm4179 = vcmask 1043456
        %v4180 = vsel %vm4179, %v4176, -inf
        %v4181 = vmax.f32 %v4172, %v4180
        %v4182 = vmax.f32 %v4178, %v4181
        %v4183 = vrot.slane %v4182, 4
        %v4184 = vmax.f32 %v4182, %v4183
        %v4185 = vrot.slane %v4184, 2
        %v4186 = vmax.f32 %v4184, %v4185
        %v4187 = vrot.slane %v4186, 1
        %v4188 = vmax.f32 %v4186, %v4187
        %v4189 = vmax.f32 %v4171, %v4175
        %v4190 = vsel %vm4179, %v4177, -inf
        %v4191 = vmax.f32 %v4173, %v4190
        %v4192 = vmax.f32 %v4189, %v4191
        %v4193 = vrot.slane %v4192, 4
        %v4194 = vmax.f32 %v4192, %v4193
        %v4195 = vrot.slane %v4194, 2
        %v4196 = vmax.f32 %v4194, %v4195
        %v4197 = vrot.slane %v4196, 1
        %v4198 = vmax.f32 %v4196, %v4197
        %v4199 = vsub.f32 %v4170, %v4188
        %v4200 = vsub.f32 %v4171, %v4198
        %v4201 = vsub.f32 %v4172, %v4188
        %v4202 = vsub.f32 %v4173, %v4198
        %v4203 = vsub.f32 %v4174, %v4188
        %v4204 = vsub.f32 %v4175, %v4198
        %v4205 = vsub.f32 %v4176, %v4188
        %v4206 = vsub.f32 %v4177, %v4198
        %v4207 = vmul.f32 %v4199, 1.442695
        %v4208 = vpow.pop %v4207
        %v4209 = vmul.f32 %v4200, 1.442695
        %v4210 = vpow.pop %v4209
        %v4211 = vmul.f32 %v4201, 1.442695
        %v4212 = vpow.pop %v4211
        %v4213 = vmul.f32 %v4202, 1.442695
        %v4214 = vpow.pop %v4213
        %v4215 = vmul.f32 %v4203, 1.442695
        %v4216 = vpow.pop %v4215
        %v4217 = vmul.f32 %v4204, 1.442695
        %v4218 = vpow.pop %v4217
        %v4219 = vmul.f32 %v4205, 1.442695
        %v4220 = vpow.pop %v4219
        %v4221 = vmul.f32 %v4206, 1.442695
        %v4222 = vpow.pop %v4221
        %v4223 = vadd.f32 %v4208, %v4212
        %v4224 = vadd.f32 %v4223, %v4216
        %v4225 = vsel %vm4179, %v4220, 0.0
        %v4226 = vadd.f32 %v4224, %v4225
        %v4227 = vrot.slane %v4226, 4
        %v4228 = vadd.f32 %v4226, %v4227
        %v4229 = vrot.slane %v4228, 2
        %v4230 = vadd.f32 %v4228, %v4229
        %v4231 = vrot.slane %v4230, 1
        %v4232 = vadd.f32 %v4230, %v4231
        %v4233 = vadd.f32 %v4210, %v4214
        %v4234 = vadd.f32 %v4233, %v4218
        %v4235 = vsel %vm4179, %v4222, 0.0
        %v4236 = vadd.f32 %v4234, %v4235
        %v4237 = vrot.slane %v4236, 4
        %v4238 = vadd.f32 %v4236, %v4237
        %v4239 = vrot.slane %v4238, 2
        %v4240 = vadd.f32 %v4238, %v4239
        %v4241 = vrot.slane %v4240, 1
        %v4242 = vadd.f32 %v4240, %v4241
        %v4243 = vrcp.pop %v4232
        %v4244 = vrcp.pop %v4242
        %v4245 = vmul.f32 %v4208, %v4243
        %v4246 = vmul.f32 %v4210, %v4244
        %v4247 = vmul.f32 %v4212, %v4243
        %v4248 = vmul.f32 %v4214, %v4244
        %v4249 = vmul.f32 %v4216, %v4243
        %v4250 = vmul.f32 %v4218, %v4244
        %v4251 = vmul.f32 %v4220, %v4243
        %v4252 = vmul.f32 %v4222, %v4244
        %v4253 = vld [vmem:[#allocation2] sm:$0xff]
        %v4254 = vld [vmem:[#allocation2 + $0x8] sm:$0xff]
        %v4255 = vld [vmem:[#allocation2 + $0x1c0] sm:$0xff]
        %v4256 = vld [vmem:[#allocation2 + $0x1c8] sm:$0xff]
        %v4257 = vlaneseq
        %v4258 = vshrl.u32 %v4257, 7
        %v4259 = vsub.s32 0, %v4258
        %v4260 = vrot.slane %v4245, %v4259
        %v4261 = vlaneseq
        %v4262 = vshrl.u32 %v4261, 7
        %v4263 = vsub.s32 0, %v4262
        %v4264 = vrot.slane %v4246, %v4263
        %v4265 = vmul.f32 %v4260, %v4253
        %v4266 = vmul.f32 %v4264, %v4254
        %v4267 = vmul.f32 %v4260, %v4255
        %v4268 = vmul.f32 %v4264, %v4256
        %v4269 = vadd.f32 %v4265, 0.0
        %v4270 = vadd.f32 %v4266, 0.0
        %v4271 = vadd.f32 %v4267, 0.0
        %v4272 = vadd.f32 %v4268, 0.0
        %v4273 = vld [vmem:[#allocation2 + $0x10] sm:$0xff]
        %v4274 = vld [vmem:[#allocation2 + $0x18] sm:$0xff]
        %v4275 = vld [vmem:[#allocation2 + $0x1d0] sm:$0xff]
        %v4276 = vld [vmem:[#allocation2 + $0x1d8] sm:$0xff]
        %v4277 = vlaneseq
        %v4278 = vshrl.u32 %v4277, 7
        %v4279 = vsub.s32 1, %v4278
        %v4280 = vrot.slane %v4245, %v4279
        %v4281 = vlaneseq
        %v4282 = vshrl.u32 %v4281, 7
        %v4283 = vsub.s32 1, %v4282
        %v4284 = vrot.slane %v4246, %v4283
        %v4285 = vmul.f32 %v4280, %v4273
        %v4286 = vmul.f32 %v4284, %v4274
        %v4287 = vmul.f32 %v4280, %v4275
        %v4288 = vmul.f32 %v4284, %v4276
        %v4289 = vadd.f32 %v4269, %v4285
        %v4290 = vadd.f32 %v4270, %v4286
        %v4291 = vadd.f32 %v4271, %v4287
        %v4292 = vadd.f32 %v4272, %v4288
        %v4293 = vld [vmem:[#allocation2 + $0x20] sm:$0xff]
        %v4294 = vld [vmem:[#allocation2 + $0x28] sm:$0xff]
        %v4295 = vld [vmem:[#allocation2 + $0x1e0] sm:$0xff]
        %v4296 = vld [vmem:[#allocation2 + $0x1e8] sm:$0xff]
        %v4297 = vlaneseq
        %v4298 = vshrl.u32 %v4297, 7
        %v4299 = vsub.s32 2, %v4298
        %v4300 = vrot.slane %v4245, %v4299
        %v4301 = vlaneseq
        %v4302 = vshrl.u32 %v4301, 7
        %v4303 = vsub.s32 2, %v4302
        %v4304 = vrot.slane %v4246, %v4303
        %v4305 = vmul.f32 %v4300, %v4293
        %v4306 = vmul.f32 %v4304, %v4294
        %v4307 = vmul.f32 %v4300, %v4295
        %v4308 = vmul.f32 %v4304, %v4296
        %v4309 = vadd.f32 %v4289, %v4305
        %v4310 = vadd.f32 %v4290, %v4306
        %v4311 = vadd.f32 %v4291, %v4307
        %v4312 = vadd.f32 %v4292, %v4308
        %v4313 = vld [vmem:[#allocation2 + $0x30] sm:$0xff]
        %v4314 = vld [vmem:[#allocation2 + $0x38] sm:$0xff]
        %v4315 = vld [vmem:[#allocation2 + $0x1f0] sm:$0xff]
        %v4316 = vld [vmem:[#allocation2 + $0x1f8] sm:$0xff]
        %v4317 = vlaneseq
        %v4318 = vshrl.u32 %v4317, 7
        %v4319 = vsub.s32 3, %v4318
        %v4320 = vrot.slane %v4245, %v4319
        %v4321 = vlaneseq
        %v4322 = vshrl.u32 %v4321, 7
        %v4323 = vsub.s32 3, %v4322
        %v4324 = vrot.slane %v4246, %v4323
        %v4325 = vmul.f32 %v4320, %v4313
        %v4326 = vmul.f32 %v4324, %v4314
        %v4327 = vmul.f32 %v4320, %v4315
        %v4328 = vmul.f32 %v4324, %v4316
        %v4329 = vadd.f32 %v4309, %v4325
        %v4330 = vadd.f32 %v4310, %v4326
        %v4331 = vadd.f32 %v4311, %v4327
        %v4332 = vadd.f32 %v4312, %v4328
        %v4333 = vld [vmem:[#allocation2 + $0x40] sm:$0xff]
        %v4334 = vld [vmem:[#allocation2 + $0x48] sm:$0xff]
        %v4335 = vld [vmem:[#allocation2 + $0x200] sm:$0xff]
        %v4336 = vld [vmem:[#allocation2 + $0x208] sm:$0xff]
        %v4337 = vlaneseq
        %v4338 = vshrl.u32 %v4337, 7
        %v4339 = vsub.s32 4, %v4338
        %v4340 = vrot.slane %v4245, %v4339
        %v4341 = vlaneseq
        %v4342 = vshrl.u32 %v4341, 7
        %v4343 = vsub.s32 4, %v4342
        %v4344 = vrot.slane %v4246, %v4343
        %v4345 = vmul.f32 %v4340, %v4333
        %v4346 = vmul.f32 %v4344, %v4334
        %v4347 = vmul.f32 %v4340, %v4335
        %v4348 = vmul.f32 %v4344, %v4336
        %v4349 = vadd.f32 %v4329, %v4345
        %v4350 = vadd.f32 %v4330, %v4346
        %v4351 = vadd.f32 %v4331, %v4347
        %v4352 = vadd.f32 %v4332, %v4348
        %v4353 = vld [vmem:[#allocation2 + $0x50] sm:$0xff]
        %v4354 = vld [vmem:[#allocation2 + $0x58] sm:$0xff]
        %v4355 = vld [vmem:[#allocation2 + $0x210] sm:$0xff]
        %v4356 = vld [vmem:[#allocation2 + $0x218] sm:$0xff]
        %v4357 = vlaneseq
        %v4358 = vshrl.u32 %v4357, 7
        %v4359 = vsub.s32 5, %v4358
        %v4360 = vrot.slane %v4245, %v4359
        %v4361 = vlaneseq
        %v4362 = vshrl.u32 %v4361, 7
        %v4363 = vsub.s32 5, %v4362
        %v4364 = vrot.slane %v4246, %v4363
        %v4365 = vmul.f32 %v4360, %v4353
        %v4366 = vmul.f32 %v4364, %v4354
        %v4367 = vmul.f32 %v4360, %v4355
        %v4368 = vmul.f32 %v4364, %v4356
        %v4369 = vadd.f32 %v4349, %v4365
        %v4370 = vadd.f32 %v4350, %v4366
        %v4371 = vadd.f32 %v4351, %v4367
        %v4372 = vadd.f32 %v4352, %v4368
        %v4373 = vld [vmem:[#allocation2 + $0x60] sm:$0xff]
        %v4374 = vld [vmem:[#allocation2 + $0x68] sm:$0xff]
        %v4375 = vld [vmem:[#allocation2 + $0x220] sm:$0xff]
        %v4376 = vld [vmem:[#allocation2 + $0x228] sm:$0xff]
        %v4377 = vlaneseq
        %v4378 = vshrl.u32 %v4377, 7
        %v4379 = vsub.s32 6, %v4378
        %v4380 = vrot.slane %v4245, %v4379
        %v4381 = vlaneseq
        %v4382 = vshrl.u32 %v4381, 7
        %v4383 = vsub.s32 6, %v4382
        %v4384 = vrot.slane %v4246, %v4383
        %v4385 = vmul.f32 %v4380, %v4373
        %v4386 = vmul.f32 %v4384, %v4374
        %v4387 = vmul.f32 %v4380, %v4375
        %v4388 = vmul.f32 %v4384, %v4376
        %v4389 = vadd.f32 %v4369, %v4385
        %v4390 = vadd.f32 %v4370, %v4386
        %v4391 = vadd.f32 %v4371, %v4387
        %v4392 = vadd.f32 %v4372, %v4388
        %v4393 = vld [vmem:[#allocation2 + $0x70] sm:$0xff]
        %v4394 = vld [vmem:[#allocation2 + $0x78] sm:$0xff]
        %v4395 = vld [vmem:[#allocation2 + $0x230] sm:$0xff]
        %v4396 = vld [vmem:[#allocation2 + $0x238] sm:$0xff]
        %v4397 = vlaneseq
        %v4398 = vshrl.u32 %v4397, 7
        %v4399 = vsub.s32 7, %v4398
        %v4400 = vrot.slane %v4245, %v4399
        %v4401 = vlaneseq
        %v4402 = vshrl.u32 %v4401, 7
        %v4403 = vsub.s32 7, %v4402
        %v4404 = vrot.slane %v4246, %v4403
        %v4405 = vmul.f32 %v4400, %v4393
        %v4406 = vmul.f32 %v4404, %v4394
        %v4407 = vmul.f32 %v4400, %v4395
        %v4408 = vmul.f32 %v4404, %v4396
        %v4409 = vadd.f32 %v4389, %v4405
        %v4410 = vadd.f32 %v4390, %v4406
        %v4411 = vadd.f32 %v4391, %v4407
        %v4412 = vadd.f32 %v4392, %v4408
        %v4413 = vld [vmem:[#allocation2 + $0x80] sm:$0xff]
        %v4414 = vld [vmem:[#allocation2 + $0x88] sm:$0xff]
        %v4415 = vld [vmem:[#allocation2 + $0x240] sm:$0xff]
        %v4416 = vld [vmem:[#allocation2 + $0x248] sm:$0xff]
        %v4417 = vlaneseq
        %v4418 = vshrl.u32 %v4417, 7
        %v4419 = vsub.s32 0, %v4418
        %v4420 = vrot.slane %v4247, %v4419
        %v4421 = vlaneseq
        %v4422 = vshrl.u32 %v4421, 7
        %v4423 = vsub.s32 0, %v4422
        %v4424 = vrot.slane %v4248, %v4423
        %v4425 = vmul.f32 %v4420, %v4413
        %v4426 = vmul.f32 %v4424, %v4414
        %v4427 = vmul.f32 %v4420, %v4415
        %v4428 = vmul.f32 %v4424, %v4416
        %v4429 = vadd.f32 %v4409, %v4425
        %v4430 = vadd.f32 %v4410, %v4426
        %v4431 = vadd.f32 %v4411, %v4427
        %v4432 = vadd.f32 %v4412, %v4428
        %v4433 = vld [vmem:[#allocation2 + $0x90] sm:$0xff]
        %v4434 = vld [vmem:[#allocation2 + $0x98] sm:$0xff]
        %v4435 = vld [vmem:[#allocation2 + $0x250] sm:$0xff]
        %v4436 = vld [vmem:[#allocation2 + $0x258] sm:$0xff]
        %v4437 = vlaneseq
        %v4438 = vshrl.u32 %v4437, 7
        %v4439 = vsub.s32 1, %v4438
        %v4440 = vrot.slane %v4247, %v4439
        %v4441 = vlaneseq
        %v4442 = vshrl.u32 %v4441, 7
        %v4443 = vsub.s32 1, %v4442
        %v4444 = vrot.slane %v4248, %v4443
        %v4445 = vmul.f32 %v4440, %v4433
        %v4446 = vmul.f32 %v4444, %v4434
        %v4447 = vmul.f32 %v4440, %v4435
        %v4448 = vmul.f32 %v4444, %v4436
        %v4449 = vadd.f32 %v4429, %v4445
        %v4450 = vadd.f32 %v4430, %v4446
        %v4451 = vadd.f32 %v4431, %v4447
        %v4452 = vadd.f32 %v4432, %v4448
        %v4453 = vld [vmem:[#allocation2 + $0xa0] sm:$0xff]
        %v4454 = vld [vmem:[#allocation2 + $0xa8] sm:$0xff]
        %v4455 = vld [vmem:[#allocation2 + $0x260] sm:$0xff]
        %v4456 = vld [vmem:[#allocation2 + $0x268] sm:$0xff]
        %v4457 = vlaneseq
        %v4458 = vshrl.u32 %v4457, 7
        %v4459 = vsub.s32 2, %v4458
        %v4460 = vrot.slane %v4247, %v4459
        %v4461 = vlaneseq
        %v4462 = vshrl.u32 %v4461, 7
        %v4463 = vsub.s32 2, %v4462
        %v4464 = vrot.slane %v4248, %v4463
        %v4465 = vmul.f32 %v4460, %v4453
        %v4466 = vmul.f32 %v4464, %v4454
        %v4467 = vmul.f32 %v4460, %v4455
        %v4468 = vmul.f32 %v4464, %v4456
        %v4469 = vadd.f32 %v4449, %v4465
        %v4470 = vadd.f32 %v4450, %v4466
        %v4471 = vadd.f32 %v4451, %v4467
        %v4472 = vadd.f32 %v4452, %v4468
        %v4473 = vld [vmem:[#allocation2 + $0xb0] sm:$0xff]
        %v4474 = vld [vmem:[#allocation2 + $0xb8] sm:$0xff]
        %v4475 = vld [vmem:[#allocation2 + $0x270] sm:$0xff]
        %v4476 = vld [vmem:[#allocation2 + $0x278] sm:$0xff]
        %v4477 = vlaneseq
        %v4478 = vshrl.u32 %v4477, 7
        %v4479 = vsub.s32 3, %v4478
        %v4480 = vrot.slane %v4247, %v4479
        %v4481 = vlaneseq
        %v4482 = vshrl.u32 %v4481, 7
        %v4483 = vsub.s32 3, %v4482
        %v4484 = vrot.slane %v4248, %v4483
        %v4485 = vmul.f32 %v4480, %v4473
        %v4486 = vmul.f32 %v4484, %v4474
        %v4487 = vmul.f32 %v4480, %v4475
        %v4488 = vmul.f32 %v4484, %v4476
        %v4489 = vadd.f32 %v4469, %v4485
        %v4490 = vadd.f32 %v4470, %v4486
        %v4491 = vadd.f32 %v4471, %v4487
        %v4492 = vadd.f32 %v4472, %v4488
        %v4493 = vld [vmem:[#allocation2 + $0xc0] sm:$0xff]
        %v4494 = vld [vmem:[#allocation2 + $0xc8] sm:$0xff]
        %v4495 = vld [vmem:[#allocation2 + $0x280] sm:$0xff]
        %v4496 = vld [vmem:[#allocation2 + $0x288] sm:$0xff]
        %v4497 = vlaneseq
        %v4498 = vshrl.u32 %v4497, 7
        %v4499 = vsub.s32 4, %v4498
        %v4500 = vrot.slane %v4247, %v4499
        %v4501 = vlaneseq
        %v4502 = vshrl.u32 %v4501, 7
        %v4503 = vsub.s32 4, %v4502
        %v4504 = vrot.slane %v4248, %v4503
        %v4505 = vmul.f32 %v4500, %v4493
        %v4506 = vmul.f32 %v4504, %v4494
        %v4507 = vmul.f32 %v4500, %v4495
        %v4508 = vmul.f32 %v4504, %v4496
        %v4509 = vadd.f32 %v4489, %v4505
        %v4510 = vadd.f32 %v4490, %v4506
        %v4511 = vadd.f32 %v4491, %v4507
        %v4512 = vadd.f32 %v4492, %v4508
        %v4513 = vld [vmem:[#allocation2 + $0xd0] sm:$0xff]
        %v4514 = vld [vmem:[#allocation2 + $0xd8] sm:$0xff]
        %v4515 = vld [vmem:[#allocation2 + $0x290] sm:$0xff]
        %v4516 = vld [vmem:[#allocation2 + $0x298] sm:$0xff]
        %v4517 = vlaneseq
        %v4518 = vshrl.u32 %v4517, 7
        %v4519 = vsub.s32 5, %v4518
        %v4520 = vrot.slane %v4247, %v4519
        %v4521 = vlaneseq
        %v4522 = vshrl.u32 %v4521, 7
        %v4523 = vsub.s32 5, %v4522
        %v4524 = vrot.slane %v4248, %v4523
        %v4525 = vmul.f32 %v4520, %v4513
        %v4526 = vmul.f32 %v4524, %v4514
        %v4527 = vmul.f32 %v4520, %v4515
        %v4528 = vmul.f32 %v4524, %v4516
        %v4529 = vadd.f32 %v4509, %v4525
        %v4530 = vadd.f32 %v4510, %v4526
        %v4531 = vadd.f32 %v4511, %v4527
        %v4532 = vadd.f32 %v4512, %v4528
        %v4533 = vld [vmem:[#allocation2 + $0xe0] sm:$0xff]
        %v4534 = vld [vmem:[#allocation2 + $0xe8] sm:$0xff]
        %v4535 = vld [vmem:[#allocation2 + $0x2a0] sm:$0xff]
        %v4536 = vld [vmem:[#allocation2 + $0x2a8] sm:$0xff]
        %v4537 = vlaneseq
        %v4538 = vshrl.u32 %v4537, 7
        %v4539 = vsub.s32 6, %v4538
        %v4540 = vrot.slane %v4247, %v4539
        %v4541 = vlaneseq
        %v4542 = vshrl.u32 %v4541, 7
        %v4543 = vsub.s32 6, %v4542
        %v4544 = vrot.slane %v4248, %v4543
        %v4545 = vmul.f32 %v4540, %v4533
        %v4546 = vmul.f32 %v4544, %v4534
        %v4547 = vmul.f32 %v4540, %v4535
        %v4548 = vmul.f32 %v4544, %v4536
        %v4549 = vadd.f32 %v4529, %v4545
        %v4550 = vadd.f32 %v4530, %v4546
        %v4551 = vadd.f32 %v4531, %v4547
        %v4552 = vadd.f32 %v4532, %v4548
        %v4553 = vld [vmem:[#allocation2 + $0xf0] sm:$0xff]
        %v4554 = vld [vmem:[#allocation2 + $0xf8] sm:$0xff]
        %v4555 = vld [vmem:[#allocation2 + $0x2b0] sm:$0xff]
        %v4556 = vld [vmem:[#allocation2 + $0x2b8] sm:$0xff]
        %v4557 = vlaneseq
        %v4558 = vshrl.u32 %v4557, 7
        %v4559 = vsub.s32 7, %v4558
        %v4560 = vrot.slane %v4247, %v4559
        %v4561 = vlaneseq
        %v4562 = vshrl.u32 %v4561, 7
        %v4563 = vsub.s32 7, %v4562
        %v4564 = vrot.slane %v4248, %v4563
        %v4565 = vmul.f32 %v4560, %v4553
        %v4566 = vmul.f32 %v4564, %v4554
        %v4567 = vmul.f32 %v4560, %v4555
        %v4568 = vmul.f32 %v4564, %v4556
        %v4569 = vadd.f32 %v4549, %v4565
        %v4570 = vadd.f32 %v4550, %v4566
        %v4571 = vadd.f32 %v4551, %v4567
        %v4572 = vadd.f32 %v4552, %v4568
        %v4573 = vld [vmem:[#allocation2 + $0x100] sm:$0xff]
        %v4574 = vld [vmem:[#allocation2 + $0x108] sm:$0xff]
        %v4575 = vld [vmem:[#allocation2 + $0x2c0] sm:$0xff]
        %v4576 = vld [vmem:[#allocation2 + $0x2c8] sm:$0xff]
        %v4577 = vlaneseq
        %v4578 = vshrl.u32 %v4577, 7
        %v4579 = vsub.s32 0, %v4578
        %v4580 = vrot.slane %v4249, %v4579
        %v4581 = vlaneseq
        %v4582 = vshrl.u32 %v4581, 7
        %v4583 = vsub.s32 0, %v4582
        %v4584 = vrot.slane %v4250, %v4583
        %v4585 = vmul.f32 %v4580, %v4573
        %v4586 = vmul.f32 %v4584, %v4574
        %v4587 = vmul.f32 %v4580, %v4575
        %v4588 = vmul.f32 %v4584, %v4576
        %v4589 = vadd.f32 %v4569, %v4585
        %v4590 = vadd.f32 %v4570, %v4586
        %v4591 = vadd.f32 %v4571, %v4587
        %v4592 = vadd.f32 %v4572, %v4588
        %v4593 = vld [vmem:[#allocation2 + $0x110] sm:$0xff]
        %v4594 = vld [vmem:[#allocation2 + $0x118] sm:$0xff]
        %v4595 = vld [vmem:[#allocation2 + $0x2d0] sm:$0xff]
        %v4596 = vld [vmem:[#allocation2 + $0x2d8] sm:$0xff]
        %v4597 = vlaneseq
        %v4598 = vshrl.u32 %v4597, 7
        %v4599 = vsub.s32 1, %v4598
        %v4600 = vrot.slane %v4249, %v4599
        %v4601 = vlaneseq
        %v4602 = vshrl.u32 %v4601, 7
        %v4603 = vsub.s32 1, %v4602
        %v4604 = vrot.slane %v4250, %v4603
        %v4605 = vmul.f32 %v4600, %v4593
        %v4606 = vmul.f32 %v4604, %v4594
        %v4607 = vmul.f32 %v4600, %v4595
        %v4608 = vmul.f32 %v4604, %v4596
        %v4609 = vadd.f32 %v4589, %v4605
        %v4610 = vadd.f32 %v4590, %v4606
        %v4611 = vadd.f32 %v4591, %v4607
        %v4612 = vadd.f32 %v4592, %v4608
        %v4613 = vld [vmem:[#allocation2 + $0x120] sm:$0xff]
        %v4614 = vld [vmem:[#allocation2 + $0x128] sm:$0xff]
        %v4615 = vld [vmem:[#allocation2 + $0x2e0] sm:$0xff]
        %v4616 = vld [vmem:[#allocation2 + $0x2e8] sm:$0xff]
        %v4617 = vlaneseq
        %v4618 = vshrl.u32 %v4617, 7
        %v4619 = vsub.s32 2, %v4618
        %v4620 = vrot.slane %v4249, %v4619
        %v4621 = vlaneseq
        %v4622 = vshrl.u32 %v4621, 7
        %v4623 = vsub.s32 2, %v4622
        %v4624 = vrot.slane %v4250, %v4623
        %v4625 = vmul.f32 %v4620, %v4613
        %v4626 = vmul.f32 %v4624, %v4614
        %v4627 = vmul.f32 %v4620, %v4615
        %v4628 = vmul.f32 %v4624, %v4616
        %v4629 = vadd.f32 %v4609, %v4625
        %v4630 = vadd.f32 %v4610, %v4626
        %v4631 = vadd.f32 %v4611, %v4627
        %v4632 = vadd.f32 %v4612, %v4628
        %v4633 = vld [vmem:[#allocation2 + $0x130] sm:$0xff]
        %v4634 = vld [vmem:[#allocation2 + $0x138] sm:$0xff]
        %v4635 = vld [vmem:[#allocation2 + $0x2f0] sm:$0xff]
        %v4636 = vld [vmem:[#allocation2 + $0x2f8] sm:$0xff]
        %v4637 = vlaneseq
        %v4638 = vshrl.u32 %v4637, 7
        %v4639 = vsub.s32 3, %v4638
        %v4640 = vrot.slane %v4249, %v4639
        %v4641 = vlaneseq
        %v4642 = vshrl.u32 %v4641, 7
        %v4643 = vsub.s32 3, %v4642
        %v4644 = vrot.slane %v4250, %v4643
        %v4645 = vmul.f32 %v4640, %v4633
        %v4646 = vmul.f32 %v4644, %v4634
        %v4647 = vmul.f32 %v4640, %v4635
        %v4648 = vmul.f32 %v4644, %v4636
        %v4649 = vadd.f32 %v4629, %v4645
        %v4650 = vadd.f32 %v4630, %v4646
        %v4651 = vadd.f32 %v4631, %v4647
        %v4652 = vadd.f32 %v4632, %v4648
        %v4653 = vld [vmem:[#allocation2 + $0x140] sm:$0xff]
        %v4654 = vld [vmem:[#allocation2 + $0x148] sm:$0xff]
        %v4655 = vld [vmem:[#allocation2 + $0x300] sm:$0xff]
        %v4656 = vld [vmem:[#allocation2 + $0x308] sm:$0xff]
        %v4657 = vlaneseq
        %v4658 = vshrl.u32 %v4657, 7
        %v4659 = vsub.s32 4, %v4658
        %v4660 = vrot.slane %v4249, %v4659
        %v4661 = vlaneseq
        %v4662 = vshrl.u32 %v4661, 7
        %v4663 = vsub.s32 4, %v4662
        %v4664 = vrot.slane %v4250, %v4663
        %v4665 = vmul.f32 %v4660, %v4653
        %v4666 = vmul.f32 %v4664, %v4654
        %v4667 = vmul.f32 %v4660, %v4655
        %v4668 = vmul.f32 %v4664, %v4656
        %v4669 = vadd.f32 %v4649, %v4665
        %v4670 = vadd.f32 %v4650, %v4666
        %v4671 = vadd.f32 %v4651, %v4667
        %v4672 = vadd.f32 %v4652, %v4668
        %v4673 = vld [vmem:[#allocation2 + $0x150] sm:$0xff]
        %v4674 = vld [vmem:[#allocation2 + $0x158] sm:$0xff]
        %v4675 = vld [vmem:[#allocation2 + $0x310] sm:$0xff]
        %v4676 = vld [vmem:[#allocation2 + $0x318] sm:$0xff]
        %v4677 = vlaneseq
        %v4678 = vshrl.u32 %v4677, 7
        %v4679 = vsub.s32 5, %v4678
        %v4680 = vrot.slane %v4249, %v4679
        %v4681 = vlaneseq
        %v4682 = vshrl.u32 %v4681, 7
        %v4683 = vsub.s32 5, %v4682
        %v4684 = vrot.slane %v4250, %v4683
        %v4685 = vmul.f32 %v4680, %v4673
        %v4686 = vmul.f32 %v4684, %v4674
        %v4687 = vmul.f32 %v4680, %v4675
        %v4688 = vmul.f32 %v4684, %v4676
        %v4689 = vadd.f32 %v4669, %v4685
        %v4690 = vadd.f32 %v4670, %v4686
        %v4691 = vadd.f32 %v4671, %v4687
        %v4692 = vadd.f32 %v4672, %v4688
        %v4693 = vld [vmem:[#allocation2 + $0x160] sm:$0xff]
        %v4694 = vld [vmem:[#allocation2 + $0x168] sm:$0xff]
        %v4695 = vld [vmem:[#allocation2 + $0x320] sm:$0xff]
        %v4696 = vld [vmem:[#allocation2 + $0x328] sm:$0xff]
        %v4697 = vlaneseq
        %v4698 = vshrl.u32 %v4697, 7
        %v4699 = vsub.s32 6, %v4698
        %v4700 = vrot.slane %v4249, %v4699
        %v4701 = vlaneseq
        %v4702 = vshrl.u32 %v4701, 7
        %v4703 = vsub.s32 6, %v4702
        %v4704 = vrot.slane %v4250, %v4703
        %v4705 = vmul.f32 %v4700, %v4693
        %v4706 = vmul.f32 %v4704, %v4694
        %v4707 = vmul.f32 %v4700, %v4695
        %v4708 = vmul.f32 %v4704, %v4696
        %v4709 = vadd.f32 %v4689, %v4705
        %v4710 = vadd.f32 %v4690, %v4706
        %v4711 = vadd.f32 %v4691, %v4707
        %v4712 = vadd.f32 %v4692, %v4708
        %v4713 = vld [vmem:[#allocation2 + $0x170] sm:$0xff]
        %v4714 = vld [vmem:[#allocation2 + $0x178] sm:$0xff]
        %v4715 = vld [vmem:[#allocation2 + $0x330] sm:$0xff]
        %v4716 = vld [vmem:[#allocation2 + $0x338] sm:$0xff]
        %v4717 = vlaneseq
        %v4718 = vshrl.u32 %v4717, 7
        %v4719 = vsub.s32 7, %v4718
        %v4720 = vrot.slane %v4249, %v4719
        %v4721 = vlaneseq
        %v4722 = vshrl.u32 %v4721, 7
        %v4723 = vsub.s32 7, %v4722
        %v4724 = vrot.slane %v4250, %v4723
        %v4725 = vmul.f32 %v4720, %v4713
        %v4726 = vmul.f32 %v4724, %v4714
        %v4727 = vmul.f32 %v4720, %v4715
        %v4728 = vmul.f32 %v4724, %v4716
        %v4729 = vadd.f32 %v4709, %v4725
        %v4730 = vadd.f32 %v4710, %v4726
        %v4731 = vadd.f32 %v4711, %v4727
        %v4732 = vadd.f32 %v4712, %v4728
        %v4733 = vld [vmem:[#allocation2 + $0x180] sm:$0xff]
        %v4734 = vld [vmem:[#allocation2 + $0x188] sm:$0xff]
        %v4735 = vld [vmem:[#allocation2 + $0x340] sm:$0xff]
        %v4736 = vld [vmem:[#allocation2 + $0x348] sm:$0xff]
        %v4737 = vlaneseq
        %v4738 = vshrl.u32 %v4737, 7
        %v4739 = vsub.s32 0, %v4738
        %v4740 = vrot.slane %v4251, %v4739
        %v4741 = vlaneseq
        %v4742 = vshrl.u32 %v4741, 7
        %v4743 = vsub.s32 0, %v4742
        %v4744 = vrot.slane %v4252, %v4743
        %v4745 = vmul.f32 %v4740, %v4733
        %v4746 = vmul.f32 %v4744, %v4734
        %v4747 = vmul.f32 %v4740, %v4735
        %v4748 = vmul.f32 %v4744, %v4736
        %v4749 = vadd.f32 %v4729, %v4745
        %v4750 = vadd.f32 %v4730, %v4746
        %v4751 = vadd.f32 %v4731, %v4747
        %v4752 = vadd.f32 %v4732, %v4748
        %v4753 = vld [vmem:[#allocation2 + $0x190] sm:$0xff]
        %v4754 = vld [vmem:[#allocation2 + $0x198] sm:$0xff]
        %v4755 = vld [vmem:[#allocation2 + $0x350] sm:$0xff]
        %v4756 = vld [vmem:[#allocation2 + $0x358] sm:$0xff]
        %v4757 = vlaneseq
        %v4758 = vshrl.u32 %v4757, 7
        %v4759 = vsub.s32 1, %v4758
        %v4760 = vrot.slane %v4251, %v4759
        %v4761 = vlaneseq
        %v4762 = vshrl.u32 %v4761, 7
        %v4763 = vsub.s32 1, %v4762
        %v4764 = vrot.slane %v4252, %v4763
        %v4765 = vmul.f32 %v4760, %v4753
        %v4766 = vmul.f32 %v4764, %v4754
        %v4767 = vmul.f32 %v4760, %v4755
        %v4768 = vmul.f32 %v4764, %v4756
        %v4769 = vadd.f32 %v4749, %v4765
        %v4770 = vadd.f32 %v4750, %v4766
        %v4771 = vadd.f32 %v4751, %v4767
        %v4772 = vadd.f32 %v4752, %v4768
        %v4773 = vld [vmem:[#allocation2 + $0x1a0] sm:$0xff]
        %v4774 = vld [vmem:[#allocation2 + $0x1a8] sm:$0xff]
        %v4775 = vld [vmem:[#allocation2 + $0x360] sm:$0xff]
        %v4776 = vld [vmem:[#allocation2 + $0x368] sm:$0xff]
        %v4777 = vlaneseq
        %v4778 = vshrl.u32 %v4777, 7
        %v4779 = vsub.s32 2, %v4778
        %v4780 = vrot.slane %v4251, %v4779
        %v4781 = vlaneseq
        %v4782 = vshrl.u32 %v4781, 7
        %v4783 = vsub.s32 2, %v4782
        %v4784 = vrot.slane %v4252, %v4783
        %v4785 = vmul.f32 %v4780, %v4773
        %v4786 = vmul.f32 %v4784, %v4774
        %v4787 = vmul.f32 %v4780, %v4775
        %v4788 = vmul.f32 %v4784, %v4776
        %v4789 = vadd.f32 %v4769, %v4785
        %v4790 = vadd.f32 %v4770, %v4786
        %v4791 = vadd.f32 %v4771, %v4787
        %v4792 = vadd.f32 %v4772, %v4788
        %v4793 = vld [vmem:[#allocation2 + $0x1b0] sm:$0xff]
        %v4794 = vld [vmem:[#allocation2 + $0x1b8] sm:$0xff]
        %v4795 = vld [vmem:[#allocation2 + $0x370] sm:$0xff]
        %v4796 = vld [vmem:[#allocation2 + $0x378] sm:$0xff]
        %v4797 = vlaneseq
        %v4798 = vshrl.u32 %v4797, 7
        %v4799 = vsub.s32 3, %v4798
        %v4800 = vrot.slane %v4251, %v4799
        %v4801 = vlaneseq
        %v4802 = vshrl.u32 %v4801, 7
        %v4803 = vsub.s32 3, %v4802
        %v4804 = vrot.slane %v4252, %v4803
        %v4805 = vmul.f32 %v4800, %v4793
        %v4806 = vmul.f32 %v4804, %v4794
        %v4807 = vmul.f32 %v4800, %v4795
        %v4808 = vmul.f32 %v4804, %v4796
        %v4809 = vadd.f32 %v4789, %v4805
        %v4810 = vadd.f32 %v4790, %v4806
        %v4811 = vadd.f32 %v4791, %v4807
        %v4812 = vadd.f32 %v4792, %v4808
        %v4813 = vld [vmem:[%s5] sm:$0xff]
        %v4814 = vld [vmem:[%s5 + $0x8] sm:$0xff]
        %4816 = vset.pattern.permute.xlu0 0
        %4817 = vperm.xlu0 %4816, %v4813
        %v4818 = vpop.permute.xlu0 %4817
        %4821 = vset.pattern.permute.xlu0 0
        %4822 = vperm.xlu0 %4821, %v4814
        %v4823 = vpop.permute.xlu0 %4822
        %v4825 = vmul.f32 %v4809, %v4818
        %v4826 = vmul.f32 %v4810, %v4818
        %v4827 = vmul.f32 %v4811, %v4823
        %v4828 = vmul.f32 %v4812, %v4823
        %v4829 = vadd.f32 %v4825, %v4827
        %v4830 = vrot.slane %v4829, 4
        %v4831 = vadd.f32 %v4829, %v4830
        %v4832 = vrot.slane %v4831, 2
        %v4833 = vadd.f32 %v4831, %v4832
        %v4834 = vrot.slane %v4833, 1
        %v4835 = vadd.f32 %v4833, %v4834
        %v4836 = vadd.f32 %v4826, %v4828
        %v4837 = vrot.slane %v4836, 4
        %v4838 = vadd.f32 %v4836, %v4837
        %v4839 = vrot.slane %v4838, 2
        %v4840 = vadd.f32 %v4838, %v4839
        %v4841 = vrot.slane %v4840, 1
        %v4842 = vadd.f32 %v4840, %v4841
        %v4843 = vld [vmem:[%s288] sm:$0x3]
        %v4846 = vcombine.low %v4835, %v4842
        %v4848 = vunpack.c.l.s4 1966171168
        %v4849 = vunpack.c.0.s8 %v4848
        %v4850 = vlaneseq
        %v4851 = vshrl.u32 %v4850, 7
        %v4852 = vsub.s32 %v4849, %v4851
        %v4853 = vrot.slane %v4846, %v4852
        %v4855 = vunpack.c.l.s4 1966171168
        %v4856 = vunpack.c.0.s8 %v4855
        %v4857 = vlaneseq
        %v4858 = vshrl.u32 %v4857, 7
        %v4859 = vsub.s32 %v4856, %v4858
        %v4860 = vrot.slane %v4853, %v4859
        %v4862 = vadd.f32 %v4843, %v4860
        %v4863 = vxor.u32 %v4862, 2147483648
        %v4864 = vmul.f32 %v4863, 1.442695
        %v4865 = vpow.pop %v4864
        %v4866 = vadd.f32 %v4865, 1.0
        %v4867 = vrcp.pop %v4866
        %v4868 = vmul.f32 1.0, %v4867
        %4869 = vst.msk [vmem:[%s283] sm:$0x3] %vm1437, %v4868
        %s4870 = sand.u32 %s167, 1
        %s4871 = scalar_lea.sflag [#allocation6], %s4870
        %s4872 = sand.u32 %s167, 1
        %s4873 = smul.addr %s4872, 2
        %s4874 = scalar_lea.vmem [#allocation7], %s4873
        // Predicated region
        $region49: #{tpu_custom_call.1} parent=43 // pred_check
          %p4875 = pneg %p177
        $region50: #{tpu_custom_call.1} parent=43 // pred_check_branch
          %4877 = sbr.rel (%p4875) target = $region52
        $region51: #{tpu_custom_call.1} parent=43 // pred_region
          %s4878 = smul.u32 2, %s23
          %s4880 = ssub.s32 32, 32
          %4881 = vsyncadd %s4871, %s4880
          %s4882 = smul.addr %s4878, 16
          %s4883 = scalar_lea.hbm %s6, %s4882
          %s4885 = sshll.u32 %s4874, 4
          %s4886 = int_to_ptr.vmem [resolvable:$true] %s4885
          %4888 = dma.vmem_to_hbm [thread:$0]  %s4886, 32, %s4883, %s4871
        $region52: #{tpu_custom_call.1} parent=43 // pred_fallthru
          _
      $region44: #{tpu_custom_call.1} parent=5 // pred_fallthru
        _
      %p4889 = scmp.le.s32.totalorder 2, %s18
      // Predicated region
      $region53: #{tpu_custom_call.1} parent=5 // pred_check
        %p4890 = pneg %p4889
      $region54: #{tpu_custom_call.1} parent=5 // pred_check_branch
        %4892 = sbr.rel (%p4890) target = $region56
      $region55: #{tpu_custom_call.1} parent=5 // pred_region
        %s4893 = ssub.s32 %s18, 2
        // Predicated region
        $region57: #{tpu_custom_call.1} parent=55 // pred_check
          %p4894 = pneg %p183
        $region58: #{tpu_custom_call.1} parent=55 // pred_check_branch
          %4896 = sbr.rel (%p4894) target = $region60
        $region59: #{tpu_custom_call.1} parent=55 // pred_region
          %s4897 = sand.u32 %s168, 1
          %s4898 = scalar_lea.sflag [#allocation6], %s4897
          %s4899 = sand.u32 %s168, 1
          %s4900 = smul.addr %s4899, 2
          %s4901 = scalar_lea.vmem [#allocation7], %s4900
          %4902 = dma.done %s4898, 32
        $region60: #{tpu_custom_call.1} parent=55 // pred_fallthru
          _
      $region56: #{tpu_custom_call.1} parent=5 // pred_fallthru
        _
    $region6: #{tpu_custom_call.1} parent=1 // loop_footer
      %s22 = sadd.s32 1, %s18
    $region7: #{tpu_custom_call.1} parent=1 // loop_footer_branch
      %17 = sbr.rel target = $region3
    $region8: #{tpu_custom_call.1} parent=1 // loop_exit
      _
    %4903 = vsyncpa [#allocation5], 1
    %s4904 = scalar_lea.sflag [#allocation5], 1
    %4905 = vsyncpa %s4904, 1
    %4906 = vsyncpa [#allocation6], 1
    %s4907 = scalar_lea.sflag [#allocation6], 1
    %4908 = vsyncpa %s4907, 1

</llo_original>
